<compile_context>
chip_gen: v7x
topology: tpu7x:2x2x1
jax: 0.10.0
libtpu: 0.0.40
codegen_flags: <defaults>
</compile_context>

<pallas_src>
import jax
import jax.numpy as jnp
from jax.experimental import pallas as pl
from jax.experimental.pallas import tpu as pltpu


D_IN = 1024       # size_dict['small'][0]
D_HID = 512       # size_dict['small'][1]
N_CLASSES = 2


def _round_up(x, m):
    return ((x + m - 1) // m) * m


def _pick_tile_n(n, requested):
    """Row-tile size: multiple of 128, >=2 grid steps when the bag allows."""
    requested = max(128, _round_up(requested, 128))
    n128 = _round_up(n, 128)
    if n128 <= 256:
        return n128                       # tiny bag: one (possibly ragged) tile
    two_step = _round_up(pl.cdiv(n, 2), 128)   # megacore: aim for >=2 steps
    return min(requested, two_step)


def _mil_fc_kernel(h_ref, w1_ref, b1_ref, w2t_ref, b2_ref,
                   logits_ref, probs_ref):
    # h_ref:   (TILE_N, 1024) fp32 (streamed)   w1_ref:  (1024, 512) bf16
    # b1_ref:  (1, 512) f32                     w2t_ref: (2, 512)    bf16
    # b2_ref:  (2, 1)   f32                     outputs: (2, TILE_N) f32
    # Cast h in VMEM (HBM stream of h stays a single fp32 pass).
    h_bf = h_ref[...].astype(jnp.bfloat16)
    # Linear(1024 -> 512) + ReLU, fp32 accumulation on the MXU.
    hidden = jnp.dot(h_bf, w1_ref[...], preferred_element_type=jnp.float32)
    hidden = jnp.maximum(hidden + b1_ref[...], 0.0)
    # Linear(512 -> 2), emitted directly class-major as (2, TILE_N):
    # contract last dims of (2, 512) x (TILE_N, 512)  ==  w2.T @ hidden.T
    logits_t = jax.lax.dot_general(
        w2t_ref[...], hidden.astype(jnp.bfloat16),
        dimension_numbers=(((1,), (1,)), ((), ())),
        preferred_element_type=jnp.float32)
    logits_t = logits_t + b2_ref[...]
    logits_ref[...] = logits_t
    # 2-class softmax, closed form: p1 = sigmoid(l1 - l0), p0 = 1 - p1.
    # exp(l0 - l1) may overflow to inf for huge gaps -> p1 == 0.0 (softmax
    # limit, benign).
    l0 = logits_t[0:1, :]
    l1 = logits_t[1:2, :]
    p1 = pl.reciprocal(1.0 + jnp.exp(l0 - l1), approx=True)
    row = jax.lax.broadcasted_iota(jnp.int32, logits_t.shape, 0)
    probs_ref[...] = jnp.where(row == 0, 1.0 - p1, p1)


def mil_fc_pallas(h, w1, b1, w2, b2, *, tile_n=1024):
    """Classifier + per-instance softmax inside a tiled Pallas kernel.

    h:  (N, 1024), any float dtype (kept in its own dtype in HBM).
    w1: (1024, 512), b1: (512,), w2: (512, 2), b2: (2,)   (weights as (in,out)).
    Returns (logits_t, probs_t), each CLASS-MAJOR (2, N) float32.
    """
    n = h.shape[0]
    assert h.shape[1] == D_IN

    tile = _pick_tile_n(n, tile_n)
    grid = (pl.cdiv(n, tile),)

    # Weights/biases are tiny & VMEM-resident -> one-time casts are free.
    w1_bf = w1.astype(jnp.bfloat16)                       # (1024, 512)
    w2t_bf = w2.T.astype(jnp.bfloat16)                    # (2, 512)
    b1_2d = b1.reshape(1, D_HID).astype(jnp.float32)      # (1, 512)
    b2_2d = b2.reshape(N_CLASSES, 1).astype(jnp.float32)  # (2, 1)

    h_bytes = n * D_IN * jnp.dtype(h.dtype).itemsize
    bytes_accessed = (h_bytes
                      + D_IN * D_HID * 2 + N_CLASSES * D_HID * 2   # weights
                      + (D_HID + N_CLASSES) * 4                     # biases
                      + 2 * N_CLASSES * n * 4)                      # outputs
    cost = pl.CostEstimate(
        flops=2 * n * D_IN * D_HID + 2 * n * D_HID * N_CLASSES,
        transcendentals=n,                                           # 1 exp/row
        bytes_accessed=bytes_accessed)

    resident = dict(pipeline_mode=pl.Buffered(1))   # never re-fetched

    logits_t, probs_t = pl.pallas_call(
        _mil_fc_kernel,
        out_shape=(
            jax.ShapeDtypeStruct((N_CLASSES, n), jnp.float32),
            jax.ShapeDtypeStruct((N_CLASSES, n), jnp.float32),
        ),
        grid_spec=pltpu.PrefetchScalarGridSpec(
            num_scalar_prefetch=0,
            grid=grid,
            in_specs=[
                pl.BlockSpec((tile, D_IN), lambda i: (i, 0)),              # h streamed
                pl.BlockSpec((D_IN, D_HID), lambda i: (0, 0), **resident),  # w1
                pl.BlockSpec((1, D_HID), lambda i: (0, 0), **resident),     # b1
                pl.BlockSpec((N_CLASSES, D_HID), lambda i: (0, 0), **resident),  # w2.T
                pl.BlockSpec((N_CLASSES, 1), lambda i: (0, 0), **resident),      # b2
            ],
            out_specs=[
                pl.BlockSpec((N_CLASSES, tile), lambda i: (0, i)),
                pl.BlockSpec((N_CLASSES, tile), lambda i: (0, i)),
            ],
        ),
        compiler_params=pltpu.CompilerParams(
            dimension_semantics=("parallel",),        # megacore sharding on v7x
            vmem_limit_bytes=48 * 1024 * 1024),       # < 64 MiB v7x physical
        cost_estimate=cost,
    )(h, w1_bf, b1_2d, w2t_bf, b2_2d)
    return logits_t, probs_t


def mil_fc_forward(h, params, top_k=1, tile_n=1024):
    """Full MIL_fc.forward semantics (return_features=False path)."""
    w1, b1, w2, b2 = params
    logits_t, y_probs_t = mil_fc_pallas(h, w1, b1, w2, b2, tile_n=tile_n)

    # top_instance_idx = torch.topk(y_probs[:, 1], top_k, dim=0)[1].view(1)
    _, top_instance_idx = jax.lax.top_k(y_probs_t[1, :], top_k)
    top_instance_idx = top_instance_idx.reshape(top_k)

    # top_instance = torch.index_select(logits, dim=0, index=top_instance_idx)
    top_instance = jnp.take(logits_t, top_instance_idx, axis=1).T   # (top_k, 2)

    # Y_hat = torch.topk(top_instance, 1, dim=1)[1]
    Y_hat = jnp.argmax(top_instance, axis=1, keepdims=True)         # (top_k, 1)

    # Y_prob = F.softmax(top_instance, dim=1)
    Y_prob = jax.nn.softmax(top_instance, axis=1)

    y_probs = y_probs_t.T        # (N, 2), torch layout
    results_dict = {}
    # TODO(synk): return_features=True path not implemented (it indexes
    # self.classifier.module[...] which is unreachable/mis-indexed in the
    # reference module when dropout=False).
    return top_instance, Y_prob, Y_hat, y_probs, results_dict


def init_params(key):
    """Deterministic Xavier-style init (mirrors initialize_weights)."""
    k1, k2 = jax.random.split(key)
    # stored as (in, out) == transpose of torch's (out, in) weight
    w1 = jax.random.normal(k1, (D_IN, D_HID), jnp.float32) * (
        (2.0 / (D_IN + D_HID)) ** 0.5)
    b1 = jnp.zeros((D_HID,), jnp.float32)
    w2 = jax.random.normal(k2, (D_HID, N_CLASSES), jnp.float32) * (
        (2.0 / (D_HID + N_CLASSES)) ** 0.5)
    b2 = jnp.zeros((N_CLASSES,), jnp.float32)
    return w1, b1, w2, b2


def _reference(h, w1, b1, w2, b2):
    """Pure-JAX reference matching the kernel's bf16-input / fp32-acc math."""
    h_bf = h.astype(jnp.bfloat16)
    hidden = jnp.maximum(
        jnp.dot(h_bf, w1.astype(jnp.bfloat16),
                preferred_element_type=jnp.float32) + b1, 0.0)
    logits = jnp.dot(hidden.astype(jnp.bfloat16), w2.astype(jnp.bfloat16),
                     preferred_element_type=jnp.float32) + b2
    return logits, jax.nn.softmax(logits, axis=1)


if __name__ == "__main__":
    key = jax.random.PRNGKey(0)
    k_param, k_data = jax.random.split(key)

    params = init_params(k_param)
    w1, b1, w2, b2 = params

    # Medium bag: exercises a 2-step grid (tile 256) with a ragged last block.
    N = 300
    h = jax.random.normal(k_data, (N, D_IN), jnp.float32)

    logits_t, probs_t = mil_fc_pallas(h, w1, b1, w2, b2)
    top_instance, Y_prob, Y_hat, y_probs, results_dict = mil_fc_forward(
        h, params, top_k=1)

    # Tiny bag: exercises the single ragged-block path (tile 128 > N rows).
    N_small = 32
    h_small = jax.random.normal(jax.random.PRNGKey(1), (N_small, D_IN),
                                jnp.float32)
    logits_t_s, probs_t_s = mil_fc_pallas(h_small, w1, b1, w2, b2)

    jax.block_until_ready((logits_t, probs_t, top_instance, Y_prob, Y_hat,
                           y_probs, logits_t_s, probs_t_s))

    # --- correctness checks against a bf16-matched reference -------------
    logits_ref, probs_ref = _reference(h, w1, b1, w2, b2)
    assert jnp.allclose(logits_t.T, logits_ref, atol=2e-2), "logits mismatch"
    assert jnp.allclose(probs_t.T, probs_ref, atol=1e-2), "probs mismatch"
    assert jnp.allclose(probs_t.T, y_probs, atol=1e-6), "forward/probs mismatch"

    logits_ref_s, probs_ref_s = _reference(h_small, w1, b1, w2, b2)
    assert jnp.allclose(logits_t_s.T, logits_ref_s, atol=2e-2), "small logits"
    assert jnp.allclose(probs_t_s.T, probs_ref_s, atol=1e-2), "small probs"

    # Top-instance selection consistency (matches torch.topk/index_select).
    idx = jnp.argmax(y_probs[:, 1])
    assert jnp.allclose(top_instance[0], logits_t[:, idx], atol=1e-6)
    assert Y_hat.shape == (1, 1) and Y_prob.shape == (1, 2)
    assert jnp.allclose(jnp.sum(y_probs, axis=1), 1.0, atol=1e-3)

    print("KERNEL_OK")
</pallas_src>

<mosaic_0001>
module attributes {stable_mosaic.version = 11 : i64} {
  func.func @_mil_fc_kernel(%arg0: i32, %arg1: memref<256x1024xf32, #tpu.memory_space<vmem>>, %arg2: memref<1024x512xbf16, #tpu.memory_space<vmem>>, %arg3: memref<1x512xf32, #tpu.memory_space<vmem>>, %arg4: memref<2x512xbf16, #tpu.memory_space<vmem>>, %arg5: memref<2x1xf32, #tpu.memory_space<vmem>>, %arg6: memref<2x256xf32, #tpu.memory_space<vmem>>, %arg7: memref<2x256xf32, #tpu.memory_space<vmem>>) attributes {dimension_semantics = [#tpu.dimension_semantics<parallel>], iteration_bounds = array<i64: 2>, scalar_prefetch = 0 : i64, scratch_operands = 0 : i64, tpu.core_type = #tpu.core_type<tc>, window_params = [{transform_indices = @transform_0, window_bounds = array<i64: 256, 1024>}, {pipeline_mode = #tpu.pipeline_mode<synchronous>, transform_indices = @transform_1, window_bounds = array<i64: 1024, 512>}, {pipeline_mode = #tpu.pipeline_mode<synchronous>, transform_indices = @transform_2, window_bounds = array<i64: 1, 512>}, {pipeline_mode = #tpu.pipeline_mode<synchronous>, transform_indices = @transform_3, window_bounds = array<i64: 2, 512>}, {pipeline_mode = #tpu.pipeline_mode<synchronous>, transform_indices = @transform_4, window_bounds = array<i64: 2, 1>}, {transform_indices = @transform_5, window_bounds = array<i64: 2, 256>}, {transform_indices = @transform_6, window_bounds = array<i64: 2, 256>}]} {
    %c0 = arith.constant 0 : index
    %c0_0 = arith.constant 0 : index
    %0 = vector.load %arg1[%c0, %c0_0] : memref<256x1024xf32, #tpu.memory_space<vmem>>, vector<256x1024xf32>
    %1 = arith.truncf %0 : vector<256x1024xf32> to vector<256x1024xbf16>
    %c0_1 = arith.constant 0 : index
    %c0_2 = arith.constant 0 : index
    %2 = vector.load %arg2[%c0_1, %c0_2] : memref<1024x512xbf16, #tpu.memory_space<vmem>>, vector<1024x512xbf16>
    %cst = arith.constant dense<0.000000e+00> : vector<256x512xf32>
    %3 = tpu.matmul %1, %2, %cst {dimension_numbers = #tpu.dot_dimension_numbers<[1], [0], [0], [1], [0, 0, 1, 1], [], []>} : vector<256x1024xbf16>, vector<1024x512xbf16>, vector<256x512xf32> -> vector<256x512xf32>
    %c0_3 = arith.constant 0 : index
    %c0_4 = arith.constant 0 : index
    %4 = vector.load %arg3[%c0_3, %c0_4] : memref<1x512xf32, #tpu.memory_space<vmem>>, vector<1x512xf32>
    %5 = vector.broadcast %4 : vector<1x512xf32> to vector<256x512xf32>
    %6 = arith.addf %3, %5 : vector<256x512xf32>
    %cst_5 = arith.constant 0.000000e+00 : f32
    %7 = vector.broadcast %cst_5 : f32 to vector<256x512xf32>
    %8 = arith.maximumf %6, %7 : vector<256x512xf32>
    %c0_6 = arith.constant 0 : index
    %c0_7 = arith.constant 0 : index
    %9 = vector.load %arg4[%c0_6, %c0_7] : memref<2x512xbf16, #tpu.memory_space<vmem>>, vector<2x512xbf16>
    %10 = arith.truncf %8 : vector<256x512xf32> to vector<256x512xbf16>
    %cst_8 = arith.constant dense<0.000000e+00> : vector<2x256xf32>
    %11 = tpu.matmul %9, %10, %cst_8 {dimension_numbers = #tpu.dot_dimension_numbers<[1], [1], [0], [0], [0, 0, 1, 0], [], []>} : vector<2x512xbf16>, vector<256x512xbf16>, vector<2x256xf32> -> vector<2x256xf32>
    %c0_9 = arith.constant 0 : index
    %c0_10 = arith.constant 0 : index
    %12 = vector.load %arg5[%c0_9, %c0_10] : memref<2x1xf32, #tpu.memory_space<vmem>>, vector<2x1xf32>
    %13 = vector.broadcast %12 : vector<2x1xf32> to vector<2x256xf32>
    %14 = arith.addf %11, %13 : vector<2x256xf32>
    %c0_11 = arith.constant 0 : index
    %c0_12 = arith.constant 0 : index
    %15 = vector.load %arg6[%c0_11, %c0_12] : memref<2x256xf32, #tpu.memory_space<vmem>>, vector<2x256xf32>
    tpu.vector_store %arg6[%c0_11, %c0_12], %14 {strides = array<i32>} : memref<2x256xf32, #tpu.memory_space<vmem>>, vector<2x256xf32>,
    %16 = vector.extract_strided_slice %14 {offsets = [0, 0], sizes = [1, 256], strides = [1, 1]} : vector<2x256xf32> to vector<1x256xf32>
    %17 = vector.extract_strided_slice %14 {offsets = [1, 0], sizes = [1, 256], strides = [1, 1]} : vector<2x256xf32> to vector<1x256xf32>
    %18 = arith.subf %16, %17 : vector<1x256xf32>
    %19 = math.exp %18 : vector<1x256xf32>
    %cst_13 = arith.constant 1.000000e+00 : f32
    %20 = vector.broadcast %cst_13 : f32 to vector<1x256xf32>
    %21 = arith.addf %20, %19 : vector<1x256xf32>
    %22 = tpu.reciprocal %21 {approx = true} : vector<1x256xf32> -> vector<1x256xf32>
    %23 = tpu.iota {dimensions = array<i32: 0>} : vector<2x256xi32>
    %c0_i32 = arith.constant 0 : i32
    %24 = vector.broadcast %c0_i32 : i32 to vector<2x256xi32>
    %25 = arith.cmpi eq, %23, %24 : vector<2x256xi32>
    %cst_14 = arith.constant 1.000000e+00 : f32
    %26 = vector.broadcast %cst_14 : f32 to vector<1x256xf32>
    %27 = arith.subf %26, %22 : vector<1x256xf32>
    %28 = vector.shape_cast %27 : vector<1x256xf32> to vector<1x256xf32>
    %29 = vector.broadcast %28 : vector<1x256xf32> to vector<2x256xf32>
    %30 = vector.shape_cast %22 : vector<1x256xf32> to vector<1x256xf32>
    %31 = vector.broadcast %30 : vector<1x256xf32> to vector<2x256xf32>
    %32 = arith.select %25, %29, %31 : vector<2x256xi1>, vector<2x256xf32>
    %c0_15 = arith.constant 0 : index
    %c0_16 = arith.constant 0 : index
    %33 = vector.load %arg7[%c0_15, %c0_16] : memref<2x256xf32, #tpu.memory_space<vmem>>, vector<2x256xf32>
    tpu.vector_store %arg7[%c0_15, %c0_16], %32 {strides = array<i32>} : memref<2x256xf32, #tpu.memory_space<vmem>>, vector<2x256xf32>,
    return
  }
  func.func @transform_0(%arg0: i32) -> (i32, i32) {
    %c0_i32 = arith.constant 0 : i32
    %c0_i32_0 = arith.constant 0 : i32
    return %arg0, %c0_i32 : i32, i32
  }
  func.func @transform_1(%arg0: i32) -> (i32, i32) {
    %c0_i32 = arith.constant 0 : i32
    %c0_i32_0 = arith.constant 0 : i32
    %c0_i32_1 = arith.constant 0 : i32
    return %c0_i32, %c0_i32_0 : i32, i32
  }
  func.func @transform_2(%arg0: i32) -> (i32, i32) {
    %c0_i32 = arith.constant 0 : i32
    %c0_i32_0 = arith.constant 0 : i32
    %c0_i32_1 = arith.constant 0 : i32
    return %c0_i32, %c0_i32_0 : i32, i32
  }
  func.func @transform_3(%arg0: i32) -> (i32, i32) {
    %c0_i32 = arith.constant 0 : i32
    %c0_i32_0 = arith.constant 0 : i32
    %c0_i32_1 = arith.constant 0 : i32
    return %c0_i32, %c0_i32_0 : i32, i32
  }
  func.func @transform_4(%arg0: i32) -> (i32, i32) {
    %c0_i32 = arith.constant 0 : i32
    %c0_i32_0 = arith.constant 0 : i32
    %c0_i32_1 = arith.constant 0 : i32
    return %c0_i32, %c0_i32_0 : i32, i32
  }
  func.func @transform_5(%arg0: i32) -> (i32, i32) {
    %c0_i32 = arith.constant 0 : i32
    %c0_i32_0 = arith.constant 0 : i32
    return %c0_i32, %arg0 : i32, i32
  }
  func.func @transform_6(%arg0: i32) -> (i32, i32) {
    %c0_i32 = arith.constant 0 : i32
    %c0_i32_0 = arith.constant 0 : i32
    return %c0_i32, %arg0 : i32, i32
  }
}

</mosaic_0001>

<llo_original>
// kernel: tpu_custom_call.1
$region0: #{tpu_custom_call.1}
  #allocation0 [shape = 'u32[]', space=smem, size = 0x4, offset = 0x4, fixed_abs, tag = 'smem constant byte address 0x4 - core index']
  #allocation1 [shape = 'u32[144,128]{1,0:T(1,128)}', space=vmem, size = 0x12000, scoped, tag = 'internal scratch']
  %s0 = inlined_call_operand.hbm [shape: f32[300,1024], index: 0, kind: input, shape index: {}]
  %s1 = inlined_call_operand.hbm [shape: bf16[1024,512], index: 1, kind: input, shape index: {}]
  %s2 = inlined_call_operand.hbm [shape: f32[1,512], index: 2, kind: input, shape index: {}]
  %s3 = inlined_call_operand.hbm [shape: bf16[2,512], index: 3, kind: input, shape index: {}]
  %s4 = inlined_call_operand.vmem [shape: f32[2,1], index: 4, kind: input, shape index: {}]
  %s5 = inlined_call_operand.hbm [shape: f32[2,300], index: 5, kind: output, shape index: {0}]
  %s6 = inlined_call_operand.hbm [shape: f32[2,300], index: 6, kind: output, shape index: {1}]
  %7 = xla_tuple %s5, %s6
  %s8 = sld [smem:[#allocation0]]
  $region77: #{tpu_custom_call.1} parent=0
    _
  %s10 = ssub.s32 1, %s8
  %s11 = scalar_select 0, %s10, %s8
  $region1: #{tpu_custom_call.1} parent=0
    #allocation2 [shape = 'u8[2097152]{0}', space=vmem, size = 0x200000, scoped, tag = 'input window, operand 0']
    #allocation3 [shape = 's32[2]{0}', space=sflag, size = 0x8, scoped, tag = 'scoped memory for tpu_custom_call.1']
    #allocation4 [shape = 's32[2]{0}', space=sflag, size = 0x8, scoped, tag = 'scoped memory for tpu_custom_call.1']
    #allocation5 [shape = 'u8[1048576]{0}', space=vmem, size = 0x100000, scoped, tag = 'input window, operand 1, single buffered']
    #allocation6 [shape = 's32[1]{0}', space=sflag, size = 0x4, scoped, tag = 'scoped memory for tpu_custom_call.1']
    #allocation7 [shape = 'u8[2048]{0}', space=vmem, size = 0x800, scoped, tag = 'input window, operand 2, single buffered']
    #allocation8 [shape = 'u8[2048]{0}', space=vmem, size = 0x800, scoped, tag = 'input window, operand 3, single buffered']
    #allocation9 [shape = 's32[1]{0}', space=sflag, size = 0x4, scoped, tag = 'scoped memory for tpu_custom_call.1']
    #allocation10 [shape = 'u8[4096]{0}', space=vmem, size = 0x1000, scoped, tag = 'output window, operand 0']
    #allocation11 [shape = 'u8[4096]{0}', space=vmem, size = 0x1000, scoped, tag = 'output window, operand 1']
    #allocation12 [shape = 's32[2]{0}', space=sflag, size = 0x8, scoped, tag = 'scoped memory for tpu_custom_call.1']
    %12 = vsyncpa [#allocation3], 0
    %s13 = scalar_lea.sflag [#allocation3], 1
    %14 = vsyncpa %s13, 0
    %15 = vsyncpa [#allocation6], 0
    %16 = vsyncpa [#allocation9], 0
    %17 = vsyncpa [#allocation4], 0
    %s18 = scalar_lea.sflag [#allocation4], 1
    %19 = vsyncpa %s18, 0
    %20 = vsyncpa [#allocation12], 0
    %s21 = scalar_lea.sflag [#allocation12], 1
    %22 = vsyncpa %s21, 0
    loop: start=0, step=1, limit=4
    $region2: #{tpu_custom_call.1} parent=1 // loop_pre_header
      _
    $region3: #{tpu_custom_call.1} parent=1 // loop_header
      %s24 = sphi 0, %s28
      %p25 = scmp.ge.s32.totalorder %s24, 4
      %s34 = sphi 0, %s36
      %s37 = sphi 0, %s34
      %s38 = sphi 0, %s37
      %s54 = sphi 0, %s38
      %s58 = sphi 0, %s58
      %s60 = sphi 0, %s58
      %s61 = sphi 0, %s60
      %s75 = sphi 0, %s61
      %s79 = sphi 0, %s79
      %s81 = sphi 0, %s79
      %s82 = sphi 0, %s81
      %s96 = sphi 0, %s82
      %s100 = sphi 0, %s100
      %s102 = sphi 0, %s100
      %s103 = sphi 0, %s102
      %s117 = sphi 0, %s103
      %s121 = sphi 0, %s121
      %s123 = sphi 0, %s121
      %s124 = sphi 0, %s123
      %s138 = sphi 0, %s124
      %s144 = sphi 0, %s146
      %s147 = sphi 0, %s144
      %s148 = sphi 0, %s147
      %s164 = sphi 0, %s148
      %s170 = sphi 0, %s172
      %s173 = sphi 0, %s170
      %s174 = sphi 0, %s173
      %s190 = sphi 0, %s174
    $region4: #{tpu_custom_call.1} parent=1 // loop_header_branch
      %27 = sbr.rel (%p25) target = $region8
    $region5: #{tpu_custom_call.1} parent=1 // loop_body
      %s29 = ssub.s32 %s24, 1
      %s30 = ssub.s32 %s24, 2
      %s31 = sadd.s32 %s24, 1
      %s32 = ssub.s32 %s24, %s31
      %p33 = scmp.eq.s32.totalorder %s32, 0
      %s35 = sadd.s32 %s34, 1
      %s36 = scalar_select %p33, %s34, %s35
      %p39 = pneg %p33
      %p40 = scmp.eq.s32.totalorder %s24, 1
      %p41 = por %p39, %p40
      %p42 = scmp.ne.s32.totalorder %s34, %s37
      %p43 = scmp.eq.s32.totalorder %s24, 0
      %p44 = por %p42, %p43
      %p45 = scmp.ne.s32.totalorder %s34, %s37
      %p46 = scmp.eq.s32.totalorder %s29, 1
      %p47 = por %p45, %p46
      %p48 = scmp.ne.s32.totalorder %s37, %s38
      %p49 = scmp.eq.s32.totalorder %s29, 0
      %p50 = por %p48, %p49
      %p51 = scmp.ne.s32.totalorder %s37, %s38
      %p52 = scmp.eq.s32.totalorder %s30, 1
      %p53 = por %p51, %p52
      %p55 = scmp.ne.s32.totalorder %s38, %s54
      %p56 = scmp.eq.s32.totalorder %s30, 0
      %p57 = por %p55, %p56
      %s59 = sadd.s32 %s58, 1
      %p62 = scmp.eq.s32.totalorder %s24, 1
      %p63 = scmp.ne.s32.totalorder %s58, %s60
      %p64 = scmp.eq.s32.totalorder %s24, 0
      %p65 = por %p63, %p64
      %p66 = scmp.ne.s32.totalorder %s58, %s60
      %p67 = scmp.eq.s32.totalorder %s29, 1
      %p68 = por %p66, %p67
      %p69 = scmp.ne.s32.totalorder %s60, %s61
      %p70 = scmp.eq.s32.totalorder %s29, 0
      %p71 = por %p69, %p70
      %p72 = scmp.ne.s32.totalorder %s60, %s61
      %p73 = scmp.eq.s32.totalorder %s30, 1
      %p74 = por %p72, %p73
      %p76 = scmp.ne.s32.totalorder %s61, %s75
      %p77 = scmp.eq.s32.totalorder %s30, 0
      %p78 = por %p76, %p77
      %s80 = sadd.s32 %s79, 1
      %p83 = scmp.eq.s32.totalorder %s24, 1
      %p84 = scmp.ne.s32.totalorder %s79, %s81
      %p85 = scmp.eq.s32.totalorder %s24, 0
      %p86 = por %p84, %p85
      %p87 = scmp.ne.s32.totalorder %s79, %s81
      %p88 = scmp.eq.s32.totalorder %s29, 1
      %p89 = por %p87, %p88
      %p90 = scmp.ne.s32.totalorder %s81, %s82
      %p91 = scmp.eq.s32.totalorder %s29, 0
      %p92 = por %p90, %p91
      %p93 = scmp.ne.s32.totalorder %s81, %s82
      %p94 = scmp.eq.s32.totalorder %s30, 1
      %p95 = por %p93, %p94
      %p97 = scmp.ne.s32.totalorder %s82, %s96
      %p98 = scmp.eq.s32.totalorder %s30, 0
      %p99 = por %p97, %p98
      %s101 = sadd.s32 %s100, 1
      %p104 = scmp.eq.s32.totalorder %s24, 1
      %p105 = scmp.ne.s32.totalorder %s100, %s102
      %p106 = scmp.eq.s32.totalorder %s24, 0
      %p107 = por %p105, %p106
      %p108 = scmp.ne.s32.totalorder %s100, %s102
      %p109 = scmp.eq.s32.totalorder %s29, 1
      %p110 = por %p108, %p109
      %p111 = scmp.ne.s32.totalorder %s102, %s103
      %p112 = scmp.eq.s32.totalorder %s29, 0
      %p113 = por %p111, %p112
      %p114 = scmp.ne.s32.totalorder %s102, %s103
      %p115 = scmp.eq.s32.totalorder %s30, 1
      %p116 = por %p114, %p115
      %p118 = scmp.ne.s32.totalorder %s103, %s117
      %p119 = scmp.eq.s32.totalorder %s30, 0
      %p120 = por %p118, %p119
      %s122 = sadd.s32 %s121, 1
      %p125 = scmp.eq.s32.totalorder %s24, 1
      %p126 = scmp.ne.s32.totalorder %s121, %s123
      %p127 = scmp.eq.s32.totalorder %s24, 0
      %p128 = por %p126, %p127
      %p129 = scmp.ne.s32.totalorder %s121, %s123
      %p130 = scmp.eq.s32.totalorder %s29, 1
      %p131 = por %p129, %p130
      %p132 = scmp.ne.s32.totalorder %s123, %s124
      %p133 = scmp.eq.s32.totalorder %s29, 0
      %p134 = por %p132, %p133
      %p135 = scmp.ne.s32.totalorder %s123, %s124
      %p136 = scmp.eq.s32.totalorder %s30, 1
      %p137 = por %p135, %p136
      %p139 = scmp.ne.s32.totalorder %s124, %s138
      %p140 = scmp.eq.s32.totalorder %s30, 0
      %p141 = por %p139, %p140
      %s142 = ssub.s32 %s24, %s31
      %p143 = scmp.eq.s32.totalorder %s142, 0
      %s145 = sadd.s32 %s144, 1
      %s146 = scalar_select %p143, %s144, %s145
      %p149 = pneg %p143
      %p150 = scmp.eq.s32.totalorder %s24, 1
      %p151 = por %p149, %p150
      %p152 = scmp.ne.s32.totalorder %s144, %s147
      %p153 = scmp.eq.s32.totalorder %s24, 0
      %p154 = por %p152, %p153
      %p155 = scmp.ne.s32.totalorder %s144, %s147
      %p156 = scmp.eq.s32.totalorder %s29, 1
      %p157 = por %p155, %p156
      %p158 = scmp.ne.s32.totalorder %s147, %s148
      %p159 = scmp.eq.s32.totalorder %s29, 0
      %p160 = por %p158, %p159
      %p161 = scmp.ne.s32.totalorder %s147, %s148
      %p162 = scmp.eq.s32.totalorder %s30, 1
      %p163 = por %p161, %p162
      %p165 = scmp.ne.s32.totalorder %s148, %s164
      %p166 = scmp.eq.s32.totalorder %s30, 0
      %p167 = por %p165, %p166
      %s168 = ssub.s32 %s24, %s31
      %p169 = scmp.eq.s32.totalorder %s168, 0
      %s171 = sadd.s32 %s170, 1
      %s172 = scalar_select %p169, %s170, %s171
      %p175 = pneg %p169
      %p176 = scmp.eq.s32.totalorder %s24, 1
      %p177 = por %p175, %p176
      %p178 = scmp.ne.s32.totalorder %s170, %s173
      %p179 = scmp.eq.s32.totalorder %s24, 0
      %p180 = por %p178, %p179
      %p181 = scmp.ne.s32.totalorder %s170, %s173
      %p182 = scmp.eq.s32.totalorder %s29, 1
      %p183 = por %p181, %p182
      %p184 = scmp.ne.s32.totalorder %s173, %s174
      %p185 = scmp.eq.s32.totalorder %s29, 0
      %p186 = por %p184, %p185
      %p187 = scmp.ne.s32.totalorder %s173, %s174
      %p188 = scmp.eq.s32.totalorder %s30, 1
      %p189 = por %p187, %p188
      %p191 = scmp.ne.s32.totalorder %s174, %s190
      %p192 = scmp.eq.s32.totalorder %s30, 0
      %p193 = por %p191, %p192
      %p194 = scmp.le.s32.totalorder 1, %s24
      %p195 = scmp.lt.s32.totalorder %s24, 3
      %p196 = pnand %p194, %p195
      %p197 = pneg %p196
      // Predicated region
      $region9: #{tpu_custom_call.1} parent=5 // pred_check
        _
      $region10: #{tpu_custom_call.1} parent=5 // pred_check_branch
        %199 = sbr.rel (%p196) target = $region12
      $region11: #{tpu_custom_call.1} parent=5 // pred_region
        %s200 = ssub.s32 %s24, 1
        // Predicated region
        $region13: #{tpu_custom_call.1} parent=11 // pred_check
          %p201 = pneg %p71
        $region14: #{tpu_custom_call.1} parent=11 // pred_check_branch
          %203 = sbr.rel (%p201) target = $region16
        $region15: #{tpu_custom_call.1} parent=11 // pred_region
          %s205 = ssub.s32 32768, 32768
          %206 = vsyncadd [#allocation6], %s205
          %s207 = sshll.u32 [#allocation5], 4
          %s208 = int_to_ptr.vmem [resolvable:$true] %s207
          %213 = dma.hbm_to_vmem [thread:$0]  %s1, 32768, %s208, [#allocation6], 256, 256, 16
        $region16: #{tpu_custom_call.1} parent=11 // pred_fallthru
          _
        // Predicated region
        $region17: #{tpu_custom_call.1} parent=11 // pred_check
          %p214 = pneg %p92
        $region18: #{tpu_custom_call.1} parent=11 // pred_check_branch
          %216 = sbr.rel (%p214) target = $region20
        $region19: #{tpu_custom_call.1} parent=11 // pred_region
          %s218 = ssub.s32 64, 64
          %219 = vsyncadd [#allocation6], %s218
          %s221 = sshll.u32 [#allocation7], 4
          %s222 = int_to_ptr.vmem [resolvable:$true] %s221
          %224 = dma.hbm_to_vmem [thread:$0]  %s2, 64, %s222, [#allocation6]
        $region20: #{tpu_custom_call.1} parent=11 // pred_fallthru
          _
        // Predicated region
        $region21: #{tpu_custom_call.1} parent=11 // pred_check
          %p225 = pneg %p113
        $region22: #{tpu_custom_call.1} parent=11 // pred_check_branch
          %227 = sbr.rel (%p225) target = $region24
        $region23: #{tpu_custom_call.1} parent=11 // pred_region
          %s229 = ssub.s32 64, 64
          %230 = vsyncadd [#allocation9], %s229
          %s232 = sshll.u32 [#allocation8], 4
          %s233 = int_to_ptr.vmem [resolvable:$true] %s232
          %235 = dma.hbm_to_vmem [thread:$0]  %s3, 64, %s233, [#allocation9]
        $region24: #{tpu_custom_call.1} parent=11 // pred_fallthru
          _
        // Predicated region
        $region25: #{tpu_custom_call.1} parent=11 // pred_check
          %p236 = pneg %p134
        $region26: #{tpu_custom_call.1} parent=11 // pred_check_branch
          %238 = sbr.rel (%p236) target = $region28
        $region27: #{tpu_custom_call.1} parent=11 // pred_region
          _
        $region28: #{tpu_custom_call.1} parent=11 // pred_fallthru
          _
      $region12: #{tpu_custom_call.1} parent=5 // pred_fallthru
        _
      %p239 = scmp.lt.s32.totalorder %s24, 2
      // Predicated region
      $region29: #{tpu_custom_call.1} parent=5 // pred_check
        %p240 = pneg %p239
      $region30: #{tpu_custom_call.1} parent=5 // pred_check_branch
        %242 = sbr.rel (%p240) target = $region32
      $region31: #{tpu_custom_call.1} parent=5 // pred_region
        // Predicated region
        $region33: #{tpu_custom_call.1} parent=31 // pred_check
          %p243 = pneg %p44
        $region34: #{tpu_custom_call.1} parent=31 // pred_check_branch
          %245 = sbr.rel (%p243) target = $region36
        $region35: #{tpu_custom_call.1} parent=31 // pred_region
          %s246 = sand.u32 %s34, 1
          %s247 = scalar_lea.sflag [#allocation3], %s246
          %s248 = sand.u32 %s34, 1
          %s249 = smul.addr %s248, 2048
          %s250 = scalar_lea.vmem [#allocation2], %s249
          %s251 = smul.u32 32, %s24
          %s252 = ssub.s32 38, %s251
          %p253 = scmp.lt.s32.totalorder %s252, 32
          %s254 = scalar_select %p253, %s252, 32
          %s255 = smul.u32 128, %s254
          %s256 = smul.u32 %s255, 8
          %s258 = ssub.s32 32768, %s256
          %259 = vsyncadd %s247, %s258
          %p260 = scmp.ne.s32.totalorder 0, %s256
          %s261 = smul.addr %s251, 8
          %s262 = smul.addr %s261, 128
          %s263 = scalar_lea.hbm %s0, %s262
          %s264 = smul.u32 64, %s254
          %s265 = sshll.u32 %s250, 4
          %s266 = int_to_ptr.vmem [resolvable:$true] %s265
          %s267 = sshll.u32 %s264, 4
          %271 = dma.hbm_to_vmem [thread:$0]  (%p260), %s263, %s267, %s266, %s247, 1024, 1024, 64
        $region36: #{tpu_custom_call.1} parent=31 // pred_fallthru
          _
      $region32: #{tpu_custom_call.1} parent=5 // pred_fallthru
        _
      %p272 = scmp.le.s32.totalorder 1, %s24
      %p273 = scmp.lt.s32.totalorder %s24, 3
      %p274 = pnand %p272, %p273
      %p275 = pneg %p274
      // Predicated region
      $region37: #{tpu_custom_call.1} parent=5 // pred_check
        _
      $region38: #{tpu_custom_call.1} parent=5 // pred_check_branch
        %277 = sbr.rel (%p274) target = $region40
      $region39: #{tpu_custom_call.1} parent=5 // pred_region
        %s278 = ssub.s32 %s24, 1
        %s279 = sand.u32 %s37, 1
        %s280 = scalar_lea.sflag [#allocation3], %s279
        %s281 = sand.u32 %s37, 1
        %s282 = smul.addr %s281, 2048
        %s283 = scalar_lea.vmem [#allocation2], %s282
        // Predicated region
        $region41: #{tpu_custom_call.1} parent=39 // pred_check
          %p284 = pneg %p50
        $region42: #{tpu_custom_call.1} parent=39 // pred_check_branch
          %286 = sbr.rel (%p284) target = $region44
        $region43: #{tpu_custom_call.1} parent=39 // pred_region
          %287 = dma.done %s280, 32768
        $region44: #{tpu_custom_call.1} parent=39 // pred_fallthru
          _
        // Predicated region
        $region45: #{tpu_custom_call.1} parent=39 // pred_check
          %p288 = pneg %p71
        $region46: #{tpu_custom_call.1} parent=39 // pred_check_branch
          %290 = sbr.rel (%p288) target = $region48
        $region47: #{tpu_custom_call.1} parent=39 // pred_region
          %291 = dma.done [#allocation6], 32768
        $region48: #{tpu_custom_call.1} parent=39 // pred_fallthru
          _
        // Predicated region
        $region49: #{tpu_custom_call.1} parent=39 // pred_check
          %p292 = pneg %p92
        $region50: #{tpu_custom_call.1} parent=39 // pred_check_branch
          %294 = sbr.rel (%p292) target = $region52
        $region51: #{tpu_custom_call.1} parent=39 // pred_region
          %295 = dma.done [#allocation6], 64
        $region52: #{tpu_custom_call.1} parent=39 // pred_fallthru
          _
        // Predicated region
        $region53: #{tpu_custom_call.1} parent=39 // pred_check
          %p296 = pneg %p113
        $region54: #{tpu_custom_call.1} parent=39 // pred_check_branch
          %298 = sbr.rel (%p296) target = $region56
        $region55: #{tpu_custom_call.1} parent=39 // pred_region
          %299 = dma.done [#allocation9], 64
        $region56: #{tpu_custom_call.1} parent=39 // pred_fallthru
          _
        %s300 = sand.u32 %s37, 1
        %s301 = scalar_lea.sflag [#allocation3], %s300
        %s302 = sand.u32 %s37, 1
        %s303 = smul.addr %s302, 2048
        %s304 = scalar_lea.vmem [#allocation2], %s303
        %p305 = pneg %p50
        %p306 = pneg %p47
        %p307 = pneg %p71
        %p308 = pneg %p68
        %p309 = pneg %p92
        %p310 = pneg %p89
        %p311 = pneg %p113
        %p312 = pneg %p110
        %p313 = pneg %p134
        %p314 = pneg %p131
        %p315 = pneg %p160
        %p316 = pneg %p157
        %s317 = sand.u32 %s147, 1
        %s318 = scalar_lea.sflag [#allocation4], %s317
        %s319 = sand.u32 %s147, 1
        %s320 = smul.addr %s319, 4
        %s321 = scalar_lea.vmem [#allocation10], %s320
        %p322 = pneg %p186
        %p323 = pneg %p183
        %s324 = sand.u32 %s173, 1
        %s325 = scalar_lea.sflag [#allocation12], %s324
        %s326 = sand.u32 %s173, 1
        %s327 = smul.addr %s326, 4
        %s328 = scalar_lea.vmem [#allocation11], %s327
        %s329 = smul.u32 32, %s29
        %s330 = ssub.s32 38, %s329
        %p331 = scmp.lt.s32.totalorder %s330, 32
        %s332 = scalar_select %p331, %s330, 32
        %s333 = smul.u32 128, %s332
        %s334 = smul.u32 %s333, 8
        %s335 = smul.u32 2, %s29
        %s336 = ssub.s32 3, %s335
        %p337 = scmp.lt.s32.totalorder %s336, 2
        %s338 = scalar_select %p337, %s336, 2
        %s339 = smul.u32 32, %s338
        %s340 = smul.u32 2, %s29
        %s341 = ssub.s32 3, %s340
        %p342 = scmp.lt.s32.totalorder %s341, 2
        %s343 = scalar_select %p342, %s341, 2
        %s344 = smul.u32 32, %s343
        %v345 = vld [vmem:[%s283] sm:$0xff]
        %v346 = vld [vmem:[%s283 + $0x8] sm:$0xff]
        %v347 = vld [vmem:[%s283 + $0x10] sm:$0xff]
        %v348 = vld [vmem:[%s283 + $0x18] sm:$0xff]
        %v349 = vld [vmem:[%s283 + $0x20] sm:$0xff]
        %v350 = vld [vmem:[%s283 + $0x28] sm:$0xff]
        %v351 = vld [vmem:[%s283 + $0x30] sm:$0xff]
        %v352 = vld [vmem:[%s283 + $0x38] sm:$0xff]
        %v353 = vld [vmem:[%s283 + $0x40] sm:$0xff]
        %v354 = vld [vmem:[%s283 + $0x48] sm:$0xff]
        %v355 = vld [vmem:[%s283 + $0x50] sm:$0xff]
        %v356 = vld [vmem:[%s283 + $0x58] sm:$0xff]
        %v357 = vld [vmem:[%s283 + $0x60] sm:$0xff]
        %v358 = vld [vmem:[%s283 + $0x68] sm:$0xff]
        %v359 = vld [vmem:[%s283 + $0x70] sm:$0xff]
        %v360 = vld [vmem:[%s283 + $0x78] sm:$0xff]
        %v361 = vld [vmem:[%s283 + $0x80] sm:$0xff]
        %v362 = vld [vmem:[%s283 + $0x88] sm:$0xff]
        %v363 = vld [vmem:[%s283 + $0x90] sm:$0xff]
        %v364 = vld [vmem:[%s283 + $0x98] sm:$0xff]
        %v365 = vld [vmem:[%s283 + $0xa0] sm:$0xff]
        %v366 = vld [vmem:[%s283 + $0xa8] sm:$0xff]
        %v367 = vld [vmem:[%s283 + $0xb0] sm:$0xff]
        %v368 = vld [vmem:[%s283 + $0xb8] sm:$0xff]
        %v369 = vld [vmem:[%s283 + $0xc0] sm:$0xff]
        %v370 = vld [vmem:[%s283 + $0xc8] sm:$0xff]
        %v371 = vld [vmem:[%s283 + $0xd0] sm:$0xff]
        %v372 = vld [vmem:[%s283 + $0xd8] sm:$0xff]
        %v373 = vld [vmem:[%s283 + $0xe0] sm:$0xff]
        %v374 = vld [vmem:[%s283 + $0xe8] sm:$0xff]
        %v375 = vld [vmem:[%s283 + $0xf0] sm:$0xff]
        %v376 = vld [vmem:[%s283 + $0xf8] sm:$0xff]
        %v377 = vld [vmem:[%s283 + $0x100] sm:$0xff]
        %v378 = vld [vmem:[%s283 + $0x108] sm:$0xff]
        %v379 = vld [vmem:[%s283 + $0x110] sm:$0xff]
        %v380 = vld [vmem:[%s283 + $0x118] sm:$0xff]
        %v381 = vld [vmem:[%s283 + $0x120] sm:$0xff]
        %v382 = vld [vmem:[%s283 + $0x128] sm:$0xff]
        %v383 = vld [vmem:[%s283 + $0x130] sm:$0xff]
        %v384 = vld [vmem:[%s283 + $0x138] sm:$0xff]
        %v385 = vld [vmem:[%s283 + $0x140] sm:$0xff]
        %v386 = vld [vmem:[%s283 + $0x148] sm:$0xff]
        %v387 = vld [vmem:[%s283 + $0x150] sm:$0xff]
        %v388 = vld [vmem:[%s283 + $0x158] sm:$0xff]
        %v389 = vld [vmem:[%s283 + $0x160] sm:$0xff]
        %v390 = vld [vmem:[%s283 + $0x168] sm:$0xff]
        %v391 = vld [vmem:[%s283 + $0x170] sm:$0xff]
        %v392 = vld [vmem:[%s283 + $0x178] sm:$0xff]
        %v393 = vld [vmem:[%s283 + $0x180] sm:$0xff]
        %v394 = vld [vmem:[%s283 + $0x188] sm:$0xff]
        %v395 = vld [vmem:[%s283 + $0x190] sm:$0xff]
        %v396 = vld [vmem:[%s283 + $0x198] sm:$0xff]
        %v397 = vld [vmem:[%s283 + $0x1a0] sm:$0xff]
        %v398 = vld [vmem:[%s283 + $0x1a8] sm:$0xff]
        %v399 = vld [vmem:[%s283 + $0x1b0] sm:$0xff]
        %v400 = vld [vmem:[%s283 + $0x1b8] sm:$0xff]
        %v401 = vld [vmem:[%s283 + $0x1c0] sm:$0xff]
        %v402 = vld [vmem:[%s283 + $0x1c8] sm:$0xff]
        %v403 = vld [vmem:[%s283 + $0x1d0] sm:$0xff]
        %v404 = vld [vmem:[%s283 + $0x1d8] sm:$0xff]
        %v405 = vld [vmem:[%s283 + $0x1e0] sm:$0xff]
        %v406 = vld [vmem:[%s283 + $0x1e8] sm:$0xff]
        %v407 = vld [vmem:[%s283 + $0x1f0] sm:$0xff]
        %v408 = vld [vmem:[%s283 + $0x1f8] sm:$0xff]
        %v409 = vld [vmem:[%s283 + $0x200] sm:$0xff]
        %v410 = vld [vmem:[%s283 + $0x208] sm:$0xff]
        %v411 = vld [vmem:[%s283 + $0x210] sm:$0xff]
        %v412 = vld [vmem:[%s283 + $0x218] sm:$0xff]
        %v413 = vld [vmem:[%s283 + $0x220] sm:$0xff]
        %v414 = vld [vmem:[%s283 + $0x228] sm:$0xff]
        %v415 = vld [vmem:[%s283 + $0x230] sm:$0xff]
        %v416 = vld [vmem:[%s283 + $0x238] sm:$0xff]
        %v417 = vld [vmem:[%s283 + $0x240] sm:$0xff]
        %v418 = vld [vmem:[%s283 + $0x248] sm:$0xff]
        %v419 = vld [vmem:[%s283 + $0x250] sm:$0xff]
        %v420 = vld [vmem:[%s283 + $0x258] sm:$0xff]
        %v421 = vld [vmem:[%s283 + $0x260] sm:$0xff]
        %v422 = vld [vmem:[%s283 + $0x268] sm:$0xff]
        %v423 = vld [vmem:[%s283 + $0x270] sm:$0xff]
        %v424 = vld [vmem:[%s283 + $0x278] sm:$0xff]
        %v425 = vld [vmem:[%s283 + $0x280] sm:$0xff]
        %v426 = vld [vmem:[%s283 + $0x288] sm:$0xff]
        %v427 = vld [vmem:[%s283 + $0x290] sm:$0xff]
        %v428 = vld [vmem:[%s283 + $0x298] sm:$0xff]
        %v429 = vld [vmem:[%s283 + $0x2a0] sm:$0xff]
        %v430 = vld [vmem:[%s283 + $0x2a8] sm:$0xff]
        %v431 = vld [vmem:[%s283 + $0x2b0] sm:$0xff]
        %v432 = vld [vmem:[%s283 + $0x2b8] sm:$0xff]
        %v433 = vld [vmem:[%s283 + $0x2c0] sm:$0xff]
        %v434 = vld [vmem:[%s283 + $0x2c8] sm:$0xff]
        %v435 = vld [vmem:[%s283 + $0x2d0] sm:$0xff]
        %v436 = vld [vmem:[%s283 + $0x2d8] sm:$0xff]
        %v437 = vld [vmem:[%s283 + $0x2e0] sm:$0xff]
        %v438 = vld [vmem:[%s283 + $0x2e8] sm:$0xff]
        %v439 = vld [vmem:[%s283 + $0x2f0] sm:$0xff]
        %v440 = vld [vmem:[%s283 + $0x2f8] sm:$0xff]
        %v441 = vld [vmem:[%s283 + $0x300] sm:$0xff]
        %v442 = vld [vmem:[%s283 + $0x308] sm:$0xff]
        %v443 = vld [vmem:[%s283 + $0x310] sm:$0xff]
        %v444 = vld [vmem:[%s283 + $0x318] sm:$0xff]
        %v445 = vld [vmem:[%s283 + $0x320] sm:$0xff]
        %v446 = vld [vmem:[%s283 + $0x328] sm:$0xff]
        %v447 = vld [vmem:[%s283 + $0x330] sm:$0xff]
        %v448 = vld [vmem:[%s283 + $0x338] sm:$0xff]
        %v449 = vld [vmem:[%s283 + $0x340] sm:$0xff]
        %v450 = vld [vmem:[%s283 + $0x348] sm:$0xff]
        %v451 = vld [vmem:[%s283 + $0x350] sm:$0xff]
        %v452 = vld [vmem:[%s283 + $0x358] sm:$0xff]
        %v453 = vld [vmem:[%s283 + $0x360] sm:$0xff]
        %v454 = vld [vmem:[%s283 + $0x368] sm:$0xff]
        %v455 = vld [vmem:[%s283 + $0x370] sm:$0xff]
        %v456 = vld [vmem:[%s283 + $0x378] sm:$0xff]
        %v457 = vld [vmem:[%s283 + $0x380] sm:$0xff]
        %v458 = vld [vmem:[%s283 + $0x388] sm:$0xff]
        %v459 = vld [vmem:[%s283 + $0x390] sm:$0xff]
        %v460 = vld [vmem:[%s283 + $0x398] sm:$0xff]
        %v461 = vld [vmem:[%s283 + $0x3a0] sm:$0xff]
        %v462 = vld [vmem:[%s283 + $0x3a8] sm:$0xff]
        %v463 = vld [vmem:[%s283 + $0x3b0] sm:$0xff]
        %v464 = vld [vmem:[%s283 + $0x3b8] sm:$0xff]
        %v465 = vld [vmem:[%s283 + $0x3c0] sm:$0xff]
        %v466 = vld [vmem:[%s283 + $0x3c8] sm:$0xff]
        %v467 = vld [vmem:[%s283 + $0x3d0] sm:$0xff]
        %v468 = vld [vmem:[%s283 + $0x3d8] sm:$0xff]
        %v469 = vld [vmem:[%s283 + $0x3e0] sm:$0xff]
        %v470 = vld [vmem:[%s283 + $0x3e8] sm:$0xff]
        %v471 = vld [vmem:[%s283 + $0x3f0] sm:$0xff]
        %v472 = vld [vmem:[%s283 + $0x3f8] sm:$0xff]
        %v473 = vld [vmem:[%s283 + $0x400] sm:$0xff]
        %v474 = vld [vmem:[%s283 + $0x408] sm:$0xff]
        %v475 = vld [vmem:[%s283 + $0x410] sm:$0xff]
        %v476 = vld [vmem:[%s283 + $0x418] sm:$0xff]
        %v477 = vld [vmem:[%s283 + $0x420] sm:$0xff]
        %v478 = vld [vmem:[%s283 + $0x428] sm:$0xff]
        %v479 = vld [vmem:[%s283 + $0x430] sm:$0xff]
        %v480 = vld [vmem:[%s283 + $0x438] sm:$0xff]
        %v481 = vld [vmem:[%s283 + $0x440] sm:$0xff]
        %v482 = vld [vmem:[%s283 + $0x448] sm:$0xff]
        %v483 = vld [vmem:[%s283 + $0x450] sm:$0xff]
        %v484 = vld [vmem:[%s283 + $0x458] sm:$0xff]
        %v485 = vld [vmem:[%s283 + $0x460] sm:$0xff]
        %v486 = vld [vmem:[%s283 + $0x468] sm:$0xff]
        %v487 = vld [vmem:[%s283 + $0x470] sm:$0xff]
        %v488 = vld [vmem:[%s283 + $0x478] sm:$0xff]
        %v489 = vld [vmem:[%s283 + $0x480] sm:$0xff]
        %v490 = vld [vmem:[%s283 + $0x488] sm:$0xff]
        %v491 = vld [vmem:[%s283 + $0x490] sm:$0xff]
        %v492 = vld [vmem:[%s283 + $0x498] sm:$0xff]
        %v493 = vld [vmem:[%s283 + $0x4a0] sm:$0xff]
        %v494 = vld [vmem:[%s283 + $0x4a8] sm:$0xff]
        %v495 = vld [vmem:[%s283 + $0x4b0] sm:$0xff]
        %v496 = vld [vmem:[%s283 + $0x4b8] sm:$0xff]
        %v497 = vld [vmem:[%s283 + $0x4c0] sm:$0xff]
        %v498 = vld [vmem:[%s283 + $0x4c8] sm:$0xff]
        %v499 = vld [vmem:[%s283 + $0x4d0] sm:$0xff]
        %v500 = vld [vmem:[%s283 + $0x4d8] sm:$0xff]
        %v501 = vld [vmem:[%s283 + $0x4e0] sm:$0xff]
        %v502 = vld [vmem:[%s283 + $0x4e8] sm:$0xff]
        %v503 = vld [vmem:[%s283 + $0x4f0] sm:$0xff]
        %v504 = vld [vmem:[%s283 + $0x4f8] sm:$0xff]
        %v505 = vld [vmem:[%s283 + $0x500] sm:$0xff]
        %v506 = vld [vmem:[%s283 + $0x508] sm:$0xff]
        %v507 = vld [vmem:[%s283 + $0x510] sm:$0xff]
        %v508 = vld [vmem:[%s283 + $0x518] sm:$0xff]
        %v509 = vld [vmem:[%s283 + $0x520] sm:$0xff]
        %v510 = vld [vmem:[%s283 + $0x528] sm:$0xff]
        %v511 = vld [vmem:[%s283 + $0x530] sm:$0xff]
        %v512 = vld [vmem:[%s283 + $0x538] sm:$0xff]
        %v513 = vld [vmem:[%s283 + $0x540] sm:$0xff]
        %v514 = vld [vmem:[%s283 + $0x548] sm:$0xff]
        %v515 = vld [vmem:[%s283 + $0x550] sm:$0xff]
        %v516 = vld [vmem:[%s283 + $0x558] sm:$0xff]
        %v517 = vld [vmem:[%s283 + $0x560] sm:$0xff]
        %v518 = vld [vmem:[%s283 + $0x568] sm:$0xff]
        %v519 = vld [vmem:[%s283 + $0x570] sm:$0xff]
        %v520 = vld [vmem:[%s283 + $0x578] sm:$0xff]
        %v521 = vld [vmem:[%s283 + $0x580] sm:$0xff]
        %v522 = vld [vmem:[%s283 + $0x588] sm:$0xff]
        %v523 = vld [vmem:[%s283 + $0x590] sm:$0xff]
        %v524 = vld [vmem:[%s283 + $0x598] sm:$0xff]
        %v525 = vld [vmem:[%s283 + $0x5a0] sm:$0xff]
        %v526 = vld [vmem:[%s283 + $0x5a8] sm:$0xff]
        %v527 = vld [vmem:[%s283 + $0x5b0] sm:$0xff]
        %v528 = vld [vmem:[%s283 + $0x5b8] sm:$0xff]
        %v529 = vld [vmem:[%s283 + $0x5c0] sm:$0xff]
        %v530 = vld [vmem:[%s283 + $0x5c8] sm:$0xff]
        %v531 = vld [vmem:[%s283 + $0x5d0] sm:$0xff]
        %v532 = vld [vmem:[%s283 + $0x5d8] sm:$0xff]
        %v533 = vld [vmem:[%s283 + $0x5e0] sm:$0xff]
        %v534 = vld [vmem:[%s283 + $0x5e8] sm:$0xff]
        %v535 = vld [vmem:[%s283 + $0x5f0] sm:$0xff]
        %v536 = vld [vmem:[%s283 + $0x5f8] sm:$0xff]
        %v537 = vld [vmem:[%s283 + $0x600] sm:$0xff]
        %v538 = vld [vmem:[%s283 + $0x608] sm:$0xff]
        %v539 = vld [vmem:[%s283 + $0x610] sm:$0xff]
        %v540 = vld [vmem:[%s283 + $0x618] sm:$0xff]
        %v541 = vld [vmem:[%s283 + $0x620] sm:$0xff]
        %v542 = vld [vmem:[%s283 + $0x628] sm:$0xff]
        %v543 = vld [vmem:[%s283 + $0x630] sm:$0xff]
        %v544 = vld [vmem:[%s283 + $0x638] sm:$0xff]
        %v545 = vld [vmem:[%s283 + $0x640] sm:$0xff]
        %v546 = vld [vmem:[%s283 + $0x648] sm:$0xff]
        %v547 = vld [vmem:[%s283 + $0x650] sm:$0xff]
        %v548 = vld [vmem:[%s283 + $0x658] sm:$0xff]
        %v549 = vld [vmem:[%s283 + $0x660] sm:$0xff]
        %v550 = vld [vmem:[%s283 + $0x668] sm:$0xff]
        %v551 = vld [vmem:[%s283 + $0x670] sm:$0xff]
        %v552 = vld [vmem:[%s283 + $0x678] sm:$0xff]
        %v553 = vld [vmem:[%s283 + $0x680] sm:$0xff]
        %v554 = vld [vmem:[%s283 + $0x688] sm:$0xff]
        %v555 = vld [vmem:[%s283 + $0x690] sm:$0xff]
        %v556 = vld [vmem:[%s283 + $0x698] sm:$0xff]
        %v557 = vld [vmem:[%s283 + $0x6a0] sm:$0xff]
        %v558 = vld [vmem:[%s283 + $0x6a8] sm:$0xff]
        %v559 = vld [vmem:[%s283 + $0x6b0] sm:$0xff]
        %v560 = vld [vmem:[%s283 + $0x6b8] sm:$0xff]
        %v561 = vld [vmem:[%s283 + $0x6c0] sm:$0xff]
        %v562 = vld [vmem:[%s283 + $0x6c8] sm:$0xff]
        %v563 = vld [vmem:[%s283 + $0x6d0] sm:$0xff]
        %v564 = vld [vmem:[%s283 + $0x6d8] sm:$0xff]
        %v565 = vld [vmem:[%s283 + $0x6e0] sm:$0xff]
        %v566 = vld [vmem:[%s283 + $0x6e8] sm:$0xff]
        %v567 = vld [vmem:[%s283 + $0x6f0] sm:$0xff]
        %v568 = vld [vmem:[%s283 + $0x6f8] sm:$0xff]
        %v569 = vld [vmem:[%s283 + $0x700] sm:$0xff]
        %v570 = vld [vmem:[%s283 + $0x708] sm:$0xff]
        %v571 = vld [vmem:[%s283 + $0x710] sm:$0xff]
        %v572 = vld [vmem:[%s283 + $0x718] sm:$0xff]
        %v573 = vld [vmem:[%s283 + $0x720] sm:$0xff]
        %v574 = vld [vmem:[%s283 + $0x728] sm:$0xff]
        %v575 = vld [vmem:[%s283 + $0x730] sm:$0xff]
        %v576 = vld [vmem:[%s283 + $0x738] sm:$0xff]
        %v577 = vld [vmem:[%s283 + $0x740] sm:$0xff]
        %v578 = vld [vmem:[%s283 + $0x748] sm:$0xff]
        %v579 = vld [vmem:[%s283 + $0x750] sm:$0xff]
        %v580 = vld [vmem:[%s283 + $0x758] sm:$0xff]
        %v581 = vld [vmem:[%s283 + $0x760] sm:$0xff]
        %v582 = vld [vmem:[%s283 + $0x768] sm:$0xff]
        %v583 = vld [vmem:[%s283 + $0x770] sm:$0xff]
        %v584 = vld [vmem:[%s283 + $0x778] sm:$0xff]
        %v585 = vld [vmem:[%s283 + $0x780] sm:$0xff]
        %v586 = vld [vmem:[%s283 + $0x788] sm:$0xff]
        %v587 = vld [vmem:[%s283 + $0x790] sm:$0xff]
        %v588 = vld [vmem:[%s283 + $0x798] sm:$0xff]
        %v589 = vld [vmem:[%s283 + $0x7a0] sm:$0xff]
        %v590 = vld [vmem:[%s283 + $0x7a8] sm:$0xff]
        %v591 = vld [vmem:[%s283 + $0x7b0] sm:$0xff]
        %v592 = vld [vmem:[%s283 + $0x7b8] sm:$0xff]
        %v593 = vld [vmem:[%s283 + $0x7c0] sm:$0xff]
        %v594 = vld [vmem:[%s283 + $0x7c8] sm:$0xff]
        %v595 = vld [vmem:[%s283 + $0x7d0] sm:$0xff]
        %v596 = vld [vmem:[%s283 + $0x7d8] sm:$0xff]
        %v597 = vld [vmem:[%s283 + $0x7e0] sm:$0xff]
        %v598 = vld [vmem:[%s283 + $0x7e8] sm:$0xff]
        %v599 = vld [vmem:[%s283 + $0x7f0] sm:$0xff]
        %v600 = vld [vmem:[%s283 + $0x7f8] sm:$0xff]
        %v601 = vpack.c.bf16 %v353, %v345
        %v602 = vpack.c.bf16 %v354, %v346
        %v603 = vpack.c.bf16 %v355, %v347
        %v604 = vpack.c.bf16 %v356, %v348
        %v605 = vpack.c.bf16 %v357, %v349
        %v606 = vpack.c.bf16 %v358, %v350
        %v607 = vpack.c.bf16 %v359, %v351
        %v608 = vpack.c.bf16 %v360, %v352
        %v609 = vpack.c.bf16 %v369, %v361
        %v610 = vpack.c.bf16 %v370, %v362
        %v611 = vpack.c.bf16 %v371, %v363
        %v612 = vpack.c.bf16 %v372, %v364
        %v613 = vpack.c.bf16 %v373, %v365
        %v614 = vpack.c.bf16 %v374, %v366
        %v615 = vpack.c.bf16 %v375, %v367
        %v616 = vpack.c.bf16 %v376, %v368
        %v617 = vpack.c.bf16 %v385, %v377
        %v618 = vpack.c.bf16 %v386, %v378
        %v619 = vpack.c.bf16 %v387, %v379
        %v620 = vpack.c.bf16 %v388, %v380
        %v621 = vpack.c.bf16 %v389, %v381
        %v622 = vpack.c.bf16 %v390, %v382
        %v623 = vpack.c.bf16 %v391, %v383
        %v624 = vpack.c.bf16 %v392, %v384
        %v625 = vpack.c.bf16 %v401, %v393
        %v626 = vpack.c.bf16 %v402, %v394
        %v627 = vpack.c.bf16 %v403, %v395
        %v628 = vpack.c.bf16 %v404, %v396
        %v629 = vpack.c.bf16 %v405, %v397
        %v630 = vpack.c.bf16 %v406, %v398
        %v631 = vpack.c.bf16 %v407, %v399
        %v632 = vpack.c.bf16 %v408, %v400
        %v633 = vpack.c.bf16 %v417, %v409
        %v634 = vpack.c.bf16 %v418, %v410
        %v635 = vpack.c.bf16 %v419, %v411
        %v636 = vpack.c.bf16 %v420, %v412
        %v637 = vpack.c.bf16 %v421, %v413
        %v638 = vpack.c.bf16 %v422, %v414
        %v639 = vpack.c.bf16 %v423, %v415
        %v640 = vpack.c.bf16 %v424, %v416
        %v641 = vpack.c.bf16 %v433, %v425
        %v642 = vpack.c.bf16 %v434, %v426
        %v643 = vpack.c.bf16 %v435, %v427
        %v644 = vpack.c.bf16 %v436, %v428
        %v645 = vpack.c.bf16 %v437, %v429
        %v646 = vpack.c.bf16 %v438, %v430
        %v647 = vpack.c.bf16 %v439, %v431
        %v648 = vpack.c.bf16 %v440, %v432
        %v649 = vpack.c.bf16 %v449, %v441
        %v650 = vpack.c.bf16 %v450, %v442
        %v651 = vpack.c.bf16 %v451, %v443
        %v652 = vpack.c.bf16 %v452, %v444
        %v653 = vpack.c.bf16 %v453, %v445
        %v654 = vpack.c.bf16 %v454, %v446
        %v655 = vpack.c.bf16 %v455, %v447
        %v656 = vpack.c.bf16 %v456, %v448
        %v657 = vpack.c.bf16 %v465, %v457
        %v658 = vpack.c.bf16 %v466, %v458
        %v659 = vpack.c.bf16 %v467, %v459
        %v660 = vpack.c.bf16 %v468, %v460
        %v661 = vpack.c.bf16 %v469, %v461
        %v662 = vpack.c.bf16 %v470, %v462
        %v663 = vpack.c.bf16 %v471, %v463
        %v664 = vpack.c.bf16 %v472, %v464
        %v665 = vpack.c.bf16 %v481, %v473
        %v666 = vpack.c.bf16 %v482, %v474
        %v667 = vpack.c.bf16 %v483, %v475
        %v668 = vpack.c.bf16 %v484, %v476
        %v669 = vpack.c.bf16 %v485, %v477
        %v670 = vpack.c.bf16 %v486, %v478
        %v671 = vpack.c.bf16 %v487, %v479
        %v672 = vpack.c.bf16 %v488, %v480
        %v673 = vpack.c.bf16 %v497, %v489
        %v674 = vpack.c.bf16 %v498, %v490
        %v675 = vpack.c.bf16 %v499, %v491
        %v676 = vpack.c.bf16 %v500, %v492
        %v677 = vpack.c.bf16 %v501, %v493
        %v678 = vpack.c.bf16 %v502, %v494
        %v679 = vpack.c.bf16 %v503, %v495
        %v680 = vpack.c.bf16 %v504, %v496
        %v681 = vpack.c.bf16 %v513, %v505
        %v682 = vpack.c.bf16 %v514, %v506
        %v683 = vpack.c.bf16 %v515, %v507
        %v684 = vpack.c.bf16 %v516, %v508
        %v685 = vpack.c.bf16 %v517, %v509
        %v686 = vpack.c.bf16 %v518, %v510
        %v687 = vpack.c.bf16 %v519, %v511
        %v688 = vpack.c.bf16 %v520, %v512
        %v689 = vpack.c.bf16 %v529, %v521
        %v690 = vpack.c.bf16 %v530, %v522
        %v691 = vpack.c.bf16 %v531, %v523
        %v692 = vpack.c.bf16 %v532, %v524
        %v693 = vpack.c.bf16 %v533, %v525
        %v694 = vpack.c.bf16 %v534, %v526
        %v695 = vpack.c.bf16 %v535, %v527
        %v696 = vpack.c.bf16 %v536, %v528
        %v697 = vpack.c.bf16 %v545, %v537
        %v698 = vpack.c.bf16 %v546, %v538
        %v699 = vpack.c.bf16 %v547, %v539
        %v700 = vpack.c.bf16 %v548, %v540
        %v701 = vpack.c.bf16 %v549, %v541
        %v702 = vpack.c.bf16 %v550, %v542
        %v703 = vpack.c.bf16 %v551, %v543
        %v704 = vpack.c.bf16 %v552, %v544
        %v705 = vpack.c.bf16 %v561, %v553
        %v706 = vpack.c.bf16 %v562, %v554
        %v707 = vpack.c.bf16 %v563, %v555
        %v708 = vpack.c.bf16 %v564, %v556
        %v709 = vpack.c.bf16 %v565, %v557
        %v710 = vpack.c.bf16 %v566, %v558
        %v711 = vpack.c.bf16 %v567, %v559
        %v712 = vpack.c.bf16 %v568, %v560
        %v713 = vpack.c.bf16 %v577, %v569
        %v714 = vpack.c.bf16 %v578, %v570
        %v715 = vpack.c.bf16 %v579, %v571
        %v716 = vpack.c.bf16 %v580, %v572
        %v717 = vpack.c.bf16 %v581, %v573
        %v718 = vpack.c.bf16 %v582, %v574
        %v719 = vpack.c.bf16 %v583, %v575
        %v720 = vpack.c.bf16 %v584, %v576
        %v721 = vpack.c.bf16 %v593, %v585
        %v722 = vpack.c.bf16 %v594, %v586
        %v723 = vpack.c.bf16 %v595, %v587
        %v724 = vpack.c.bf16 %v596, %v588
        %v725 = vpack.c.bf16 %v597, %v589
        %v726 = vpack.c.bf16 %v598, %v590
        %v727 = vpack.c.bf16 %v599, %v591
        %v728 = vpack.c.bf16 %v600, %v592
        %v729 = vld [vmem:[#allocation5] sm:$0xff]
        %v730 = vld [vmem:[#allocation5 + $0x8] sm:$0xff]
        %v731 = vld [vmem:[#allocation5 + $0x10] sm:$0xff]
        %v732 = vld [vmem:[#allocation5 + $0x18] sm:$0xff]
        %v733 = vld [vmem:[#allocation5 + $0x20] sm:$0xff]
        %v734 = vld [vmem:[#allocation5 + $0x28] sm:$0xff]
        %v735 = vld [vmem:[#allocation5 + $0x30] sm:$0xff]
        %v736 = vld [vmem:[#allocation5 + $0x38] sm:$0xff]
        %v737 = vld [vmem:[#allocation5 + $0x40] sm:$0xff]
        %v738 = vld [vmem:[#allocation5 + $0x48] sm:$0xff]
        %v739 = vld [vmem:[#allocation5 + $0x50] sm:$0xff]
        %v740 = vld [vmem:[#allocation5 + $0x58] sm:$0xff]
        %v741 = vld [vmem:[#allocation5 + $0x60] sm:$0xff]
        %v742 = vld [vmem:[#allocation5 + $0x68] sm:$0xff]
        %v743 = vld [vmem:[#allocation5 + $0x70] sm:$0xff]
        %v744 = vld [vmem:[#allocation5 + $0x78] sm:$0xff]
        %v745 = vld [vmem:[#allocation5 + $0x80] sm:$0xff]
        %v746 = vld [vmem:[#allocation5 + $0x88] sm:$0xff]
        %v747 = vld [vmem:[#allocation5 + $0x90] sm:$0xff]
        %v748 = vld [vmem:[#allocation5 + $0x98] sm:$0xff]
        %v749 = vld [vmem:[#allocation5 + $0xa0] sm:$0xff]
        %v750 = vld [vmem:[#allocation5 + $0xa8] sm:$0xff]
        %v751 = vld [vmem:[#allocation5 + $0xb0] sm:$0xff]
        %v752 = vld [vmem:[#allocation5 + $0xb8] sm:$0xff]
        %v753 = vld [vmem:[#allocation5 + $0xc0] sm:$0xff]
        %v754 = vld [vmem:[#allocation5 + $0xc8] sm:$0xff]
        %v755 = vld [vmem:[#allocation5 + $0xd0] sm:$0xff]
        %v756 = vld [vmem:[#allocation5 + $0xd8] sm:$0xff]
        %v757 = vld [vmem:[#allocation5 + $0xe0] sm:$0xff]
        %v758 = vld [vmem:[#allocation5 + $0xe8] sm:$0xff]
        %v759 = vld [vmem:[#allocation5 + $0xf0] sm:$0xff]
        %v760 = vld [vmem:[#allocation5 + $0xf8] sm:$0xff]
        %v761 = vld [vmem:[#allocation5 + $0x100] sm:$0xff]
        %v762 = vld [vmem:[#allocation5 + $0x108] sm:$0xff]
        %v763 = vld [vmem:[#allocation5 + $0x110] sm:$0xff]
        %v764 = vld [vmem:[#allocation5 + $0x118] sm:$0xff]
        %v765 = vld [vmem:[#allocation5 + $0x120] sm:$0xff]
        %v766 = vld [vmem:[#allocation5 + $0x128] sm:$0xff]
        %v767 = vld [vmem:[#allocation5 + $0x130] sm:$0xff]
        %v768 = vld [vmem:[#allocation5 + $0x138] sm:$0xff]
        %v769 = vld [vmem:[#allocation5 + $0x140] sm:$0xff]
        %v770 = vld [vmem:[#allocation5 + $0x148] sm:$0xff]
        %v771 = vld [vmem:[#allocation5 + $0x150] sm:$0xff]
        %v772 = vld [vmem:[#allocation5 + $0x158] sm:$0xff]
        %v773 = vld [vmem:[#allocation5 + $0x160] sm:$0xff]
        %v774 = vld [vmem:[#allocation5 + $0x168] sm:$0xff]
        %v775 = vld [vmem:[#allocation5 + $0x170] sm:$0xff]
        %v776 = vld [vmem:[#allocation5 + $0x178] sm:$0xff]
        %v777 = vld [vmem:[#allocation5 + $0x180] sm:$0xff]
        %v778 = vld [vmem:[#allocation5 + $0x188] sm:$0xff]
        %v779 = vld [vmem:[#allocation5 + $0x190] sm:$0xff]
        %v780 = vld [vmem:[#allocation5 + $0x198] sm:$0xff]
        %v781 = vld [vmem:[#allocation5 + $0x1a0] sm:$0xff]
        %v782 = vld [vmem:[#allocation5 + $0x1a8] sm:$0xff]
        %v783 = vld [vmem:[#allocation5 + $0x1b0] sm:$0xff]
        %v784 = vld [vmem:[#allocation5 + $0x1b8] sm:$0xff]
        %v785 = vld [vmem:[#allocation5 + $0x1c0] sm:$0xff]
        %v786 = vld [vmem:[#allocation5 + $0x1c8] sm:$0xff]
        %v787 = vld [vmem:[#allocation5 + $0x1d0] sm:$0xff]
        %v788 = vld [vmem:[#allocation5 + $0x1d8] sm:$0xff]
        %v789 = vld [vmem:[#allocation5 + $0x1e0] sm:$0xff]
        %v790 = vld [vmem:[#allocation5 + $0x1e8] sm:$0xff]
        %v791 = vld [vmem:[#allocation5 + $0x1f0] sm:$0xff]
        %v792 = vld [vmem:[#allocation5 + $0x1f8] sm:$0xff]
        %v793 = vld [vmem:[#allocation5 + $0x200] sm:$0xff]
        %v794 = vld [vmem:[#allocation5 + $0x208] sm:$0xff]
        %v795 = vld [vmem:[#allocation5 + $0x210] sm:$0xff]
        %v796 = vld [vmem:[#allocation5 + $0x218] sm:$0xff]
        %v797 = vld [vmem:[#allocation5 + $0x220] sm:$0xff]
        %v798 = vld [vmem:[#allocation5 + $0x228] sm:$0xff]
        %v799 = vld [vmem:[#allocation5 + $0x230] sm:$0xff]
        %v800 = vld [vmem:[#allocation5 + $0x238] sm:$0xff]
        %v801 = vld [vmem:[#allocation5 + $0x240] sm:$0xff]
        %v802 = vld [vmem:[#allocation5 + $0x248] sm:$0xff]
        %v803 = vld [vmem:[#allocation5 + $0x250] sm:$0xff]
        %v804 = vld [vmem:[#allocation5 + $0x258] sm:$0xff]
        %v805 = vld [vmem:[#allocation5 + $0x260] sm:$0xff]
        %v806 = vld [vmem:[#allocation5 + $0x268] sm:$0xff]
        %v807 = vld [vmem:[#allocation5 + $0x270] sm:$0xff]
        %v808 = vld [vmem:[#allocation5 + $0x278] sm:$0xff]
        %v809 = vld [vmem:[#allocation5 + $0x280] sm:$0xff]
        %v810 = vld [vmem:[#allocation5 + $0x288] sm:$0xff]
        %v811 = vld [vmem:[#allocation5 + $0x290] sm:$0xff]
        %v812 = vld [vmem:[#allocation5 + $0x298] sm:$0xff]
        %v813 = vld [vmem:[#allocation5 + $0x2a0] sm:$0xff]
        %v814 = vld [vmem:[#allocation5 + $0x2a8] sm:$0xff]
        %v815 = vld [vmem:[#allocation5 + $0x2b0] sm:$0xff]
        %v816 = vld [vmem:[#allocation5 + $0x2b8] sm:$0xff]
        %v817 = vld [vmem:[#allocation5 + $0x2c0] sm:$0xff]
        %v818 = vld [vmem:[#allocation5 + $0x2c8] sm:$0xff]
        %v819 = vld [vmem:[#allocation5 + $0x2d0] sm:$0xff]
        %v820 = vld [vmem:[#allocation5 + $0x2d8] sm:$0xff]
        %v821 = vld [vmem:[#allocation5 + $0x2e0] sm:$0xff]
        %v822 = vld [vmem:[#allocation5 + $0x2e8] sm:$0xff]
        %v823 = vld [vmem:[#allocation5 + $0x2f0] sm:$0xff]
        %v824 = vld [vmem:[#allocation5 + $0x2f8] sm:$0xff]
        %v825 = vld [vmem:[#allocation5 + $0x300] sm:$0xff]
        %v826 = vld [vmem:[#allocation5 + $0x308] sm:$0xff]
        %v827 = vld [vmem:[#allocation5 + $0x310] sm:$0xff]
        %v828 = vld [vmem:[#allocation5 + $0x318] sm:$0xff]
        %v829 = vld [vmem:[#allocation5 + $0x320] sm:$0xff]
        %v830 = vld [vmem:[#allocation5 + $0x328] sm:$0xff]
        %v831 = vld [vmem:[#allocation5 + $0x330] sm:$0xff]
        %v832 = vld [vmem:[#allocation5 + $0x338] sm:$0xff]
        %v833 = vld [vmem:[#allocation5 + $0x340] sm:$0xff]
        %v834 = vld [vmem:[#allocation5 + $0x348] sm:$0xff]
        %v835 = vld [vmem:[#allocation5 + $0x350] sm:$0xff]
        %v836 = vld [vmem:[#allocation5 + $0x358] sm:$0xff]
        %v837 = vld [vmem:[#allocation5 + $0x360] sm:$0xff]
        %v838 = vld [vmem:[#allocation5 + $0x368] sm:$0xff]
        %v839 = vld [vmem:[#allocation5 + $0x370] sm:$0xff]
        %v840 = vld [vmem:[#allocation5 + $0x378] sm:$0xff]
        %v841 = vld [vmem:[#allocation5 + $0x380] sm:$0xff]
        %v842 = vld [vmem:[#allocation5 + $0x388] sm:$0xff]
        %v843 = vld [vmem:[#allocation5 + $0x390] sm:$0xff]
        %v844 = vld [vmem:[#allocation5 + $0x398] sm:$0xff]
        %v845 = vld [vmem:[#allocation5 + $0x3a0] sm:$0xff]
        %v846 = vld [vmem:[#allocation5 + $0x3a8] sm:$0xff]
        %v847 = vld [vmem:[#allocation5 + $0x3b0] sm:$0xff]
        %v848 = vld [vmem:[#allocation5 + $0x3b8] sm:$0xff]
        %v849 = vld [vmem:[#allocation5 + $0x3c0] sm:$0xff]
        %v850 = vld [vmem:[#allocation5 + $0x3c8] sm:$0xff]
        %v851 = vld [vmem:[#allocation5 + $0x3d0] sm:$0xff]
        %v852 = vld [vmem:[#allocation5 + $0x3d8] sm:$0xff]
        %v853 = vld [vmem:[#allocation5 + $0x3e0] sm:$0xff]
        %v854 = vld [vmem:[#allocation5 + $0x3e8] sm:$0xff]
        %v855 = vld [vmem:[#allocation5 + $0x3f0] sm:$0xff]
        %v856 = vld [vmem:[#allocation5 + $0x3f8] sm:$0xff]
        %v857 = vld [vmem:[#allocation5 + $0x400] sm:$0xff]
        %v858 = vld [vmem:[#allocation5 + $0x408] sm:$0xff]
        %v859 = vld [vmem:[#allocation5 + $0x410] sm:$0xff]
        %v860 = vld [vmem:[#allocation5 + $0x418] sm:$0xff]
        %v861 = vld [vmem:[#allocation5 + $0x420] sm:$0xff]
        %v862 = vld [vmem:[#allocation5 + $0x428] sm:$0xff]
        %v863 = vld [vmem:[#allocation5 + $0x430] sm:$0xff]
        %v864 = vld [vmem:[#allocation5 + $0x438] sm:$0xff]
        %v865 = vld [vmem:[#allocation5 + $0x440] sm:$0xff]
        %v866 = vld [vmem:[#allocation5 + $0x448] sm:$0xff]
        %v867 = vld [vmem:[#allocation5 + $0x450] sm:$0xff]
        %v868 = vld [vmem:[#allocation5 + $0x458] sm:$0xff]
        %v869 = vld [vmem:[#allocation5 + $0x460] sm:$0xff]
        %v870 = vld [vmem:[#allocation5 + $0x468] sm:$0xff]
        %v871 = vld [vmem:[#allocation5 + $0x470] sm:$0xff]
        %v872 = vld [vmem:[#allocation5 + $0x478] sm:$0xff]
        %v873 = vld [vmem:[#allocation5 + $0x480] sm:$0xff]
        %v874 = vld [vmem:[#allocation5 + $0x488] sm:$0xff]
        %v875 = vld [vmem:[#allocation5 + $0x490] sm:$0xff]
        %v876 = vld [vmem:[#allocation5 + $0x498] sm:$0xff]
        %v877 = vld [vmem:[#allocation5 + $0x4a0] sm:$0xff]
        %v878 = vld [vmem:[#allocation5 + $0x4a8] sm:$0xff]
        %v879 = vld [vmem:[#allocation5 + $0x4b0] sm:$0xff]
        %v880 = vld [vmem:[#allocation5 + $0x4b8] sm:$0xff]
        %v881 = vld [vmem:[#allocation5 + $0x4c0] sm:$0xff]
        %v882 = vld [vmem:[#allocation5 + $0x4c8] sm:$0xff]
        %v883 = vld [vmem:[#allocation5 + $0x4d0] sm:$0xff]
        %v884 = vld [vmem:[#allocation5 + $0x4d8] sm:$0xff]
        %v885 = vld [vmem:[#allocation5 + $0x4e0] sm:$0xff]
        %v886 = vld [vmem:[#allocation5 + $0x4e8] sm:$0xff]
        %v887 = vld [vmem:[#allocation5 + $0x4f0] sm:$0xff]
        %v888 = vld [vmem:[#allocation5 + $0x4f8] sm:$0xff]
        %v889 = vld [vmem:[#allocation5 + $0x500] sm:$0xff]
        %v890 = vld [vmem:[#allocation5 + $0x508] sm:$0xff]
        %v891 = vld [vmem:[#allocation5 + $0x510] sm:$0xff]
        %v892 = vld [vmem:[#allocation5 + $0x518] sm:$0xff]
        %v893 = vld [vmem:[#allocation5 + $0x520] sm:$0xff]
        %v894 = vld [vmem:[#allocation5 + $0x528] sm:$0xff]
        %v895 = vld [vmem:[#allocation5 + $0x530] sm:$0xff]
        %v896 = vld [vmem:[#allocation5 + $0x538] sm:$0xff]
        %v897 = vld [vmem:[#allocation5 + $0x540] sm:$0xff]
        %v898 = vld [vmem:[#allocation5 + $0x548] sm:$0xff]
        %v899 = vld [vmem:[#allocation5 + $0x550] sm:$0xff]
        %v900 = vld [vmem:[#allocation5 + $0x558] sm:$0xff]
        %v901 = vld [vmem:[#allocation5 + $0x560] sm:$0xff]
        %v902 = vld [vmem:[#allocation5 + $0x568] sm:$0xff]
        %v903 = vld [vmem:[#allocation5 + $0x570] sm:$0xff]
        %v904 = vld [vmem:[#allocation5 + $0x578] sm:$0xff]
        %v905 = vld [vmem:[#allocation5 + $0x580] sm:$0xff]
        %v906 = vld [vmem:[#allocation5 + $0x588] sm:$0xff]
        %v907 = vld [vmem:[#allocation5 + $0x590] sm:$0xff]
        %v908 = vld [vmem:[#allocation5 + $0x598] sm:$0xff]
        %v909 = vld [vmem:[#allocation5 + $0x5a0] sm:$0xff]
        %v910 = vld [vmem:[#allocation5 + $0x5a8] sm:$0xff]
        %v911 = vld [vmem:[#allocation5 + $0x5b0] sm:$0xff]
        %v912 = vld [vmem:[#allocation5 + $0x5b8] sm:$0xff]
        %v913 = vld [vmem:[#allocation5 + $0x5c0] sm:$0xff]
        %v914 = vld [vmem:[#allocation5 + $0x5c8] sm:$0xff]
        %v915 = vld [vmem:[#allocation5 + $0x5d0] sm:$0xff]
        %v916 = vld [vmem:[#allocation5 + $0x5d8] sm:$0xff]
        %v917 = vld [vmem:[#allocation5 + $0x5e0] sm:$0xff]
        %v918 = vld [vmem:[#allocation5 + $0x5e8] sm:$0xff]
        %v919 = vld [vmem:[#allocation5 + $0x5f0] sm:$0xff]
        %v920 = vld [vmem:[#allocation5 + $0x5f8] sm:$0xff]
        %v921 = vld [vmem:[#allocation5 + $0x600] sm:$0xff]
        %v922 = vld [vmem:[#allocation5 + $0x608] sm:$0xff]
        %v923 = vld [vmem:[#allocation5 + $0x610] sm:$0xff]
        %v924 = vld [vmem:[#allocation5 + $0x618] sm:$0xff]
        %v925 = vld [vmem:[#allocation5 + $0x620] sm:$0xff]
        %v926 = vld [vmem:[#allocation5 + $0x628] sm:$0xff]
        %v927 = vld [vmem:[#allocation5 + $0x630] sm:$0xff]
        %v928 = vld [vmem:[#allocation5 + $0x638] sm:$0xff]
        %v929 = vld [vmem:[#allocation5 + $0x640] sm:$0xff]
        %v930 = vld [vmem:[#allocation5 + $0x648] sm:$0xff]
        %v931 = vld [vmem:[#allocation5 + $0x650] sm:$0xff]
        %v932 = vld [vmem:[#allocation5 + $0x658] sm:$0xff]
        %v933 = vld [vmem:[#allocation5 + $0x660] sm:$0xff]
        %v934 = vld [vmem:[#allocation5 + $0x668] sm:$0xff]
        %v935 = vld [vmem:[#allocation5 + $0x670] sm:$0xff]
        %v936 = vld [vmem:[#allocation5 + $0x678] sm:$0xff]
        %v937 = vld [vmem:[#allocation5 + $0x680] sm:$0xff]
        %v938 = vld [vmem:[#allocation5 + $0x688] sm:$0xff]
        %v939 = vld [vmem:[#allocation5 + $0x690] sm:$0xff]
        %v940 = vld [vmem:[#allocation5 + $0x698] sm:$0xff]
        %v941 = vld [vmem:[#allocation5 + $0x6a0] sm:$0xff]
        %v942 = vld [vmem:[#allocation5 + $0x6a8] sm:$0xff]
        %v943 = vld [vmem:[#allocation5 + $0x6b0] sm:$0xff]
        %v944 = vld [vmem:[#allocation5 + $0x6b8] sm:$0xff]
        %v945 = vld [vmem:[#allocation5 + $0x6c0] sm:$0xff]
        %v946 = vld [vmem:[#allocation5 + $0x6c8] sm:$0xff]
        %v947 = vld [vmem:[#allocation5 + $0x6d0] sm:$0xff]
        %v948 = vld [vmem:[#allocation5 + $0x6d8] sm:$0xff]
        %v949 = vld [vmem:[#allocation5 + $0x6e0] sm:$0xff]
        %v950 = vld [vmem:[#allocation5 + $0x6e8] sm:$0xff]
        %v951 = vld [vmem:[#allocation5 + $0x6f0] sm:$0xff]
        %v952 = vld [vmem:[#allocation5 + $0x6f8] sm:$0xff]
        %v953 = vld [vmem:[#allocation5 + $0x700] sm:$0xff]
        %v954 = vld [vmem:[#allocation5 + $0x708] sm:$0xff]
        %v955 = vld [vmem:[#allocation5 + $0x710] sm:$0xff]
        %v956 = vld [vmem:[#allocation5 + $0x718] sm:$0xff]
        %v957 = vld [vmem:[#allocation5 + $0x720] sm:$0xff]
        %v958 = vld [vmem:[#allocation5 + $0x728] sm:$0xff]
        %v959 = vld [vmem:[#allocation5 + $0x730] sm:$0xff]
        %v960 = vld [vmem:[#allocation5 + $0x738] sm:$0xff]
        %v961 = vld [vmem:[#allocation5 + $0x740] sm:$0xff]
        %v962 = vld [vmem:[#allocation5 + $0x748] sm:$0xff]
        %v963 = vld [vmem:[#allocation5 + $0x750] sm:$0xff]
        %v964 = vld [vmem:[#allocation5 + $0x758] sm:$0xff]
        %v965 = vld [vmem:[#allocation5 + $0x760] sm:$0xff]
        %v966 = vld [vmem:[#allocation5 + $0x768] sm:$0xff]
        %v967 = vld [vmem:[#allocation5 + $0x770] sm:$0xff]
        %v968 = vld [vmem:[#allocation5 + $0x778] sm:$0xff]
        %v969 = vld [vmem:[#allocation5 + $0x780] sm:$0xff]
        %v970 = vld [vmem:[#allocation5 + $0x788] sm:$0xff]
        %v971 = vld [vmem:[#allocation5 + $0x790] sm:$0xff]
        %v972 = vld [vmem:[#allocation5 + $0x798] sm:$0xff]
        %v973 = vld [vmem:[#allocation5 + $0x7a0] sm:$0xff]
        %v974 = vld [vmem:[#allocation5 + $0x7a8] sm:$0xff]
        %v975 = vld [vmem:[#allocation5 + $0x7b0] sm:$0xff]
        %v976 = vld [vmem:[#allocation5 + $0x7b8] sm:$0xff]
        %v977 = vld [vmem:[#allocation5 + $0x7c0] sm:$0xff]
        %v978 = vld [vmem:[#allocation5 + $0x7c8] sm:$0xff]
        %v979 = vld [vmem:[#allocation5 + $0x7d0] sm:$0xff]
        %v980 = vld [vmem:[#allocation5 + $0x7d8] sm:$0xff]
        %v981 = vld [vmem:[#allocation5 + $0x7e0] sm:$0xff]
        %v982 = vld [vmem:[#allocation5 + $0x7e8] sm:$0xff]
        %v983 = vld [vmem:[#allocation5 + $0x7f0] sm:$0xff]
        %v984 = vld [vmem:[#allocation5 + $0x7f8] sm:$0xff]
        %v985 = vld [vmem:[#allocation7] sm:$0xf]
        %v987 = vlaneseq
        %v988 = vshrl.u32 %v987, 7
        %v989 = vsub.s32 0, %v988
        %v990 = vrot.slane %v985, %v989
        %v991 = vlaneseq
        %v992 = vshrl.u32 %v991, 7
        %v993 = vsub.s32 1, %v992
        %v994 = vrot.slane %v985, %v993
        %v995 = vlaneseq
        %v996 = vshrl.u32 %v995, 7
        %v997 = vsub.s32 2, %v996
        %v998 = vrot.slane %v985, %v997
        %v999 = vlaneseq
        %v1000 = vshrl.u32 %v999, 7
        %v1001 = vsub.s32 3, %v1000
        %v1002 = vrot.slane %v985, %v1001
        %v1263 = vunpack.c.l.b16 %v729
        %v1264 = vunpack.c.h.b16 %v729
        %v1265 = vunpack.c.l.b16 %v730
        %v1266 = vunpack.c.h.b16 %v730
        %v1267 = vunpack.c.l.b16 %v731
        %v1268 = vunpack.c.h.b16 %v731
        %v1269 = vunpack.c.l.b16 %v732
        %v1270 = vunpack.c.h.b16 %v732
        %v1271 = vunpack.c.l.b16 %v733
        %v1272 = vunpack.c.h.b16 %v733
        %v1273 = vunpack.c.l.b16 %v734
        %v1274 = vunpack.c.h.b16 %v734
        %v1275 = vunpack.c.l.b16 %v735
        %v1276 = vunpack.c.h.b16 %v735
        %v1277 = vunpack.c.l.b16 %v736
        %v1278 = vunpack.c.h.b16 %v736
        %v1279 = vunpack.c.l.b16 %v737
        %v1280 = vunpack.c.h.b16 %v737
        %v1281 = vunpack.c.l.b16 %v738
        %v1282 = vunpack.c.h.b16 %v738
        %v1283 = vunpack.c.l.b16 %v739
        %v1284 = vunpack.c.h.b16 %v739
        %v1285 = vunpack.c.l.b16 %v740
        %v1286 = vunpack.c.h.b16 %v740
        %v1287 = vunpack.c.l.b16 %v741
        %v1288 = vunpack.c.h.b16 %v741
        %v1289 = vunpack.c.l.b16 %v742
        %v1290 = vunpack.c.h.b16 %v742
        %v1291 = vunpack.c.l.b16 %v743
        %v1292 = vunpack.c.h.b16 %v743
        %v1293 = vunpack.c.l.b16 %v744
        %v1294 = vunpack.c.h.b16 %v744
        %v1295 = vunpack.c.l.b16 %v745
        %v1296 = vunpack.c.h.b16 %v745
        %v1297 = vunpack.c.l.b16 %v746
        %v1298 = vunpack.c.h.b16 %v746
        %v1299 = vunpack.c.l.b16 %v747
        %v1300 = vunpack.c.h.b16 %v747
        %v1301 = vunpack.c.l.b16 %v748
        %v1302 = vunpack.c.h.b16 %v748
        %v1303 = vunpack.c.l.b16 %v749
        %v1304 = vunpack.c.h.b16 %v749
        %v1305 = vunpack.c.l.b16 %v750
        %v1306 = vunpack.c.h.b16 %v750
        %v1307 = vunpack.c.l.b16 %v751
        %v1308 = vunpack.c.h.b16 %v751
        %v1309 = vunpack.c.l.b16 %v752
        %v1310 = vunpack.c.h.b16 %v752
        %v1311 = vunpack.c.l.b16 %v753
        %v1312 = vunpack.c.h.b16 %v753
        %v1313 = vunpack.c.l.b16 %v754
        %v1314 = vunpack.c.h.b16 %v754
        %v1315 = vunpack.c.l.b16 %v755
        %v1316 = vunpack.c.h.b16 %v755
        %v1317 = vunpack.c.l.b16 %v756
        %v1318 = vunpack.c.h.b16 %v756
        %v1319 = vunpack.c.l.b16 %v757
        %v1320 = vunpack.c.h.b16 %v757
        %v1321 = vunpack.c.l.b16 %v758
        %v1322 = vunpack.c.h.b16 %v758
        %v1323 = vunpack.c.l.b16 %v759
        %v1324 = vunpack.c.h.b16 %v759
        %v1325 = vunpack.c.l.b16 %v760
        %v1326 = vunpack.c.h.b16 %v760
        %v1327 = vunpack.c.l.b16 %v761
        %v1328 = vunpack.c.h.b16 %v761
        %v1329 = vunpack.c.l.b16 %v762
        %v1330 = vunpack.c.h.b16 %v762
        %v1331 = vunpack.c.l.b16 %v763
        %v1332 = vunpack.c.h.b16 %v763
        %v1333 = vunpack.c.l.b16 %v764
        %v1334 = vunpack.c.h.b16 %v764
        %v1335 = vunpack.c.l.b16 %v765
        %v1336 = vunpack.c.h.b16 %v765
        %v1337 = vunpack.c.l.b16 %v766
        %v1338 = vunpack.c.h.b16 %v766
        %v1339 = vunpack.c.l.b16 %v767
        %v1340 = vunpack.c.h.b16 %v767
        %v1341 = vunpack.c.l.b16 %v768
        %v1342 = vunpack.c.h.b16 %v768
        %v1343 = vunpack.c.l.b16 %v769
        %v1344 = vunpack.c.h.b16 %v769
        %v1345 = vunpack.c.l.b16 %v770
        %v1346 = vunpack.c.h.b16 %v770
        %v1347 = vunpack.c.l.b16 %v771
        %v1348 = vunpack.c.h.b16 %v771
        %v1349 = vunpack.c.l.b16 %v772
        %v1350 = vunpack.c.h.b16 %v772
        %v1351 = vunpack.c.l.b16 %v773
        %v1352 = vunpack.c.h.b16 %v773
        %v1353 = vunpack.c.l.b16 %v774
        %v1354 = vunpack.c.h.b16 %v774
        %v1355 = vunpack.c.l.b16 %v775
        %v1356 = vunpack.c.h.b16 %v775
        %v1357 = vunpack.c.l.b16 %v776
        %v1358 = vunpack.c.h.b16 %v776
        %v1359 = vunpack.c.l.b16 %v777
        %v1360 = vunpack.c.h.b16 %v777
        %v1361 = vunpack.c.l.b16 %v778
        %v1362 = vunpack.c.h.b16 %v778
        %v1363 = vunpack.c.l.b16 %v779
        %v1364 = vunpack.c.h.b16 %v779
        %v1365 = vunpack.c.l.b16 %v780
        %v1366 = vunpack.c.h.b16 %v780
        %v1367 = vunpack.c.l.b16 %v781
        %v1368 = vunpack.c.h.b16 %v781
        %v1369 = vunpack.c.l.b16 %v782
        %v1370 = vunpack.c.h.b16 %v782
        %v1371 = vunpack.c.l.b16 %v783
        %v1372 = vunpack.c.h.b16 %v783
        %v1373 = vunpack.c.l.b16 %v784
        %v1374 = vunpack.c.h.b16 %v784
        %v1375 = vunpack.c.l.b16 %v785
        %v1376 = vunpack.c.h.b16 %v785
        %v1377 = vunpack.c.l.b16 %v786
        %v1378 = vunpack.c.h.b16 %v786
        %v1379 = vunpack.c.l.b16 %v787
        %v1380 = vunpack.c.h.b16 %v787
        %v1381 = vunpack.c.l.b16 %v788
        %v1382 = vunpack.c.h.b16 %v788
        %v1383 = vunpack.c.l.b16 %v789
        %v1384 = vunpack.c.h.b16 %v789
        %v1385 = vunpack.c.l.b16 %v790
        %v1386 = vunpack.c.h.b16 %v790
        %v1387 = vunpack.c.l.b16 %v791
        %v1388 = vunpack.c.h.b16 %v791
        %v1389 = vunpack.c.l.b16 %v792
        %v1390 = vunpack.c.h.b16 %v792
        %v1391 = vunpack.c.l.b16 %v793
        %v1392 = vunpack.c.h.b16 %v793
        %v1393 = vunpack.c.l.b16 %v794
        %v1394 = vunpack.c.h.b16 %v794
        %v1395 = vunpack.c.l.b16 %v795
        %v1396 = vunpack.c.h.b16 %v795
        %v1397 = vunpack.c.l.b16 %v796
        %v1398 = vunpack.c.h.b16 %v796
        %v1399 = vunpack.c.l.b16 %v797
        %v1400 = vunpack.c.h.b16 %v797
        %v1401 = vunpack.c.l.b16 %v798
        %v1402 = vunpack.c.h.b16 %v798
        %v1403 = vunpack.c.l.b16 %v799
        %v1404 = vunpack.c.h.b16 %v799
        %v1405 = vunpack.c.l.b16 %v800
        %v1406 = vunpack.c.h.b16 %v800
        %v1407 = vunpack.c.l.b16 %v801
        %v1408 = vunpack.c.h.b16 %v801
        %v1409 = vunpack.c.l.b16 %v802
        %v1410 = vunpack.c.h.b16 %v802
        %v1411 = vunpack.c.l.b16 %v803
        %v1412 = vunpack.c.h.b16 %v803
        %v1413 = vunpack.c.l.b16 %v804
        %v1414 = vunpack.c.h.b16 %v804
        %v1415 = vunpack.c.l.b16 %v805
        %v1416 = vunpack.c.h.b16 %v805
        %v1417 = vunpack.c.l.b16 %v806
        %v1418 = vunpack.c.h.b16 %v806
        %v1419 = vunpack.c.l.b16 %v807
        %v1420 = vunpack.c.h.b16 %v807
        %v1421 = vunpack.c.l.b16 %v808
        %v1422 = vunpack.c.h.b16 %v808
        %v1423 = vunpack.c.l.b16 %v809
        %v1424 = vunpack.c.h.b16 %v809
        %v1425 = vunpack.c.l.b16 %v810
        %v1426 = vunpack.c.h.b16 %v810
        %v1427 = vunpack.c.l.b16 %v811
        %v1428 = vunpack.c.h.b16 %v811
        %v1429 = vunpack.c.l.b16 %v812
        %v1430 = vunpack.c.h.b16 %v812
        %v1431 = vunpack.c.l.b16 %v813
        %v1432 = vunpack.c.h.b16 %v813
        %v1433 = vunpack.c.l.b16 %v814
        %v1434 = vunpack.c.h.b16 %v814
        %v1435 = vunpack.c.l.b16 %v815
        %v1436 = vunpack.c.h.b16 %v815
        %v1437 = vunpack.c.l.b16 %v816
        %v1438 = vunpack.c.h.b16 %v816
        %v1439 = vunpack.c.l.b16 %v817
        %v1440 = vunpack.c.h.b16 %v817
        %v1441 = vunpack.c.l.b16 %v818
        %v1442 = vunpack.c.h.b16 %v818
        %v1443 = vunpack.c.l.b16 %v819
        %v1444 = vunpack.c.h.b16 %v819
        %v1445 = vunpack.c.l.b16 %v820
        %v1446 = vunpack.c.h.b16 %v820
        %v1447 = vunpack.c.l.b16 %v821
        %v1448 = vunpack.c.h.b16 %v821
        %v1449 = vunpack.c.l.b16 %v822
        %v1450 = vunpack.c.h.b16 %v822
        %v1451 = vunpack.c.l.b16 %v823
        %v1452 = vunpack.c.h.b16 %v823
        %v1453 = vunpack.c.l.b16 %v824
        %v1454 = vunpack.c.h.b16 %v824
        %v1455 = vunpack.c.l.b16 %v825
        %v1456 = vunpack.c.h.b16 %v825
        %v1457 = vunpack.c.l.b16 %v826
        %v1458 = vunpack.c.h.b16 %v826
        %v1459 = vunpack.c.l.b16 %v827
        %v1460 = vunpack.c.h.b16 %v827
        %v1461 = vunpack.c.l.b16 %v828
        %v1462 = vunpack.c.h.b16 %v828
        %v1463 = vunpack.c.l.b16 %v829
        %v1464 = vunpack.c.h.b16 %v829
        %v1465 = vunpack.c.l.b16 %v830
        %v1466 = vunpack.c.h.b16 %v830
        %v1467 = vunpack.c.l.b16 %v831
        %v1468 = vunpack.c.h.b16 %v831
        %v1469 = vunpack.c.l.b16 %v832
        %v1470 = vunpack.c.h.b16 %v832
        %v1471 = vunpack.c.l.b16 %v833
        %v1472 = vunpack.c.h.b16 %v833
        %v1473 = vunpack.c.l.b16 %v834
        %v1474 = vunpack.c.h.b16 %v834
        %v1475 = vunpack.c.l.b16 %v835
        %v1476 = vunpack.c.h.b16 %v835
        %v1477 = vunpack.c.l.b16 %v836
        %v1478 = vunpack.c.h.b16 %v836
        %v1479 = vunpack.c.l.b16 %v837
        %v1480 = vunpack.c.h.b16 %v837
        %v1481 = vunpack.c.l.b16 %v838
        %v1482 = vunpack.c.h.b16 %v838
        %v1483 = vunpack.c.l.b16 %v839
        %v1484 = vunpack.c.h.b16 %v839
        %v1485 = vunpack.c.l.b16 %v840
        %v1486 = vunpack.c.h.b16 %v840
        %v1487 = vunpack.c.l.b16 %v841
        %v1488 = vunpack.c.h.b16 %v841
        %v1489 = vunpack.c.l.b16 %v842
        %v1490 = vunpack.c.h.b16 %v842
        %v1491 = vunpack.c.l.b16 %v843
        %v1492 = vunpack.c.h.b16 %v843
        %v1493 = vunpack.c.l.b16 %v844
        %v1494 = vunpack.c.h.b16 %v844
        %v1495 = vunpack.c.l.b16 %v845
        %v1496 = vunpack.c.h.b16 %v845
        %v1497 = vunpack.c.l.b16 %v846
        %v1498 = vunpack.c.h.b16 %v846
        %v1499 = vunpack.c.l.b16 %v847
        %v1500 = vunpack.c.h.b16 %v847
        %v1501 = vunpack.c.l.b16 %v848
        %v1502 = vunpack.c.h.b16 %v848
        %v1503 = vunpack.c.l.b16 %v849
        %v1504 = vunpack.c.h.b16 %v849
        %v1505 = vunpack.c.l.b16 %v850
        %v1506 = vunpack.c.h.b16 %v850
        %v1507 = vunpack.c.l.b16 %v851
        %v1508 = vunpack.c.h.b16 %v851
        %v1509 = vunpack.c.l.b16 %v852
        %v1510 = vunpack.c.h.b16 %v852
        %v1511 = vunpack.c.l.b16 %v853
        %v1512 = vunpack.c.h.b16 %v853
        %v1513 = vunpack.c.l.b16 %v854
        %v1514 = vunpack.c.h.b16 %v854
        %v1515 = vunpack.c.l.b16 %v855
        %v1516 = vunpack.c.h.b16 %v855
        %v1517 = vunpack.c.l.b16 %v856
        %v1518 = vunpack.c.h.b16 %v856
        %v1519 = vunpack.c.l.b16 %v857
        %v1520 = vunpack.c.h.b16 %v857
        %v1521 = vunpack.c.l.b16 %v858
        %v1522 = vunpack.c.h.b16 %v858
        %v1523 = vunpack.c.l.b16 %v859
        %v1524 = vunpack.c.h.b16 %v859
        %v1525 = vunpack.c.l.b16 %v860
        %v1526 = vunpack.c.h.b16 %v860
        %v1527 = vunpack.c.l.b16 %v861
        %v1528 = vunpack.c.h.b16 %v861
        %v1529 = vunpack.c.l.b16 %v862
        %v1530 = vunpack.c.h.b16 %v862
        %v1531 = vunpack.c.l.b16 %v863
        %v1532 = vunpack.c.h.b16 %v863
        %v1533 = vunpack.c.l.b16 %v864
        %v1534 = vunpack.c.h.b16 %v864
        %v1535 = vunpack.c.l.b16 %v865
        %v1536 = vunpack.c.h.b16 %v865
        %v1537 = vunpack.c.l.b16 %v866
        %v1538 = vunpack.c.h.b16 %v866
        %v1539 = vunpack.c.l.b16 %v867
        %v1540 = vunpack.c.h.b16 %v867
        %v1541 = vunpack.c.l.b16 %v868
        %v1542 = vunpack.c.h.b16 %v868
        %v1543 = vunpack.c.l.b16 %v869
        %v1544 = vunpack.c.h.b16 %v869
        %v1545 = vunpack.c.l.b16 %v870
        %v1546 = vunpack.c.h.b16 %v870
        %v1547 = vunpack.c.l.b16 %v871
        %v1548 = vunpack.c.h.b16 %v871
        %v1549 = vunpack.c.l.b16 %v872
        %v1550 = vunpack.c.h.b16 %v872
        %v1551 = vunpack.c.l.b16 %v873
        %v1552 = vunpack.c.h.b16 %v873
        %v1553 = vunpack.c.l.b16 %v874
        %v1554 = vunpack.c.h.b16 %v874
        %v1555 = vunpack.c.l.b16 %v875
        %v1556 = vunpack.c.h.b16 %v875
        %v1557 = vunpack.c.l.b16 %v876
        %v1558 = vunpack.c.h.b16 %v876
        %v1559 = vunpack.c.l.b16 %v877
        %v1560 = vunpack.c.h.b16 %v877
        %v1561 = vunpack.c.l.b16 %v878
        %v1562 = vunpack.c.h.b16 %v878
        %v1563 = vunpack.c.l.b16 %v879
        %v1564 = vunpack.c.h.b16 %v879
        %v1565 = vunpack.c.l.b16 %v880
        %v1566 = vunpack.c.h.b16 %v880
        %v1567 = vunpack.c.l.b16 %v881
        %v1568 = vunpack.c.h.b16 %v881
        %v1569 = vunpack.c.l.b16 %v882
        %v1570 = vunpack.c.h.b16 %v882
        %v1571 = vunpack.c.l.b16 %v883
        %v1572 = vunpack.c.h.b16 %v883
        %v1573 = vunpack.c.l.b16 %v884
        %v1574 = vunpack.c.h.b16 %v884
        %v1575 = vunpack.c.l.b16 %v885
        %v1576 = vunpack.c.h.b16 %v885
        %v1577 = vunpack.c.l.b16 %v886
        %v1578 = vunpack.c.h.b16 %v886
        %v1579 = vunpack.c.l.b16 %v887
        %v1580 = vunpack.c.h.b16 %v887
        %v1581 = vunpack.c.l.b16 %v888
        %v1582 = vunpack.c.h.b16 %v888
        %v1583 = vunpack.c.l.b16 %v889
        %v1584 = vunpack.c.h.b16 %v889
        %v1585 = vunpack.c.l.b16 %v890
        %v1586 = vunpack.c.h.b16 %v890
        %v1587 = vunpack.c.l.b16 %v891
        %v1588 = vunpack.c.h.b16 %v891
        %v1589 = vunpack.c.l.b16 %v892
        %v1590 = vunpack.c.h.b16 %v892
        %v1591 = vunpack.c.l.b16 %v893
        %v1592 = vunpack.c.h.b16 %v893
        %v1593 = vunpack.c.l.b16 %v894
        %v1594 = vunpack.c.h.b16 %v894
        %v1595 = vunpack.c.l.b16 %v895
        %v1596 = vunpack.c.h.b16 %v895
        %v1597 = vunpack.c.l.b16 %v896
        %v1598 = vunpack.c.h.b16 %v896
        %v1599 = vunpack.c.l.b16 %v897
        %v1600 = vunpack.c.h.b16 %v897
        %v1601 = vunpack.c.l.b16 %v898
        %v1602 = vunpack.c.h.b16 %v898
        %v1603 = vunpack.c.l.b16 %v899
        %v1604 = vunpack.c.h.b16 %v899
        %v1605 = vunpack.c.l.b16 %v900
        %v1606 = vunpack.c.h.b16 %v900
        %v1607 = vunpack.c.l.b16 %v901
        %v1608 = vunpack.c.h.b16 %v901
        %v1609 = vunpack.c.l.b16 %v902
        %v1610 = vunpack.c.h.b16 %v902
        %v1611 = vunpack.c.l.b16 %v903
        %v1612 = vunpack.c.h.b16 %v903
        %v1613 = vunpack.c.l.b16 %v904
        %v1614 = vunpack.c.h.b16 %v904
        %v1615 = vunpack.c.l.b16 %v905
        %v1616 = vunpack.c.h.b16 %v905
        %v1617 = vunpack.c.l.b16 %v906
        %v1618 = vunpack.c.h.b16 %v906
        %v1619 = vunpack.c.l.b16 %v907
        %v1620 = vunpack.c.h.b16 %v907
        %v1621 = vunpack.c.l.b16 %v908
        %v1622 = vunpack.c.h.b16 %v908
        %v1623 = vunpack.c.l.b16 %v909
        %v1624 = vunpack.c.h.b16 %v909
        %v1625 = vunpack.c.l.b16 %v910
        %v1626 = vunpack.c.h.b16 %v910
        %v1627 = vunpack.c.l.b16 %v911
        %v1628 = vunpack.c.h.b16 %v911
        %v1629 = vunpack.c.l.b16 %v912
        %v1630 = vunpack.c.h.b16 %v912
        %v1631 = vunpack.c.l.b16 %v913
        %v1632 = vunpack.c.h.b16 %v913
        %v1633 = vunpack.c.l.b16 %v914
        %v1634 = vunpack.c.h.b16 %v914
        %v1635 = vunpack.c.l.b16 %v915
        %v1636 = vunpack.c.h.b16 %v915
        %v1637 = vunpack.c.l.b16 %v916
        %v1638 = vunpack.c.h.b16 %v916
        %v1639 = vunpack.c.l.b16 %v917
        %v1640 = vunpack.c.h.b16 %v917
        %v1641 = vunpack.c.l.b16 %v918
        %v1642 = vunpack.c.h.b16 %v918
        %v1643 = vunpack.c.l.b16 %v919
        %v1644 = vunpack.c.h.b16 %v919
        %v1645 = vunpack.c.l.b16 %v920
        %v1646 = vunpack.c.h.b16 %v920
        %v1647 = vunpack.c.l.b16 %v921
        %v1648 = vunpack.c.h.b16 %v921
        %v1649 = vunpack.c.l.b16 %v922
        %v1650 = vunpack.c.h.b16 %v922
        %v1651 = vunpack.c.l.b16 %v923
        %v1652 = vunpack.c.h.b16 %v923
        %v1653 = vunpack.c.l.b16 %v924
        %v1654 = vunpack.c.h.b16 %v924
        %v1655 = vunpack.c.l.b16 %v925
        %v1656 = vunpack.c.h.b16 %v925
        %v1657 = vunpack.c.l.b16 %v926
        %v1658 = vunpack.c.h.b16 %v926
        %v1659 = vunpack.c.l.b16 %v927
        %v1660 = vunpack.c.h.b16 %v927
        %v1661 = vunpack.c.l.b16 %v928
        %v1662 = vunpack.c.h.b16 %v928
        %v1663 = vunpack.c.l.b16 %v929
        %v1664 = vunpack.c.h.b16 %v929
        %v1665 = vunpack.c.l.b16 %v930
        %v1666 = vunpack.c.h.b16 %v930
        %v1667 = vunpack.c.l.b16 %v931
        %v1668 = vunpack.c.h.b16 %v931
        %v1669 = vunpack.c.l.b16 %v932
        %v1670 = vunpack.c.h.b16 %v932
        %v1671 = vunpack.c.l.b16 %v933
        %v1672 = vunpack.c.h.b16 %v933
        %v1673 = vunpack.c.l.b16 %v934
        %v1674 = vunpack.c.h.b16 %v934
        %v1675 = vunpack.c.l.b16 %v935
        %v1676 = vunpack.c.h.b16 %v935
        %v1677 = vunpack.c.l.b16 %v936
        %v1678 = vunpack.c.h.b16 %v936
        %v1679 = vunpack.c.l.b16 %v937
        %v1680 = vunpack.c.h.b16 %v937
        %v1681 = vunpack.c.l.b16 %v938
        %v1682 = vunpack.c.h.b16 %v938
        %v1683 = vunpack.c.l.b16 %v939
        %v1684 = vunpack.c.h.b16 %v939
        %v1685 = vunpack.c.l.b16 %v940
        %v1686 = vunpack.c.h.b16 %v940
        %v1687 = vunpack.c.l.b16 %v941
        %v1688 = vunpack.c.h.b16 %v941
        %v1689 = vunpack.c.l.b16 %v942
        %v1690 = vunpack.c.h.b16 %v942
        %v1691 = vunpack.c.l.b16 %v943
        %v1692 = vunpack.c.h.b16 %v943
        %v1693 = vunpack.c.l.b16 %v944
        %v1694 = vunpack.c.h.b16 %v944
        %v1695 = vunpack.c.l.b16 %v945
        %v1696 = vunpack.c.h.b16 %v945
        %v1697 = vunpack.c.l.b16 %v946
        %v1698 = vunpack.c.h.b16 %v946
        %v1699 = vunpack.c.l.b16 %v947
        %v1700 = vunpack.c.h.b16 %v947
        %v1701 = vunpack.c.l.b16 %v948
        %v1702 = vunpack.c.h.b16 %v948
        %v1703 = vunpack.c.l.b16 %v949
        %v1704 = vunpack.c.h.b16 %v949
        %v1705 = vunpack.c.l.b16 %v950
        %v1706 = vunpack.c.h.b16 %v950
        %v1707 = vunpack.c.l.b16 %v951
        %v1708 = vunpack.c.h.b16 %v951
        %v1709 = vunpack.c.l.b16 %v952
        %v1710 = vunpack.c.h.b16 %v952
        %v1711 = vunpack.c.l.b16 %v953
        %v1712 = vunpack.c.h.b16 %v953
        %v1713 = vunpack.c.l.b16 %v954
        %v1714 = vunpack.c.h.b16 %v954
        %v1715 = vunpack.c.l.b16 %v955
        %v1716 = vunpack.c.h.b16 %v955
        %v1717 = vunpack.c.l.b16 %v956
        %v1718 = vunpack.c.h.b16 %v956
        %v1719 = vunpack.c.l.b16 %v957
        %v1720 = vunpack.c.h.b16 %v957
        %v1721 = vunpack.c.l.b16 %v958
        %v1722 = vunpack.c.h.b16 %v958
        %v1723 = vunpack.c.l.b16 %v959
        %v1724 = vunpack.c.h.b16 %v959
        %v1725 = vunpack.c.l.b16 %v960
        %v1726 = vunpack.c.h.b16 %v960
        %v1727 = vunpack.c.l.b16 %v961
        %v1728 = vunpack.c.h.b16 %v961
        %v1729 = vunpack.c.l.b16 %v962
        %v1730 = vunpack.c.h.b16 %v962
        %v1731 = vunpack.c.l.b16 %v963
        %v1732 = vunpack.c.h.b16 %v963
        %v1733 = vunpack.c.l.b16 %v964
        %v1734 = vunpack.c.h.b16 %v964
        %v1735 = vunpack.c.l.b16 %v965
        %v1736 = vunpack.c.h.b16 %v965
        %v1737 = vunpack.c.l.b16 %v966
        %v1738 = vunpack.c.h.b16 %v966
        %v1739 = vunpack.c.l.b16 %v967
        %v1740 = vunpack.c.h.b16 %v967
        %v1741 = vunpack.c.l.b16 %v968
        %v1742 = vunpack.c.h.b16 %v968
        %v1743 = vunpack.c.l.b16 %v969
        %v1744 = vunpack.c.h.b16 %v969
        %v1745 = vunpack.c.l.b16 %v970
        %v1746 = vunpack.c.h.b16 %v970
        %v1747 = vunpack.c.l.b16 %v971
        %v1748 = vunpack.c.h.b16 %v971
        %v1749 = vunpack.c.l.b16 %v972
        %v1750 = vunpack.c.h.b16 %v972
        %v1751 = vunpack.c.l.b16 %v973
        %v1752 = vunpack.c.h.b16 %v973
        %v1753 = vunpack.c.l.b16 %v974
        %v1754 = vunpack.c.h.b16 %v974
        %v1755 = vunpack.c.l.b16 %v975
        %v1756 = vunpack.c.h.b16 %v975
        %v1757 = vunpack.c.l.b16 %v976
        %v1758 = vunpack.c.h.b16 %v976
        %v1759 = vunpack.c.l.b16 %v977
        %v1760 = vunpack.c.h.b16 %v977
        %v1761 = vunpack.c.l.b16 %v978
        %v1762 = vunpack.c.h.b16 %v978
        %v1763 = vunpack.c.l.b16 %v979
        %v1764 = vunpack.c.h.b16 %v979
        %v1765 = vunpack.c.l.b16 %v980
        %v1766 = vunpack.c.h.b16 %v980
        %v1767 = vunpack.c.l.b16 %v981
        %v1768 = vunpack.c.h.b16 %v981
        %v1769 = vunpack.c.l.b16 %v982
        %v1770 = vunpack.c.h.b16 %v982
        %v1771 = vunpack.c.l.b16 %v983
        %v1772 = vunpack.c.h.b16 %v983
        %v1773 = vunpack.c.l.b16 %v984
        %v1774 = vunpack.c.h.b16 %v984
        %v1775 = vpack.c.b16 %v1267, %v1263
        %v1776 = vpack.c.b16 %v1268, %v1264
        %v1777 = vpack.c.b16 %v1269, %v1265
        %v1778 = vpack.c.b16 %v1270, %v1266
        %v1779 = vpack.c.b16 %v1275, %v1271
        %v1780 = vpack.c.b16 %v1276, %v1272
        %v1781 = vpack.c.b16 %v1277, %v1273
        %v1782 = vpack.c.b16 %v1278, %v1274
        %v1783 = vpack.c.b16 %v1283, %v1279
        %v1784 = vpack.c.b16 %v1284, %v1280
        %v1785 = vpack.c.b16 %v1285, %v1281
        %v1786 = vpack.c.b16 %v1286, %v1282
        %v1787 = vpack.c.b16 %v1291, %v1287
        %v1788 = vpack.c.b16 %v1292, %v1288
        %v1789 = vpack.c.b16 %v1293, %v1289
        %v1790 = vpack.c.b16 %v1294, %v1290
        %v1791 = vpack.c.b16 %v1299, %v1295
        %v1792 = vpack.c.b16 %v1300, %v1296
        %v1793 = vpack.c.b16 %v1301, %v1297
        %v1794 = vpack.c.b16 %v1302, %v1298
        %v1795 = vpack.c.b16 %v1307, %v1303
        %v1796 = vpack.c.b16 %v1308, %v1304
        %v1797 = vpack.c.b16 %v1309, %v1305
        %v1798 = vpack.c.b16 %v1310, %v1306
        %v1799 = vpack.c.b16 %v1315, %v1311
        %v1800 = vpack.c.b16 %v1316, %v1312
        %v1801 = vpack.c.b16 %v1317, %v1313
        %v1802 = vpack.c.b16 %v1318, %v1314
        %v1803 = vpack.c.b16 %v1323, %v1319
        %v1804 = vpack.c.b16 %v1324, %v1320
        %v1805 = vpack.c.b16 %v1325, %v1321
        %v1806 = vpack.c.b16 %v1326, %v1322
        %v1807 = vpack.c.b16 %v1331, %v1327
        %v1808 = vpack.c.b16 %v1332, %v1328
        %v1809 = vpack.c.b16 %v1333, %v1329
        %v1810 = vpack.c.b16 %v1334, %v1330
        %v1811 = vpack.c.b16 %v1339, %v1335
        %v1812 = vpack.c.b16 %v1340, %v1336
        %v1813 = vpack.c.b16 %v1341, %v1337
        %v1814 = vpack.c.b16 %v1342, %v1338
        %v1815 = vpack.c.b16 %v1347, %v1343
        %v1816 = vpack.c.b16 %v1348, %v1344
        %v1817 = vpack.c.b16 %v1349, %v1345
        %v1818 = vpack.c.b16 %v1350, %v1346
        %v1819 = vpack.c.b16 %v1355, %v1351
        %v1820 = vpack.c.b16 %v1356, %v1352
        %v1821 = vpack.c.b16 %v1357, %v1353
        %v1822 = vpack.c.b16 %v1358, %v1354
        %v1823 = vpack.c.b16 %v1363, %v1359
        %v1824 = vpack.c.b16 %v1364, %v1360
        %v1825 = vpack.c.b16 %v1365, %v1361
        %v1826 = vpack.c.b16 %v1366, %v1362
        %v1827 = vpack.c.b16 %v1371, %v1367
        %v1828 = vpack.c.b16 %v1372, %v1368
        %v1829 = vpack.c.b16 %v1373, %v1369
        %v1830 = vpack.c.b16 %v1374, %v1370
        %v1831 = vpack.c.b16 %v1379, %v1375
        %v1832 = vpack.c.b16 %v1380, %v1376
        %v1833 = vpack.c.b16 %v1381, %v1377
        %v1834 = vpack.c.b16 %v1382, %v1378
        %v1835 = vpack.c.b16 %v1387, %v1383
        %v1836 = vpack.c.b16 %v1388, %v1384
        %v1837 = vpack.c.b16 %v1389, %v1385
        %v1838 = vpack.c.b16 %v1390, %v1386
        %v1839 = vpack.c.b16 %v1395, %v1391
        %v1840 = vpack.c.b16 %v1396, %v1392
        %v1841 = vpack.c.b16 %v1397, %v1393
        %v1842 = vpack.c.b16 %v1398, %v1394
        %v1843 = vpack.c.b16 %v1403, %v1399
        %v1844 = vpack.c.b16 %v1404, %v1400
        %v1845 = vpack.c.b16 %v1405, %v1401
        %v1846 = vpack.c.b16 %v1406, %v1402
        %v1847 = vpack.c.b16 %v1411, %v1407
        %v1848 = vpack.c.b16 %v1412, %v1408
        %v1849 = vpack.c.b16 %v1413, %v1409
        %v1850 = vpack.c.b16 %v1414, %v1410
        %v1851 = vpack.c.b16 %v1419, %v1415
        %v1852 = vpack.c.b16 %v1420, %v1416
        %v1853 = vpack.c.b16 %v1421, %v1417
        %v1854 = vpack.c.b16 %v1422, %v1418
        %v1855 = vpack.c.b16 %v1427, %v1423
        %v1856 = vpack.c.b16 %v1428, %v1424
        %v1857 = vpack.c.b16 %v1429, %v1425
        %v1858 = vpack.c.b16 %v1430, %v1426
        %v1859 = vpack.c.b16 %v1435, %v1431
        %v1860 = vpack.c.b16 %v1436, %v1432
        %v1861 = vpack.c.b16 %v1437, %v1433
        %v1862 = vpack.c.b16 %v1438, %v1434
        %v1863 = vpack.c.b16 %v1443, %v1439
        %v1864 = vpack.c.b16 %v1444, %v1440
        %v1865 = vpack.c.b16 %v1445, %v1441
        %v1866 = vpack.c.b16 %v1446, %v1442
        %v1867 = vpack.c.b16 %v1451, %v1447
        %v1868 = vpack.c.b16 %v1452, %v1448
        %v1869 = vpack.c.b16 %v1453, %v1449
        %v1870 = vpack.c.b16 %v1454, %v1450
        %v1871 = vpack.c.b16 %v1459, %v1455
        %v1872 = vpack.c.b16 %v1460, %v1456
        %v1873 = vpack.c.b16 %v1461, %v1457
        %v1874 = vpack.c.b16 %v1462, %v1458
        %v1875 = vpack.c.b16 %v1467, %v1463
        %v1876 = vpack.c.b16 %v1468, %v1464
        %v1877 = vpack.c.b16 %v1469, %v1465
        %v1878 = vpack.c.b16 %v1470, %v1466
        %v1879 = vpack.c.b16 %v1475, %v1471
        %v1880 = vpack.c.b16 %v1476, %v1472
        %v1881 = vpack.c.b16 %v1477, %v1473
        %v1882 = vpack.c.b16 %v1478, %v1474
        %v1883 = vpack.c.b16 %v1483, %v1479
        %v1884 = vpack.c.b16 %v1484, %v1480
        %v1885 = vpack.c.b16 %v1485, %v1481
        %v1886 = vpack.c.b16 %v1486, %v1482
        %v1887 = vpack.c.b16 %v1491, %v1487
        %v1888 = vpack.c.b16 %v1492, %v1488
        %v1889 = vpack.c.b16 %v1493, %v1489
        %v1890 = vpack.c.b16 %v1494, %v1490
        %v1891 = vpack.c.b16 %v1499, %v1495
        %v1892 = vpack.c.b16 %v1500, %v1496
        %v1893 = vpack.c.b16 %v1501, %v1497
        %v1894 = vpack.c.b16 %v1502, %v1498
        %v1895 = vpack.c.b16 %v1507, %v1503
        %v1896 = vpack.c.b16 %v1508, %v1504
        %v1897 = vpack.c.b16 %v1509, %v1505
        %v1898 = vpack.c.b16 %v1510, %v1506
        %v1899 = vpack.c.b16 %v1515, %v1511
        %v1900 = vpack.c.b16 %v1516, %v1512
        %v1901 = vpack.c.b16 %v1517, %v1513
        %v1902 = vpack.c.b16 %v1518, %v1514
        %v1903 = vpack.c.b16 %v1523, %v1519
        %v1904 = vpack.c.b16 %v1524, %v1520
        %v1905 = vpack.c.b16 %v1525, %v1521
        %v1906 = vpack.c.b16 %v1526, %v1522
        %v1907 = vpack.c.b16 %v1531, %v1527
        %v1908 = vpack.c.b16 %v1532, %v1528
        %v1909 = vpack.c.b16 %v1533, %v1529
        %v1910 = vpack.c.b16 %v1534, %v1530
        %v1911 = vpack.c.b16 %v1539, %v1535
        %v1912 = vpack.c.b16 %v1540, %v1536
        %v1913 = vpack.c.b16 %v1541, %v1537
        %v1914 = vpack.c.b16 %v1542, %v1538
        %v1915 = vpack.c.b16 %v1547, %v1543
        %v1916 = vpack.c.b16 %v1548, %v1544
        %v1917 = vpack.c.b16 %v1549, %v1545
        %v1918 = vpack.c.b16 %v1550, %v1546
        %v1919 = vpack.c.b16 %v1555, %v1551
        %v1920 = vpack.c.b16 %v1556, %v1552
        %v1921 = vpack.c.b16 %v1557, %v1553
        %v1922 = vpack.c.b16 %v1558, %v1554
        %v1923 = vpack.c.b16 %v1563, %v1559
        %v1924 = vpack.c.b16 %v1564, %v1560
        %v1925 = vpack.c.b16 %v1565, %v1561
        %v1926 = vpack.c.b16 %v1566, %v1562
        %v1927 = vpack.c.b16 %v1571, %v1567
        %v1928 = vpack.c.b16 %v1572, %v1568
        %v1929 = vpack.c.b16 %v1573, %v1569
        %v1930 = vpack.c.b16 %v1574, %v1570
        %v1931 = vpack.c.b16 %v1579, %v1575
        %v1932 = vpack.c.b16 %v1580, %v1576
        %v1933 = vpack.c.b16 %v1581, %v1577
        %v1934 = vpack.c.b16 %v1582, %v1578
        %v1935 = vpack.c.b16 %v1587, %v1583
        %v1936 = vpack.c.b16 %v1588, %v1584
        %v1937 = vpack.c.b16 %v1589, %v1585
        %v1938 = vpack.c.b16 %v1590, %v1586
        %v1939 = vpack.c.b16 %v1595, %v1591
        %v1940 = vpack.c.b16 %v1596, %v1592
        %v1941 = vpack.c.b16 %v1597, %v1593
        %v1942 = vpack.c.b16 %v1598, %v1594
        %v1943 = vpack.c.b16 %v1603, %v1599
        %v1944 = vpack.c.b16 %v1604, %v1600
        %v1945 = vpack.c.b16 %v1605, %v1601
        %v1946 = vpack.c.b16 %v1606, %v1602
        %v1947 = vpack.c.b16 %v1611, %v1607
        %v1948 = vpack.c.b16 %v1612, %v1608
        %v1949 = vpack.c.b16 %v1613, %v1609
        %v1950 = vpack.c.b16 %v1614, %v1610
        %v1951 = vpack.c.b16 %v1619, %v1615
        %v1952 = vpack.c.b16 %v1620, %v1616
        %v1953 = vpack.c.b16 %v1621, %v1617
        %v1954 = vpack.c.b16 %v1622, %v1618
        %v1955 = vpack.c.b16 %v1627, %v1623
        %v1956 = vpack.c.b16 %v1628, %v1624
        %v1957 = vpack.c.b16 %v1629, %v1625
        %v1958 = vpack.c.b16 %v1630, %v1626
        %v1959 = vpack.c.b16 %v1635, %v1631
        %v1960 = vpack.c.b16 %v1636, %v1632
        %v1961 = vpack.c.b16 %v1637, %v1633
        %v1962 = vpack.c.b16 %v1638, %v1634
        %v1963 = vpack.c.b16 %v1643, %v1639
        %v1964 = vpack.c.b16 %v1644, %v1640
        %v1965 = vpack.c.b16 %v1645, %v1641
        %v1966 = vpack.c.b16 %v1646, %v1642
        %v1967 = vpack.c.b16 %v1651, %v1647
        %v1968 = vpack.c.b16 %v1652, %v1648
        %v1969 = vpack.c.b16 %v1653, %v1649
        %v1970 = vpack.c.b16 %v1654, %v1650
        %v1971 = vpack.c.b16 %v1659, %v1655
        %v1972 = vpack.c.b16 %v1660, %v1656
        %v1973 = vpack.c.b16 %v1661, %v1657
        %v1974 = vpack.c.b16 %v1662, %v1658
        %v1975 = vpack.c.b16 %v1667, %v1663
        %v1976 = vpack.c.b16 %v1668, %v1664
        %v1977 = vpack.c.b16 %v1669, %v1665
        %v1978 = vpack.c.b16 %v1670, %v1666
        %v1979 = vpack.c.b16 %v1675, %v1671
        %v1980 = vpack.c.b16 %v1676, %v1672
        %v1981 = vpack.c.b16 %v1677, %v1673
        %v1982 = vpack.c.b16 %v1678, %v1674
        %v1983 = vpack.c.b16 %v1683, %v1679
        %v1984 = vpack.c.b16 %v1684, %v1680
        %v1985 = vpack.c.b16 %v1685, %v1681
        %v1986 = vpack.c.b16 %v1686, %v1682
        %v1987 = vpack.c.b16 %v1691, %v1687
        %v1988 = vpack.c.b16 %v1692, %v1688
        %v1989 = vpack.c.b16 %v1693, %v1689
        %v1990 = vpack.c.b16 %v1694, %v1690
        %v1991 = vpack.c.b16 %v1699, %v1695
        %v1992 = vpack.c.b16 %v1700, %v1696
        %v1993 = vpack.c.b16 %v1701, %v1697
        %v1994 = vpack.c.b16 %v1702, %v1698
        %v1995 = vpack.c.b16 %v1707, %v1703
        %v1996 = vpack.c.b16 %v1708, %v1704
        %v1997 = vpack.c.b16 %v1709, %v1705
        %v1998 = vpack.c.b16 %v1710, %v1706
        %v1999 = vpack.c.b16 %v1715, %v1711
        %v2000 = vpack.c.b16 %v1716, %v1712
        %v2001 = vpack.c.b16 %v1717, %v1713
        %v2002 = vpack.c.b16 %v1718, %v1714
        %v2003 = vpack.c.b16 %v1723, %v1719
        %v2004 = vpack.c.b16 %v1724, %v1720
        %v2005 = vpack.c.b16 %v1725, %v1721
        %v2006 = vpack.c.b16 %v1726, %v1722
        %v2007 = vpack.c.b16 %v1731, %v1727
        %v2008 = vpack.c.b16 %v1732, %v1728
        %v2009 = vpack.c.b16 %v1733, %v1729
        %v2010 = vpack.c.b16 %v1734, %v1730
        %v2011 = vpack.c.b16 %v1739, %v1735
        %v2012 = vpack.c.b16 %v1740, %v1736
        %v2013 = vpack.c.b16 %v1741, %v1737
        %v2014 = vpack.c.b16 %v1742, %v1738
        %v2015 = vpack.c.b16 %v1747, %v1743
        %v2016 = vpack.c.b16 %v1748, %v1744
        %v2017 = vpack.c.b16 %v1749, %v1745
        %v2018 = vpack.c.b16 %v1750, %v1746
        %v2019 = vpack.c.b16 %v1755, %v1751
        %v2020 = vpack.c.b16 %v1756, %v1752
        %v2021 = vpack.c.b16 %v1757, %v1753
        %v2022 = vpack.c.b16 %v1758, %v1754
        %v2023 = vpack.c.b16 %v1763, %v1759
        %v2024 = vpack.c.b16 %v1764, %v1760
        %v2025 = vpack.c.b16 %v1765, %v1761
        %v2026 = vpack.c.b16 %v1766, %v1762
        %v2027 = vpack.c.b16 %v1771, %v1767
        %v2028 = vpack.c.b16 %v1772, %v1768
        %v2029 = vpack.c.b16 %v1773, %v1769
        %v2030 = vpack.c.b16 %v1774, %v1770
        %2287 = vmatprep.subr.bf16.mxu0 %v1776
        %2288 = vmatpush1.bf16.msra.mxu0 %v1775
        %2289 = vmatprep.subr.bf16.mxu0 %v1780
        %2290 = vmatpush1.bf16.msra.mxu0 %v1779
        %2291 = vmatprep.subr.bf16.mxu0 %v1784
        %2292 = vmatpush1.bf16.msra.mxu0 %v1783
        %2293 = vmatprep.subr.bf16.mxu0 %v1788
        %2294 = vmatpush1.bf16.msra.mxu0 %v1787
        %2295 = vmatprep.subr.bf16.mxu0 %v1792
        %2296 = vmatpush1.bf16.msra.mxu0 %v1791
        %2297 = vmatprep.subr.bf16.mxu0 %v1796
        %2298 = vmatpush1.bf16.msra.mxu0 %v1795
        %2299 = vmatprep.subr.bf16.mxu0 %v1800
        %2300 = vmatpush1.bf16.msra.mxu0 %v1799
        %2301 = vmatprep.subr.bf16.mxu0 %v1804
        %2302 = vmatpush1.bf16.msra.mxu0 %v1803
        %2303 = vmatprep.subr.bf16.mxu0 %v1808
        %2304 = vmatpush1.bf16.msra.mxu0 %v1807
        %2305 = vmatprep.subr.bf16.mxu0 %v1812
        %2306 = vmatpush1.bf16.msra.mxu0 %v1811
        %2307 = vmatprep.subr.bf16.mxu0 %v1816
        %2308 = vmatpush1.bf16.msra.mxu0 %v1815
        %2309 = vmatprep.subr.bf16.mxu0 %v1820
        %2310 = vmatpush1.bf16.msra.mxu0 %v1819
        %2311 = vmatprep.subr.bf16.mxu0 %v1824
        %2312 = vmatpush1.bf16.msra.mxu0 %v1823
        %2313 = vmatprep.subr.bf16.mxu0 %v1828
        %2314 = vmatpush1.bf16.msra.mxu0 %v1827
        %2315 = vmatprep.subr.bf16.mxu0 %v1832
        %2316 = vmatpush1.bf16.msra.mxu0 %v1831
        %2317 = vmatprep.subr.bf16.mxu0 %v1836
        %2318 = vmatpush1.bf16.msra.mxu0 %v1835
        %2319 = vmatprep.mubr.bf16.mxu0 %v602
        %2320 = vmatmul.mubr.bf16.gmra.mrb[0].mxu0 %v601
        %v2321 = vpop.f32.mrb[0].mxu0
        %v2322 = vadd.f32 %v990, %v2321
        %v2323 = vpop.f32.mrb[0].mxu0
        %v2324 = vadd.f32 %v994, %v2323
        %v2325 = vpop.f32.mrb[0].mxu0
        %v2326 = vadd.f32 %v990, %v2325
        %v2327 = vpop.f32.mrb[0].mxu0
        %v2328 = vadd.f32 %v994, %v2327
        %2329 = vmatprep.mubr.bf16.mxu0 %v610
        %2330 = vmatmul.mubr.bf16.gmra.mrb[0].mxu0 %v609
        %v2331 = vpop.f32.mrb[0].mxu0
        %v2332 = vadd.f32 %v990, %v2331
        %v2333 = vpop.f32.mrb[0].mxu0
        %v2334 = vadd.f32 %v994, %v2333
        %v2335 = vpop.f32.mrb[0].mxu0
        %v2336 = vadd.f32 %v990, %v2335
        %v2337 = vpop.f32.mrb[0].mxu0
        %v2338 = vadd.f32 %v994, %v2337
        %2339 = vmatprep.mubr.bf16.mxu0 %v618
        %2340 = vmatmul.mubr.bf16.gmra.mrb[0].mxu0 %v617
        %v2341 = vpop.f32.mrb[0].mxu0
        %v2342 = vadd.f32 %v990, %v2341
        %v2343 = vpop.f32.mrb[0].mxu0
        %v2344 = vadd.f32 %v994, %v2343
        %v2345 = vpop.f32.mrb[0].mxu0
        %v2346 = vadd.f32 %v990, %v2345
        %v2347 = vpop.f32.mrb[0].mxu0
        %v2348 = vadd.f32 %v994, %v2347
        %2349 = vmatprep.mubr.bf16.mxu0 %v626
        %2350 = vmatmul.mubr.bf16.gmra.mrb[0].mxu0 %v625
        %v2351 = vpop.f32.mrb[0].mxu0
        %v2352 = vadd.f32 %v990, %v2351
        %v2353 = vpop.f32.mrb[0].mxu0
        %v2354 = vadd.f32 %v994, %v2353
        %v2355 = vpop.f32.mrb[0].mxu0
        %v2356 = vadd.f32 %v990, %v2355
        %v2357 = vpop.f32.mrb[0].mxu0
        %v2358 = vadd.f32 %v994, %v2357
        %2359 = vmatprep.mubr.bf16.mxu0 %v634
        %2360 = vmatmul.mubr.bf16.gmra.mrb[0].mxu0 %v633
        %v2361 = vpop.f32.mrb[0].mxu0
        %v2362 = vadd.f32 %v990, %v2361
        %v2363 = vpop.f32.mrb[0].mxu0
        %v2364 = vadd.f32 %v994, %v2363
        %v2365 = vpop.f32.mrb[0].mxu0
        %v2366 = vadd.f32 %v990, %v2365
        %v2367 = vpop.f32.mrb[0].mxu0
        %v2368 = vadd.f32 %v994, %v2367
        %2369 = vmatprep.mubr.bf16.mxu0 %v642
        %2370 = vmatmul.mubr.bf16.gmra.mrb[0].mxu0 %v641
        %v2371 = vpop.f32.mrb[0].mxu0
        %v2372 = vadd.f32 %v990, %v2371
        %v2373 = vpop.f32.mrb[0].mxu0
        %v2374 = vadd.f32 %v994, %v2373
        %v2375 = vpop.f32.mrb[0].mxu0
        %v2376 = vadd.f32 %v990, %v2375
        %v2377 = vpop.f32.mrb[0].mxu0
        %v2378 = vadd.f32 %v994, %v2377
        %2379 = vmatprep.mubr.bf16.mxu0 %v650
        %2380 = vmatmul.mubr.bf16.gmra.mrb[0].mxu0 %v649
        %v2381 = vpop.f32.mrb[0].mxu0
        %v2382 = vadd.f32 %v990, %v2381
        %v2383 = vpop.f32.mrb[0].mxu0
        %v2384 = vadd.f32 %v994, %v2383
        %v2385 = vpop.f32.mrb[0].mxu0
        %v2386 = vadd.f32 %v990, %v2385
        %v2387 = vpop.f32.mrb[0].mxu0
        %v2388 = vadd.f32 %v994, %v2387
        %2389 = vmatprep.mubr.bf16.mxu0 %v658
        %2390 = vmatmul.mubr.bf16.gmra.mrb[0].mxu0 %v657
        %v2391 = vpop.f32.mrb[0].mxu0
        %v2392 = vadd.f32 %v990, %v2391
        %v2393 = vpop.f32.mrb[0].mxu0
        %v2394 = vadd.f32 %v994, %v2393
        %v2395 = vpop.f32.mrb[0].mxu0
        %v2396 = vadd.f32 %v990, %v2395
        %v2397 = vpop.f32.mrb[0].mxu0
        %v2398 = vadd.f32 %v994, %v2397
        %2399 = vmatprep.mubr.bf16.mxu0 %v666
        %2400 = vmatmul.mubr.bf16.gmra.mrb[0].mxu0 %v665
        %v2401 = vpop.f32.mrb[0].mxu0
        %v2402 = vadd.f32 %v990, %v2401
        %v2403 = vpop.f32.mrb[0].mxu0
        %v2404 = vadd.f32 %v994, %v2403
        %v2405 = vpop.f32.mrb[0].mxu0
        %v2406 = vadd.f32 %v990, %v2405
        %v2407 = vpop.f32.mrb[0].mxu0
        %v2408 = vadd.f32 %v994, %v2407
        %2409 = vmatprep.mubr.bf16.mxu0 %v674
        %2410 = vmatmul.mubr.bf16.gmra.mrb[0].mxu0 %v673
        %v2411 = vpop.f32.mrb[0].mxu0
        %v2412 = vadd.f32 %v990, %v2411
        %v2413 = vpop.f32.mrb[0].mxu0
        %v2414 = vadd.f32 %v994, %v2413
        %v2415 = vpop.f32.mrb[0].mxu0
        %v2416 = vadd.f32 %v990, %v2415
        %v2417 = vpop.f32.mrb[0].mxu0
        %v2418 = vadd.f32 %v994, %v2417
        %2419 = vmatprep.mubr.bf16.mxu0 %v682
        %2420 = vmatmul.mubr.bf16.gmra.mrb[0].mxu0 %v681
        %v2421 = vpop.f32.mrb[0].mxu0
        %v2422 = vadd.f32 %v990, %v2421
        %v2423 = vpop.f32.mrb[0].mxu0
        %v2424 = vadd.f32 %v994, %v2423
        %v2425 = vpop.f32.mrb[0].mxu0
        %v2426 = vadd.f32 %v990, %v2425
        %v2427 = vpop.f32.mrb[0].mxu0
        %v2428 = vadd.f32 %v994, %v2427
        %2429 = vmatprep.mubr.bf16.mxu0 %v690
        %2430 = vmatmul.mubr.bf16.gmra.mrb[0].mxu0 %v689
        %v2431 = vpop.f32.mrb[0].mxu0
        %v2432 = vadd.f32 %v990, %v2431
        %v2433 = vpop.f32.mrb[0].mxu0
        %v2434 = vadd.f32 %v994, %v2433
        %v2435 = vpop.f32.mrb[0].mxu0
        %v2436 = vadd.f32 %v990, %v2435
        %v2437 = vpop.f32.mrb[0].mxu0
        %v2438 = vadd.f32 %v994, %v2437
        %2439 = vmatprep.mubr.bf16.mxu0 %v698
        %2440 = vmatmul.mubr.bf16.gmra.mrb[0].mxu0 %v697
        %v2441 = vpop.f32.mrb[0].mxu0
        %v2442 = vadd.f32 %v990, %v2441
        %v2443 = vpop.f32.mrb[0].mxu0
        %v2444 = vadd.f32 %v994, %v2443
        %v2445 = vpop.f32.mrb[0].mxu0
        %v2446 = vadd.f32 %v990, %v2445
        %v2447 = vpop.f32.mrb[0].mxu0
        %v2448 = vadd.f32 %v994, %v2447
        %2449 = vmatprep.mubr.bf16.mxu0 %v706
        %2450 = vmatmul.mubr.bf16.gmra.mrb[0].mxu0 %v705
        %v2451 = vpop.f32.mrb[0].mxu0
        %v2452 = vadd.f32 %v990, %v2451
        %v2453 = vpop.f32.mrb[0].mxu0
        %v2454 = vadd.f32 %v994, %v2453
        %v2455 = vpop.f32.mrb[0].mxu0
        %v2456 = vadd.f32 %v990, %v2455
        %v2457 = vpop.f32.mrb[0].mxu0
        %v2458 = vadd.f32 %v994, %v2457
        %2459 = vmatprep.mubr.bf16.mxu0 %v714
        %2460 = vmatmul.mubr.bf16.gmra.mrb[0].mxu0 %v713
        %v2461 = vpop.f32.mrb[0].mxu0
        %v2462 = vadd.f32 %v990, %v2461
        %v2463 = vpop.f32.mrb[0].mxu0
        %v2464 = vadd.f32 %v994, %v2463
        %v2465 = vpop.f32.mrb[0].mxu0
        %v2466 = vadd.f32 %v990, %v2465
        %v2467 = vpop.f32.mrb[0].mxu0
        %v2468 = vadd.f32 %v994, %v2467
        %2469 = vmatprep.mubr.bf16.mxu0 %v722
        %2470 = vmatmul.mubr.bf16.gmra.mrb[0].mxu0 %v721
        %v2471 = vpop.f32.mrb[0].mxu0
        %v2472 = vadd.f32 %v990, %v2471
        %v2473 = vpop.f32.mrb[0].mxu0
        %v2474 = vadd.f32 %v994, %v2473
        %v2475 = vpop.f32.mrb[0].mxu0
        %v2476 = vadd.f32 %v990, %v2475
        %v2477 = vpop.f32.mrb[0].mxu0
        %v2478 = vadd.f32 %v994, %v2477
        %2479 = vdwg.mxu0
        %2480 = vmatprep.subr.bf16.mxu0 %v1840
        %2481 = vmatpush1.bf16.msra.mxu0 %v1839
        %2482 = vmatprep.subr.bf16.mxu0 %v1844
        %2483 = vmatpush1.bf16.msra.mxu0 %v1843
        %2484 = vmatprep.subr.bf16.mxu0 %v1848
        %2485 = vmatpush1.bf16.msra.mxu0 %v1847
        %2486 = vmatprep.subr.bf16.mxu0 %v1852
        %2487 = vmatpush1.bf16.msra.mxu0 %v1851
        %2488 = vmatprep.subr.bf16.mxu0 %v1856
        %2489 = vmatpush1.bf16.msra.mxu0 %v1855
        %2490 = vmatprep.subr.bf16.mxu0 %v1860
        %2491 = vmatpush1.bf16.msra.mxu0 %v1859
        %2492 = vmatprep.subr.bf16.mxu0 %v1864
        %2493 = vmatpush1.bf16.msra.mxu0 %v1863
        %2494 = vmatprep.subr.bf16.mxu0 %v1868
        %2495 = vmatpush1.bf16.msra.mxu0 %v1867
        %2496 = vmatprep.subr.bf16.mxu0 %v1872
        %2497 = vmatpush1.bf16.msra.mxu0 %v1871
        %2498 = vmatprep.subr.bf16.mxu0 %v1876
        %2499 = vmatpush1.bf16.msra.mxu0 %v1875
        %2500 = vmatprep.subr.bf16.mxu0 %v1880
        %2501 = vmatpush1.bf16.msra.mxu0 %v1879
        %2502 = vmatprep.subr.bf16.mxu0 %v1884
        %2503 = vmatpush1.bf16.msra.mxu0 %v1883
        %2504 = vmatprep.subr.bf16.mxu0 %v1888
        %2505 = vmatpush1.bf16.msra.mxu0 %v1887
        %2506 = vmatprep.subr.bf16.mxu0 %v1892
        %2507 = vmatpush1.bf16.msra.mxu0 %v1891
        %2508 = vmatprep.subr.bf16.mxu0 %v1896
        %2509 = vmatpush1.bf16.msra.mxu0 %v1895
        %2510 = vmatprep.subr.bf16.mxu0 %v1900
        %2511 = vmatpush1.bf16.msra.mxu0 %v1899
        %2512 = vmatprep.mubr.bf16.mxu0 %v604
        %2513 = vmatmul.mubr.bf16.gmra.mrb[0].mxu0 %v603
        %v2514 = vpop.f32.mrb[0].mxu0
        %v2515 = vadd.f32 %v2322, %v2514
        %v2516 = vpop.f32.mrb[0].mxu0
        %v2517 = vadd.f32 %v2324, %v2516
        %v2518 = vpop.f32.mrb[0].mxu0
        %v2519 = vadd.f32 %v2326, %v2518
        %v2520 = vpop.f32.mrb[0].mxu0
        %v2521 = vadd.f32 %v2328, %v2520
        %2522 = vmatprep.mubr.bf16.mxu0 %v612
        %2523 = vmatmul.mubr.bf16.gmra.mrb[0].mxu0 %v611
        %v2524 = vpop.f32.mrb[0].mxu0
        %v2525 = vadd.f32 %v2332, %v2524
        %v2526 = vpop.f32.mrb[0].mxu0
        %v2527 = vadd.f32 %v2334, %v2526
        %v2528 = vpop.f32.mrb[0].mxu0
        %v2529 = vadd.f32 %v2336, %v2528
        %v2530 = vpop.f32.mrb[0].mxu0
        %v2531 = vadd.f32 %v2338, %v2530
        %2532 = vmatprep.mubr.bf16.mxu0 %v620
        %2533 = vmatmul.mubr.bf16.gmra.mrb[0].mxu0 %v619
        %v2534 = vpop.f32.mrb[0].mxu0
        %v2535 = vadd.f32 %v2342, %v2534
        %v2536 = vpop.f32.mrb[0].mxu0
        %v2537 = vadd.f32 %v2344, %v2536
        %v2538 = vpop.f32.mrb[0].mxu0
        %v2539 = vadd.f32 %v2346, %v2538
        %v2540 = vpop.f32.mrb[0].mxu0
        %v2541 = vadd.f32 %v2348, %v2540
        %2542 = vmatprep.mubr.bf16.mxu0 %v628
        %2543 = vmatmul.mubr.bf16.gmra.mrb[0].mxu0 %v627
        %v2544 = vpop.f32.mrb[0].mxu0
        %v2545 = vadd.f32 %v2352, %v2544
        %v2546 = vpop.f32.mrb[0].mxu0
        %v2547 = vadd.f32 %v2354, %v2546
        %v2548 = vpop.f32.mrb[0].mxu0
        %v2549 = vadd.f32 %v2356, %v2548
        %v2550 = vpop.f32.mrb[0].mxu0
        %v2551 = vadd.f32 %v2358, %v2550
        %2552 = vmatprep.mubr.bf16.mxu0 %v636
        %2553 = vmatmul.mubr.bf16.gmra.mrb[0].mxu0 %v635
        %v2554 = vpop.f32.mrb[0].mxu0
        %v2555 = vadd.f32 %v2362, %v2554
        %v2556 = vpop.f32.mrb[0].mxu0
        %v2557 = vadd.f32 %v2364, %v2556
        %v2558 = vpop.f32.mrb[0].mxu0
        %v2559 = vadd.f32 %v2366, %v2558
        %v2560 = vpop.f32.mrb[0].mxu0
        %v2561 = vadd.f32 %v2368, %v2560
        %2562 = vmatprep.mubr.bf16.mxu0 %v644
        %2563 = vmatmul.mubr.bf16.gmra.mrb[0].mxu0 %v643
        %v2564 = vpop.f32.mrb[0].mxu0
        %v2565 = vadd.f32 %v2372, %v2564
        %v2566 = vpop.f32.mrb[0].mxu0
        %v2567 = vadd.f32 %v2374, %v2566
        %v2568 = vpop.f32.mrb[0].mxu0
        %v2569 = vadd.f32 %v2376, %v2568
        %v2570 = vpop.f32.mrb[0].mxu0
        %v2571 = vadd.f32 %v2378, %v2570
        %2572 = vmatprep.mubr.bf16.mxu0 %v652
        %2573 = vmatmul.mubr.bf16.gmra.mrb[0].mxu0 %v651
        %v2574 = vpop.f32.mrb[0].mxu0
        %v2575 = vadd.f32 %v2382, %v2574
        %v2576 = vpop.f32.mrb[0].mxu0
        %v2577 = vadd.f32 %v2384, %v2576
        %v2578 = vpop.f32.mrb[0].mxu0
        %v2579 = vadd.f32 %v2386, %v2578
        %v2580 = vpop.f32.mrb[0].mxu0
        %v2581 = vadd.f32 %v2388, %v2580
        %2582 = vmatprep.mubr.bf16.mxu0 %v660
        %2583 = vmatmul.mubr.bf16.gmra.mrb[0].mxu0 %v659
        %v2584 = vpop.f32.mrb[0].mxu0
        %v2585 = vadd.f32 %v2392, %v2584
        %v2586 = vpop.f32.mrb[0].mxu0
        %v2587 = vadd.f32 %v2394, %v2586
        %v2588 = vpop.f32.mrb[0].mxu0
        %v2589 = vadd.f32 %v2396, %v2588
        %v2590 = vpop.f32.mrb[0].mxu0
        %v2591 = vadd.f32 %v2398, %v2590
        %2592 = vmatprep.mubr.bf16.mxu0 %v668
        %2593 = vmatmul.mubr.bf16.gmra.mrb[0].mxu0 %v667
        %v2594 = vpop.f32.mrb[0].mxu0
        %v2595 = vadd.f32 %v2402, %v2594
        %v2596 = vpop.f32.mrb[0].mxu0
        %v2597 = vadd.f32 %v2404, %v2596
        %v2598 = vpop.f32.mrb[0].mxu0
        %v2599 = vadd.f32 %v2406, %v2598
        %v2600 = vpop.f32.mrb[0].mxu0
        %v2601 = vadd.f32 %v2408, %v2600
        %2602 = vmatprep.mubr.bf16.mxu0 %v676
        %2603 = vmatmul.mubr.bf16.gmra.mrb[0].mxu0 %v675
        %v2604 = vpop.f32.mrb[0].mxu0
        %v2605 = vadd.f32 %v2412, %v2604
        %v2606 = vpop.f32.mrb[0].mxu0
        %v2607 = vadd.f32 %v2414, %v2606
        %v2608 = vpop.f32.mrb[0].mxu0
        %v2609 = vadd.f32 %v2416, %v2608
        %v2610 = vpop.f32.mrb[0].mxu0
        %v2611 = vadd.f32 %v2418, %v2610
        %2612 = vmatprep.mubr.bf16.mxu0 %v684
        %2613 = vmatmul.mubr.bf16.gmra.mrb[0].mxu0 %v683
        %v2614 = vpop.f32.mrb[0].mxu0
        %v2615 = vadd.f32 %v2422, %v2614
        %v2616 = vpop.f32.mrb[0].mxu0
        %v2617 = vadd.f32 %v2424, %v2616
        %v2618 = vpop.f32.mrb[0].mxu0
        %v2619 = vadd.f32 %v2426, %v2618
        %v2620 = vpop.f32.mrb[0].mxu0
        %v2621 = vadd.f32 %v2428, %v2620
        %2622 = vmatprep.mubr.bf16.mxu0 %v692
        %2623 = vmatmul.mubr.bf16.gmra.mrb[0].mxu0 %v691
        %v2624 = vpop.f32.mrb[0].mxu0
        %v2625 = vadd.f32 %v2432, %v2624
        %v2626 = vpop.f32.mrb[0].mxu0
        %v2627 = vadd.f32 %v2434, %v2626
        %v2628 = vpop.f32.mrb[0].mxu0
        %v2629 = vadd.f32 %v2436, %v2628
        %v2630 = vpop.f32.mrb[0].mxu0
        %v2631 = vadd.f32 %v2438, %v2630
        %2632 = vmatprep.mubr.bf16.mxu0 %v700
        %2633 = vmatmul.mubr.bf16.gmra.mrb[0].mxu0 %v699
        %v2634 = vpop.f32.mrb[0].mxu0
        %v2635 = vadd.f32 %v2442, %v2634
        %v2636 = vpop.f32.mrb[0].mxu0
        %v2637 = vadd.f32 %v2444, %v2636
        %v2638 = vpop.f32.mrb[0].mxu0
        %v2639 = vadd.f32 %v2446, %v2638
        %v2640 = vpop.f32.mrb[0].mxu0
        %v2641 = vadd.f32 %v2448, %v2640
        %2642 = vmatprep.mubr.bf16.mxu0 %v708
        %2643 = vmatmul.mubr.bf16.gmra.mrb[0].mxu0 %v707
        %v2644 = vpop.f32.mrb[0].mxu0
        %v2645 = vadd.f32 %v2452, %v2644
        %v2646 = vpop.f32.mrb[0].mxu0
        %v2647 = vadd.f32 %v2454, %v2646
        %v2648 = vpop.f32.mrb[0].mxu0
        %v2649 = vadd.f32 %v2456, %v2648
        %v2650 = vpop.f32.mrb[0].mxu0
        %v2651 = vadd.f32 %v2458, %v2650
        %2652 = vmatprep.mubr.bf16.mxu0 %v716
        %2653 = vmatmul.mubr.bf16.gmra.mrb[0].mxu0 %v715
        %v2654 = vpop.f32.mrb[0].mxu0
        %v2655 = vadd.f32 %v2462, %v2654
        %v2656 = vpop.f32.mrb[0].mxu0
        %v2657 = vadd.f32 %v2464, %v2656
        %v2658 = vpop.f32.mrb[0].mxu0
        %v2659 = vadd.f32 %v2466, %v2658
        %v2660 = vpop.f32.mrb[0].mxu0
        %v2661 = vadd.f32 %v2468, %v2660
        %2662 = vmatprep.mubr.bf16.mxu0 %v724
        %2663 = vmatmul.mubr.bf16.gmra.mrb[0].mxu0 %v723
        %v2664 = vpop.f32.mrb[0].mxu0
        %v2665 = vadd.f32 %v2472, %v2664
        %v2666 = vpop.f32.mrb[0].mxu0
        %v2667 = vadd.f32 %v2474, %v2666
        %v2668 = vpop.f32.mrb[0].mxu0
        %v2669 = vadd.f32 %v2476, %v2668
        %v2670 = vpop.f32.mrb[0].mxu0
        %v2671 = vadd.f32 %v2478, %v2670
        %2672 = vdwg.mxu0
        %2673 = vmatprep.subr.bf16.mxu0 %v1904
        %2674 = vmatpush1.bf16.msra.mxu0 %v1903
        %2675 = vmatprep.subr.bf16.mxu0 %v1908
        %2676 = vmatpush1.bf16.msra.mxu0 %v1907
        %2677 = vmatprep.subr.bf16.mxu0 %v1912
        %2678 = vmatpush1.bf16.msra.mxu0 %v1911
        %2679 = vmatprep.subr.bf16.mxu0 %v1916
        %2680 = vmatpush1.bf16.msra.mxu0 %v1915
        %2681 = vmatprep.subr.bf16.mxu0 %v1920
        %2682 = vmatpush1.bf16.msra.mxu0 %v1919
        %2683 = vmatprep.subr.bf16.mxu0 %v1924
        %2684 = vmatpush1.bf16.msra.mxu0 %v1923
        %2685 = vmatprep.subr.bf16.mxu0 %v1928
        %2686 = vmatpush1.bf16.msra.mxu0 %v1927
        %2687 = vmatprep.subr.bf16.mxu0 %v1932
        %2688 = vmatpush1.bf16.msra.mxu0 %v1931
        %2689 = vmatprep.subr.bf16.mxu0 %v1936
        %2690 = vmatpush1.bf16.msra.mxu0 %v1935
        %2691 = vmatprep.subr.bf16.mxu0 %v1940
        %2692 = vmatpush1.bf16.msra.mxu0 %v1939
        %2693 = vmatprep.subr.bf16.mxu0 %v1944
        %2694 = vmatpush1.bf16.msra.mxu0 %v1943
        %2695 = vmatprep.subr.bf16.mxu0 %v1948
        %2696 = vmatpush1.bf16.msra.mxu0 %v1947
        %2697 = vmatprep.subr.bf16.mxu0 %v1952
        %2698 = vmatpush1.bf16.msra.mxu0 %v1951
        %2699 = vmatprep.subr.bf16.mxu0 %v1956
        %2700 = vmatpush1.bf16.msra.mxu0 %v1955
        %2701 = vmatprep.subr.bf16.mxu0 %v1960
        %2702 = vmatpush1.bf16.msra.mxu0 %v1959
        %2703 = vmatprep.subr.bf16.mxu0 %v1964
        %2704 = vmatpush1.bf16.msra.mxu0 %v1963
        %2705 = vmatprep.mubr.bf16.mxu0 %v606
        %2706 = vmatmul.mubr.bf16.gmra.mrb[0].mxu0 %v605
        %v2707 = vpop.f32.mrb[0].mxu0
        %v2708 = vadd.f32 %v2515, %v2707
        %v2709 = vpop.f32.mrb[0].mxu0
        %v2710 = vadd.f32 %v2517, %v2709
        %v2711 = vpop.f32.mrb[0].mxu0
        %v2712 = vadd.f32 %v2519, %v2711
        %v2713 = vpop.f32.mrb[0].mxu0
        %v2714 = vadd.f32 %v2521, %v2713
        %2715 = vmatprep.mubr.bf16.mxu0 %v614
        %2716 = vmatmul.mubr.bf16.gmra.mrb[0].mxu0 %v613
        %v2717 = vpop.f32.mrb[0].mxu0
        %v2718 = vadd.f32 %v2525, %v2717
        %v2719 = vpop.f32.mrb[0].mxu0
        %v2720 = vadd.f32 %v2527, %v2719
        %v2721 = vpop.f32.mrb[0].mxu0
        %v2722 = vadd.f32 %v2529, %v2721
        %v2723 = vpop.f32.mrb[0].mxu0
        %v2724 = vadd.f32 %v2531, %v2723
        %2725 = vmatprep.mubr.bf16.mxu0 %v622
        %2726 = vmatmul.mubr.bf16.gmra.mrb[0].mxu0 %v621
        %v2727 = vpop.f32.mrb[0].mxu0
        %v2728 = vadd.f32 %v2535, %v2727
        %v2729 = vpop.f32.mrb[0].mxu0
        %v2730 = vadd.f32 %v2537, %v2729
        %v2731 = vpop.f32.mrb[0].mxu0
        %v2732 = vadd.f32 %v2539, %v2731
        %v2733 = vpop.f32.mrb[0].mxu0
        %v2734 = vadd.f32 %v2541, %v2733
        %2735 = vmatprep.mubr.bf16.mxu0 %v630
        %2736 = vmatmul.mubr.bf16.gmra.mrb[0].mxu0 %v629
        %v2737 = vpop.f32.mrb[0].mxu0
        %v2738 = vadd.f32 %v2545, %v2737
        %v2739 = vpop.f32.mrb[0].mxu0
        %v2740 = vadd.f32 %v2547, %v2739
        %v2741 = vpop.f32.mrb[0].mxu0
        %v2742 = vadd.f32 %v2549, %v2741
        %v2743 = vpop.f32.mrb[0].mxu0
        %v2744 = vadd.f32 %v2551, %v2743
        %2745 = vmatprep.mubr.bf16.mxu0 %v638
        %2746 = vmatmul.mubr.bf16.gmra.mrb[0].mxu0 %v637
        %v2747 = vpop.f32.mrb[0].mxu0
        %v2748 = vadd.f32 %v2555, %v2747
        %v2749 = vpop.f32.mrb[0].mxu0
        %v2750 = vadd.f32 %v2557, %v2749
        %v2751 = vpop.f32.mrb[0].mxu0
        %v2752 = vadd.f32 %v2559, %v2751
        %v2753 = vpop.f32.mrb[0].mxu0
        %v2754 = vadd.f32 %v2561, %v2753
        %2755 = vmatprep.mubr.bf16.mxu0 %v646
        %2756 = vmatmul.mubr.bf16.gmra.mrb[0].mxu0 %v645
        %v2757 = vpop.f32.mrb[0].mxu0
        %v2758 = vadd.f32 %v2565, %v2757
        %v2759 = vpop.f32.mrb[0].mxu0
        %v2760 = vadd.f32 %v2567, %v2759
        %v2761 = vpop.f32.mrb[0].mxu0
        %v2762 = vadd.f32 %v2569, %v2761
        %v2763 = vpop.f32.mrb[0].mxu0
        %v2764 = vadd.f32 %v2571, %v2763
        %2765 = vmatprep.mubr.bf16.mxu0 %v654
        %2766 = vmatmul.mubr.bf16.gmra.mrb[0].mxu0 %v653
        %v2767 = vpop.f32.mrb[0].mxu0
        %v2768 = vadd.f32 %v2575, %v2767
        %v2769 = vpop.f32.mrb[0].mxu0
        %v2770 = vadd.f32 %v2577, %v2769
        %v2771 = vpop.f32.mrb[0].mxu0
        %v2772 = vadd.f32 %v2579, %v2771
        %v2773 = vpop.f32.mrb[0].mxu0
        %v2774 = vadd.f32 %v2581, %v2773
        %2775 = vmatprep.mubr.bf16.mxu0 %v662
        %2776 = vmatmul.mubr.bf16.gmra.mrb[0].mxu0 %v661
        %v2777 = vpop.f32.mrb[0].mxu0
        %v2778 = vadd.f32 %v2585, %v2777
        %v2779 = vpop.f32.mrb[0].mxu0
        %v2780 = vadd.f32 %v2587, %v2779
        %v2781 = vpop.f32.mrb[0].mxu0
        %v2782 = vadd.f32 %v2589, %v2781
        %v2783 = vpop.f32.mrb[0].mxu0
        %v2784 = vadd.f32 %v2591, %v2783
        %2785 = vmatprep.mubr.bf16.mxu0 %v670
        %2786 = vmatmul.mubr.bf16.gmra.mrb[0].mxu0 %v669
        %v2787 = vpop.f32.mrb[0].mxu0
        %v2788 = vadd.f32 %v2595, %v2787
        %v2789 = vpop.f32.mrb[0].mxu0
        %v2790 = vadd.f32 %v2597, %v2789
        %v2791 = vpop.f32.mrb[0].mxu0
        %v2792 = vadd.f32 %v2599, %v2791
        %v2793 = vpop.f32.mrb[0].mxu0
        %v2794 = vadd.f32 %v2601, %v2793
        %2795 = vmatprep.mubr.bf16.mxu0 %v678
        %2796 = vmatmul.mubr.bf16.gmra.mrb[0].mxu0 %v677
        %v2797 = vpop.f32.mrb[0].mxu0
        %v2798 = vadd.f32 %v2605, %v2797
        %v2799 = vpop.f32.mrb[0].mxu0
        %v2800 = vadd.f32 %v2607, %v2799
        %v2801 = vpop.f32.mrb[0].mxu0
        %v2802 = vadd.f32 %v2609, %v2801
        %v2803 = vpop.f32.mrb[0].mxu0
        %v2804 = vadd.f32 %v2611, %v2803
        %2805 = vmatprep.mubr.bf16.mxu0 %v686
        %2806 = vmatmul.mubr.bf16.gmra.mrb[0].mxu0 %v685
        %v2807 = vpop.f32.mrb[0].mxu0
        %v2808 = vadd.f32 %v2615, %v2807
        %v2809 = vpop.f32.mrb[0].mxu0
        %v2810 = vadd.f32 %v2617, %v2809
        %v2811 = vpop.f32.mrb[0].mxu0
        %v2812 = vadd.f32 %v2619, %v2811
        %v2813 = vpop.f32.mrb[0].mxu0
        %v2814 = vadd.f32 %v2621, %v2813
        %2815 = vmatprep.mubr.bf16.mxu0 %v694
        %2816 = vmatmul.mubr.bf16.gmra.mrb[0].mxu0 %v693
        %v2817 = vpop.f32.mrb[0].mxu0
        %v2818 = vadd.f32 %v2625, %v2817
        %v2819 = vpop.f32.mrb[0].mxu0
        %v2820 = vadd.f32 %v2627, %v2819
        %v2821 = vpop.f32.mrb[0].mxu0
        %v2822 = vadd.f32 %v2629, %v2821
        %v2823 = vpop.f32.mrb[0].mxu0
        %v2824 = vadd.f32 %v2631, %v2823
        %2825 = vmatprep.mubr.bf16.mxu0 %v702
        %2826 = vmatmul.mubr.bf16.gmra.mrb[0].mxu0 %v701
        %v2827 = vpop.f32.mrb[0].mxu0
        %v2828 = vadd.f32 %v2635, %v2827
        %v2829 = vpop.f32.mrb[0].mxu0
        %v2830 = vadd.f32 %v2637, %v2829
        %v2831 = vpop.f32.mrb[0].mxu0
        %v2832 = vadd.f32 %v2639, %v2831
        %v2833 = vpop.f32.mrb[0].mxu0
        %v2834 = vadd.f32 %v2641, %v2833
        %2835 = vmatprep.mubr.bf16.mxu0 %v710
        %2836 = vmatmul.mubr.bf16.gmra.mrb[0].mxu0 %v709
        %v2837 = vpop.f32.mrb[0].mxu0
        %v2838 = vadd.f32 %v2645, %v2837
        %v2839 = vpop.f32.mrb[0].mxu0
        %v2840 = vadd.f32 %v2647, %v2839
        %v2841 = vpop.f32.mrb[0].mxu0
        %v2842 = vadd.f32 %v2649, %v2841
        %v2843 = vpop.f32.mrb[0].mxu0
        %v2844 = vadd.f32 %v2651, %v2843
        %2845 = vmatprep.mubr.bf16.mxu0 %v718
        %2846 = vmatmul.mubr.bf16.gmra.mrb[0].mxu0 %v717
        %v2847 = vpop.f32.mrb[0].mxu0
        %v2848 = vadd.f32 %v2655, %v2847
        %v2849 = vpop.f32.mrb[0].mxu0
        %v2850 = vadd.f32 %v2657, %v2849
        %v2851 = vpop.f32.mrb[0].mxu0
        %v2852 = vadd.f32 %v2659, %v2851
        %v2853 = vpop.f32.mrb[0].mxu0
        %v2854 = vadd.f32 %v2661, %v2853
        %2855 = vmatprep.mubr.bf16.mxu0 %v726
        %2856 = vmatmul.mubr.bf16.gmra.mrb[0].mxu0 %v725
        %v2857 = vpop.f32.mrb[0].mxu0
        %v2858 = vadd.f32 %v2665, %v2857
        %v2859 = vpop.f32.mrb[0].mxu0
        %v2860 = vadd.f32 %v2667, %v2859
        %v2861 = vpop.f32.mrb[0].mxu0
        %v2862 = vadd.f32 %v2669, %v2861
        %v2863 = vpop.f32.mrb[0].mxu0
        %v2864 = vadd.f32 %v2671, %v2863
        %2865 = vdwg.mxu0
        %2866 = vmatprep.subr.bf16.mxu0 %v1968
        %2867 = vmatpush1.bf16.msra.mxu0 %v1967
        %2868 = vmatprep.subr.bf16.mxu0 %v1972
        %2869 = vmatpush1.bf16.msra.mxu0 %v1971
        %2870 = vmatprep.subr.bf16.mxu0 %v1976
        %2871 = vmatpush1.bf16.msra.mxu0 %v1975
        %2872 = vmatprep.subr.bf16.mxu0 %v1980
        %2873 = vmatpush1.bf16.msra.mxu0 %v1979
        %2874 = vmatprep.subr.bf16.mxu0 %v1984
        %2875 = vmatpush1.bf16.msra.mxu0 %v1983
        %2876 = vmatprep.subr.bf16.mxu0 %v1988
        %2877 = vmatpush1.bf16.msra.mxu0 %v1987
        %2878 = vmatprep.subr.bf16.mxu0 %v1992
        %2879 = vmatpush1.bf16.msra.mxu0 %v1991
        %2880 = vmatprep.subr.bf16.mxu0 %v1996
        %2881 = vmatpush1.bf16.msra.mxu0 %v1995
        %2882 = vmatprep.subr.bf16.mxu0 %v2000
        %2883 = vmatpush1.bf16.msra.mxu0 %v1999
        %2884 = vmatprep.subr.bf16.mxu0 %v2004
        %2885 = vmatpush1.bf16.msra.mxu0 %v2003
        %2886 = vmatprep.subr.bf16.mxu0 %v2008
        %2887 = vmatpush1.bf16.msra.mxu0 %v2007
        %2888 = vmatprep.subr.bf16.mxu0 %v2012
        %2889 = vmatpush1.bf16.msra.mxu0 %v2011
        %2890 = vmatprep.subr.bf16.mxu0 %v2016
        %2891 = vmatpush1.bf16.msra.mxu0 %v2015
        %2892 = vmatprep.subr.bf16.mxu0 %v2020
        %2893 = vmatpush1.bf16.msra.mxu0 %v2019
        %2894 = vmatprep.subr.bf16.mxu0 %v2024
        %2895 = vmatpush1.bf16.msra.mxu0 %v2023
        %2896 = vmatprep.subr.bf16.mxu0 %v2028
        %2897 = vmatpush1.bf16.msra.mxu0 %v2027
        %2898 = vmatprep.mubr.bf16.mxu0 %v608
        %2899 = vmatmul.mubr.bf16.gmra.mrb[0].mxu0 %v607
        %v2900 = vpop.f32.mrb[0].mxu0
        %v2901 = vadd.f32 %v2708, %v2900
        %v2902 = vpop.f32.mrb[0].mxu0
        %v2903 = vadd.f32 %v2710, %v2902
        %v2904 = vpop.f32.mrb[0].mxu0
        %v2905 = vadd.f32 %v2712, %v2904
        %v2906 = vpop.f32.mrb[0].mxu0
        %v2907 = vadd.f32 %v2714, %v2906
        %2908 = vmatprep.mubr.bf16.mxu0 %v616
        %2909 = vmatmul.mubr.bf16.gmra.mrb[0].mxu0 %v615
        %v2910 = vpop.f32.mrb[0].mxu0
        %v2911 = vadd.f32 %v2718, %v2910
        %v2912 = vpop.f32.mrb[0].mxu0
        %v2913 = vadd.f32 %v2720, %v2912
        %v2914 = vpop.f32.mrb[0].mxu0
        %v2915 = vadd.f32 %v2722, %v2914
        %v2916 = vpop.f32.mrb[0].mxu0
        %v2917 = vadd.f32 %v2724, %v2916
        %2918 = vmatprep.mubr.bf16.mxu0 %v624
        %2919 = vmatmul.mubr.bf16.gmra.mrb[0].mxu0 %v623
        %v2920 = vpop.f32.mrb[0].mxu0
        %v2921 = vadd.f32 %v2728, %v2920
        %v2922 = vpop.f32.mrb[0].mxu0
        %v2923 = vadd.f32 %v2730, %v2922
        %v2924 = vpop.f32.mrb[0].mxu0
        %v2925 = vadd.f32 %v2732, %v2924
        %v2926 = vpop.f32.mrb[0].mxu0
        %v2927 = vadd.f32 %v2734, %v2926
        %2928 = vmatprep.mubr.bf16.mxu0 %v632
        %2929 = vmatmul.mubr.bf16.gmra.mrb[0].mxu0 %v631
        %v2930 = vpop.f32.mrb[0].mxu0
        %v2931 = vadd.f32 %v2738, %v2930
        %v2932 = vpop.f32.mrb[0].mxu0
        %v2933 = vadd.f32 %v2740, %v2932
        %v2934 = vpop.f32.mrb[0].mxu0
        %v2935 = vadd.f32 %v2742, %v2934
        %v2936 = vpop.f32.mrb[0].mxu0
        %v2937 = vadd.f32 %v2744, %v2936
        %2938 = vmatprep.mubr.bf16.mxu0 %v640
        %2939 = vmatmul.mubr.bf16.gmra.mrb[0].mxu0 %v639
        %v2940 = vpop.f32.mrb[0].mxu0
        %v2941 = vadd.f32 %v2748, %v2940
        %v2942 = vpop.f32.mrb[0].mxu0
        %v2943 = vadd.f32 %v2750, %v2942
        %v2944 = vpop.f32.mrb[0].mxu0
        %v2945 = vadd.f32 %v2752, %v2944
        %v2946 = vpop.f32.mrb[0].mxu0
        %v2947 = vadd.f32 %v2754, %v2946
        %2948 = vmatprep.mubr.bf16.mxu0 %v648
        %2949 = vmatmul.mubr.bf16.gmra.mrb[0].mxu0 %v647
        %v2950 = vpop.f32.mrb[0].mxu0
        %v2951 = vadd.f32 %v2758, %v2950
        %v2952 = vpop.f32.mrb[0].mxu0
        %v2953 = vadd.f32 %v2760, %v2952
        %v2954 = vpop.f32.mrb[0].mxu0
        %v2955 = vadd.f32 %v2762, %v2954
        %v2956 = vpop.f32.mrb[0].mxu0
        %v2957 = vadd.f32 %v2764, %v2956
        %2958 = vmatprep.mubr.bf16.mxu0 %v656
        %2959 = vmatmul.mubr.bf16.gmra.mrb[0].mxu0 %v655
        %v2960 = vpop.f32.mrb[0].mxu0
        %v2961 = vadd.f32 %v2768, %v2960
        %v2962 = vpop.f32.mrb[0].mxu0
        %v2963 = vadd.f32 %v2770, %v2962
        %v2964 = vpop.f32.mrb[0].mxu0
        %v2965 = vadd.f32 %v2772, %v2964
        %v2966 = vpop.f32.mrb[0].mxu0
        %v2967 = vadd.f32 %v2774, %v2966
        %2968 = vmatprep.mubr.bf16.mxu0 %v664
        %2969 = vmatmul.mubr.bf16.gmra.mrb[0].mxu0 %v663
        %v2970 = vpop.f32.mrb[0].mxu0
        %v2971 = vadd.f32 %v2778, %v2970
        %v2972 = vpop.f32.mrb[0].mxu0
        %v2973 = vadd.f32 %v2780, %v2972
        %v2974 = vpop.f32.mrb[0].mxu0
        %v2975 = vadd.f32 %v2782, %v2974
        %v2976 = vpop.f32.mrb[0].mxu0
        %v2977 = vadd.f32 %v2784, %v2976
        %2978 = vmatprep.mubr.bf16.mxu0 %v672
        %2979 = vmatmul.mubr.bf16.gmra.mrb[0].mxu0 %v671
        %v2980 = vpop.f32.mrb[0].mxu0
        %v2981 = vadd.f32 %v2788, %v2980
        %v2982 = vpop.f32.mrb[0].mxu0
        %v2983 = vadd.f32 %v2790, %v2982
        %v2984 = vpop.f32.mrb[0].mxu0
        %v2985 = vadd.f32 %v2792, %v2984
        %v2986 = vpop.f32.mrb[0].mxu0
        %v2987 = vadd.f32 %v2794, %v2986
        %2988 = vmatprep.mubr.bf16.mxu0 %v680
        %2989 = vmatmul.mubr.bf16.gmra.mrb[0].mxu0 %v679
        %v2990 = vpop.f32.mrb[0].mxu0
        %v2991 = vadd.f32 %v2798, %v2990
        %v2992 = vpop.f32.mrb[0].mxu0
        %v2993 = vadd.f32 %v2800, %v2992
        %v2994 = vpop.f32.mrb[0].mxu0
        %v2995 = vadd.f32 %v2802, %v2994
        %v2996 = vpop.f32.mrb[0].mxu0
        %v2997 = vadd.f32 %v2804, %v2996
        %2998 = vmatprep.mubr.bf16.mxu0 %v688
        %2999 = vmatmul.mubr.bf16.gmra.mrb[0].mxu0 %v687
        %v3000 = vpop.f32.mrb[0].mxu0
        %v3001 = vadd.f32 %v2808, %v3000
        %v3002 = vpop.f32.mrb[0].mxu0
        %v3003 = vadd.f32 %v2810, %v3002
        %v3004 = vpop.f32.mrb[0].mxu0
        %v3005 = vadd.f32 %v2812, %v3004
        %v3006 = vpop.f32.mrb[0].mxu0
        %v3007 = vadd.f32 %v2814, %v3006
        %3008 = vmatprep.mubr.bf16.mxu0 %v696
        %3009 = vmatmul.mubr.bf16.gmra.mrb[0].mxu0 %v695
        %v3010 = vpop.f32.mrb[0].mxu0
        %v3011 = vadd.f32 %v2818, %v3010
        %v3012 = vpop.f32.mrb[0].mxu0
        %v3013 = vadd.f32 %v2820, %v3012
        %v3014 = vpop.f32.mrb[0].mxu0
        %v3015 = vadd.f32 %v2822, %v3014
        %v3016 = vpop.f32.mrb[0].mxu0
        %v3017 = vadd.f32 %v2824, %v3016
        %3018 = vmatprep.mubr.bf16.mxu0 %v704
        %3019 = vmatmul.mubr.bf16.gmra.mrb[0].mxu0 %v703
        %v3020 = vpop.f32.mrb[0].mxu0
        %v3021 = vadd.f32 %v2828, %v3020
        %v3022 = vpop.f32.mrb[0].mxu0
        %v3023 = vadd.f32 %v2830, %v3022
        %v3024 = vpop.f32.mrb[0].mxu0
        %v3025 = vadd.f32 %v2832, %v3024
        %v3026 = vpop.f32.mrb[0].mxu0
        %v3027 = vadd.f32 %v2834, %v3026
        %3028 = vmatprep.mubr.bf16.mxu0 %v712
        %3029 = vmatmul.mubr.bf16.gmra.mrb[0].mxu0 %v711
        %v3030 = vpop.f32.mrb[0].mxu0
        %v3031 = vadd.f32 %v2838, %v3030
        %v3032 = vpop.f32.mrb[0].mxu0
        %v3033 = vadd.f32 %v2840, %v3032
        %v3034 = vpop.f32.mrb[0].mxu0
        %v3035 = vadd.f32 %v2842, %v3034
        %v3036 = vpop.f32.mrb[0].mxu0
        %v3037 = vadd.f32 %v2844, %v3036
        %3038 = vmatprep.mubr.bf16.mxu0 %v720
        %3039 = vmatmul.mubr.bf16.gmra.mrb[0].mxu0 %v719
        %v3040 = vpop.f32.mrb[0].mxu0
        %v3041 = vadd.f32 %v2848, %v3040
        %v3042 = vpop.f32.mrb[0].mxu0
        %v3043 = vadd.f32 %v2850, %v3042
        %v3044 = vpop.f32.mrb[0].mxu0
        %v3045 = vadd.f32 %v2852, %v3044
        %v3046 = vpop.f32.mrb[0].mxu0
        %v3047 = vadd.f32 %v2854, %v3046
        %3048 = vmatprep.mubr.bf16.mxu0 %v728
        %3049 = vmatmul.mubr.bf16.gmra.mrb[0].mxu0 %v727
        %v3050 = vpop.f32.mrb[0].mxu0
        %v3051 = vadd.f32 %v2858, %v3050
        %v3052 = vpop.f32.mrb[0].mxu0
        %v3053 = vadd.f32 %v2860, %v3052
        %v3054 = vpop.f32.mrb[0].mxu0
        %v3055 = vadd.f32 %v2862, %v3054
        %v3056 = vpop.f32.mrb[0].mxu0
        %v3057 = vadd.f32 %v2864, %v3056
        %3058 = vdwg.mxu0
        %3059 = vmatprep.subr.bf16.mxu0 %v1778
        %3060 = vmatpush1.bf16.msra.mxu0 %v1777
        %3061 = vmatprep.subr.bf16.mxu0 %v1782
        %3062 = vmatpush1.bf16.msra.mxu0 %v1781
        %3063 = vmatprep.subr.bf16.mxu0 %v1786
        %3064 = vmatpush1.bf16.msra.mxu0 %v1785
        %3065 = vmatprep.subr.bf16.mxu0 %v1790
        %3066 = vmatpush1.bf16.msra.mxu0 %v1789
        %3067 = vmatprep.subr.bf16.mxu0 %v1794
        %3068 = vmatpush1.bf16.msra.mxu0 %v1793
        %3069 = vmatprep.subr.bf16.mxu0 %v1798
        %3070 = vmatpush1.bf16.msra.mxu0 %v1797
        %3071 = vmatprep.subr.bf16.mxu0 %v1802
        %3072 = vmatpush1.bf16.msra.mxu0 %v1801
        %3073 = vmatprep.subr.bf16.mxu0 %v1806
        %3074 = vmatpush1.bf16.msra.mxu0 %v1805
        %3075 = vmatprep.subr.bf16.mxu0 %v1810
        %3076 = vmatpush1.bf16.msra.mxu0 %v1809
        %3077 = vmatprep.subr.bf16.mxu0 %v1814
        %3078 = vmatpush1.bf16.msra.mxu0 %v1813
        %3079 = vmatprep.subr.bf16.mxu0 %v1818
        %3080 = vmatpush1.bf16.msra.mxu0 %v1817
        %3081 = vmatprep.subr.bf16.mxu0 %v1822
        %3082 = vmatpush1.bf16.msra.mxu0 %v1821
        %3083 = vmatprep.subr.bf16.mxu0 %v1826
        %3084 = vmatpush1.bf16.msra.mxu0 %v1825
        %3085 = vmatprep.subr.bf16.mxu0 %v1830
        %3086 = vmatpush1.bf16.msra.mxu0 %v1829
        %3087 = vmatprep.subr.bf16.mxu0 %v1834
        %3088 = vmatpush1.bf16.msra.mxu0 %v1833
        %3089 = vmatprep.subr.bf16.mxu0 %v1838
        %3090 = vmatpush1.bf16.msra.mxu0 %v1837
        %3091 = vmatprep.mubr.bf16.mxu0 %v602
        %3092 = vmatmul.mubr.bf16.gmra.mrb[0].mxu0 %v601
        %v3093 = vpop.f32.mrb[0].mxu0
        %v3094 = vadd.f32 %v998, %v3093
        %v3095 = vpop.f32.mrb[0].mxu0
        %v3096 = vadd.f32 %v1002, %v3095
        %v3097 = vpop.f32.mrb[0].mxu0
        %v3098 = vadd.f32 %v998, %v3097
        %v3099 = vpop.f32.mrb[0].mxu0
        %v3100 = vadd.f32 %v1002, %v3099
        %3101 = vmatprep.mubr.bf16.mxu0 %v610
        %3102 = vmatmul.mubr.bf16.gmra.mrb[0].mxu0 %v609
        %v3103 = vpop.f32.mrb[0].mxu0
        %v3104 = vadd.f32 %v998, %v3103
        %v3105 = vpop.f32.mrb[0].mxu0
        %v3106 = vadd.f32 %v1002, %v3105
        %v3107 = vpop.f32.mrb[0].mxu0
        %v3108 = vadd.f32 %v998, %v3107
        %v3109 = vpop.f32.mrb[0].mxu0
        %v3110 = vadd.f32 %v1002, %v3109
        %3111 = vmatprep.mubr.bf16.mxu0 %v618
        %3112 = vmatmul.mubr.bf16.gmra.mrb[0].mxu0 %v617
        %v3113 = vpop.f32.mrb[0].mxu0
        %v3114 = vadd.f32 %v998, %v3113
        %v3115 = vpop.f32.mrb[0].mxu0
        %v3116 = vadd.f32 %v1002, %v3115
        %v3117 = vpop.f32.mrb[0].mxu0
        %v3118 = vadd.f32 %v998, %v3117
        %v3119 = vpop.f32.mrb[0].mxu0
        %v3120 = vadd.f32 %v1002, %v3119
        %3121 = vmatprep.mubr.bf16.mxu0 %v626
        %3122 = vmatmul.mubr.bf16.gmra.mrb[0].mxu0 %v625
        %v3123 = vpop.f32.mrb[0].mxu0
        %v3124 = vadd.f32 %v998, %v3123
        %v3125 = vpop.f32.mrb[0].mxu0
        %v3126 = vadd.f32 %v1002, %v3125
        %v3127 = vpop.f32.mrb[0].mxu0
        %v3128 = vadd.f32 %v998, %v3127
        %v3129 = vpop.f32.mrb[0].mxu0
        %v3130 = vadd.f32 %v1002, %v3129
        %3131 = vmatprep.mubr.bf16.mxu0 %v634
        %3132 = vmatmul.mubr.bf16.gmra.mrb[0].mxu0 %v633
        %v3133 = vpop.f32.mrb[0].mxu0
        %v3134 = vadd.f32 %v998, %v3133
        %v3135 = vpop.f32.mrb[0].mxu0
        %v3136 = vadd.f32 %v1002, %v3135
        %v3137 = vpop.f32.mrb[0].mxu0
        %v3138 = vadd.f32 %v998, %v3137
        %v3139 = vpop.f32.mrb[0].mxu0
        %v3140 = vadd.f32 %v1002, %v3139
        %3141 = vmatprep.mubr.bf16.mxu0 %v642
        %3142 = vmatmul.mubr.bf16.gmra.mrb[0].mxu0 %v641
        %v3143 = vpop.f32.mrb[0].mxu0
        %v3144 = vadd.f32 %v998, %v3143
        %v3145 = vpop.f32.mrb[0].mxu0
        %v3146 = vadd.f32 %v1002, %v3145
        %v3147 = vpop.f32.mrb[0].mxu0
        %v3148 = vadd.f32 %v998, %v3147
        %v3149 = vpop.f32.mrb[0].mxu0
        %v3150 = vadd.f32 %v1002, %v3149
        %3151 = vmatprep.mubr.bf16.mxu0 %v650
        %3152 = vmatmul.mubr.bf16.gmra.mrb[0].mxu0 %v649
        %v3153 = vpop.f32.mrb[0].mxu0
        %v3154 = vadd.f32 %v998, %v3153
        %v3155 = vpop.f32.mrb[0].mxu0
        %v3156 = vadd.f32 %v1002, %v3155
        %v3157 = vpop.f32.mrb[0].mxu0
        %v3158 = vadd.f32 %v998, %v3157
        %v3159 = vpop.f32.mrb[0].mxu0
        %v3160 = vadd.f32 %v1002, %v3159
        %3161 = vmatprep.mubr.bf16.mxu0 %v658
        %3162 = vmatmul.mubr.bf16.gmra.mrb[0].mxu0 %v657
        %v3163 = vpop.f32.mrb[0].mxu0
        %v3164 = vadd.f32 %v998, %v3163
        %v3165 = vpop.f32.mrb[0].mxu0
        %v3166 = vadd.f32 %v1002, %v3165
        %v3167 = vpop.f32.mrb[0].mxu0
        %v3168 = vadd.f32 %v998, %v3167
        %v3169 = vpop.f32.mrb[0].mxu0
        %v3170 = vadd.f32 %v1002, %v3169
        %3171 = vmatprep.mubr.bf16.mxu0 %v666
        %3172 = vmatmul.mubr.bf16.gmra.mrb[0].mxu0 %v665
        %v3173 = vpop.f32.mrb[0].mxu0
        %v3174 = vadd.f32 %v998, %v3173
        %v3175 = vpop.f32.mrb[0].mxu0
        %v3176 = vadd.f32 %v1002, %v3175
        %v3177 = vpop.f32.mrb[0].mxu0
        %v3178 = vadd.f32 %v998, %v3177
        %v3179 = vpop.f32.mrb[0].mxu0
        %v3180 = vadd.f32 %v1002, %v3179
        %3181 = vmatprep.mubr.bf16.mxu0 %v674
        %3182 = vmatmul.mubr.bf16.gmra.mrb[0].mxu0 %v673
        %v3183 = vpop.f32.mrb[0].mxu0
        %v3184 = vadd.f32 %v998, %v3183
        %v3185 = vpop.f32.mrb[0].mxu0
        %v3186 = vadd.f32 %v1002, %v3185
        %v3187 = vpop.f32.mrb[0].mxu0
        %v3188 = vadd.f32 %v998, %v3187
        %v3189 = vpop.f32.mrb[0].mxu0
        %v3190 = vadd.f32 %v1002, %v3189
        %3191 = vmatprep.mubr.bf16.mxu0 %v682
        %3192 = vmatmul.mubr.bf16.gmra.mrb[0].mxu0 %v681
        %v3193 = vpop.f32.mrb[0].mxu0
        %v3194 = vadd.f32 %v998, %v3193
        %v3195 = vpop.f32.mrb[0].mxu0
        %v3196 = vadd.f32 %v1002, %v3195
        %v3197 = vpop.f32.mrb[0].mxu0
        %v3198 = vadd.f32 %v998, %v3197
        %v3199 = vpop.f32.mrb[0].mxu0
        %v3200 = vadd.f32 %v1002, %v3199
        %3201 = vmatprep.mubr.bf16.mxu0 %v690
        %3202 = vmatmul.mubr.bf16.gmra.mrb[0].mxu0 %v689
        %v3203 = vpop.f32.mrb[0].mxu0
        %v3204 = vadd.f32 %v998, %v3203
        %v3205 = vpop.f32.mrb[0].mxu0
        %v3206 = vadd.f32 %v1002, %v3205
        %v3207 = vpop.f32.mrb[0].mxu0
        %v3208 = vadd.f32 %v998, %v3207
        %v3209 = vpop.f32.mrb[0].mxu0
        %v3210 = vadd.f32 %v1002, %v3209
        %3211 = vmatprep.mubr.bf16.mxu0 %v698
        %3212 = vmatmul.mubr.bf16.gmra.mrb[0].mxu0 %v697
        %v3213 = vpop.f32.mrb[0].mxu0
        %v3214 = vadd.f32 %v998, %v3213
        %v3215 = vpop.f32.mrb[0].mxu0
        %v3216 = vadd.f32 %v1002, %v3215
        %v3217 = vpop.f32.mrb[0].mxu0
        %v3218 = vadd.f32 %v998, %v3217
        %v3219 = vpop.f32.mrb[0].mxu0
        %v3220 = vadd.f32 %v1002, %v3219
        %3221 = vmatprep.mubr.bf16.mxu0 %v706
        %3222 = vmatmul.mubr.bf16.gmra.mrb[0].mxu0 %v705
        %v3223 = vpop.f32.mrb[0].mxu0
        %v3224 = vadd.f32 %v998, %v3223
        %v3225 = vpop.f32.mrb[0].mxu0
        %v3226 = vadd.f32 %v1002, %v3225
        %v3227 = vpop.f32.mrb[0].mxu0
        %v3228 = vadd.f32 %v998, %v3227
        %v3229 = vpop.f32.mrb[0].mxu0
        %v3230 = vadd.f32 %v1002, %v3229
        %3231 = vmatprep.mubr.bf16.mxu0 %v714
        %3232 = vmatmul.mubr.bf16.gmra.mrb[0].mxu0 %v713
        %v3233 = vpop.f32.mrb[0].mxu0
        %v3234 = vadd.f32 %v998, %v3233
        %v3235 = vpop.f32.mrb[0].mxu0
        %v3236 = vadd.f32 %v1002, %v3235
        %v3237 = vpop.f32.mrb[0].mxu0
        %v3238 = vadd.f32 %v998, %v3237
        %v3239 = vpop.f32.mrb[0].mxu0
        %v3240 = vadd.f32 %v1002, %v3239
        %3241 = vmatprep.mubr.bf16.mxu0 %v722
        %3242 = vmatmul.mubr.bf16.gmra.mrb[0].mxu0 %v721
        %v3243 = vpop.f32.mrb[0].mxu0
        %v3244 = vadd.f32 %v998, %v3243
        %v3245 = vpop.f32.mrb[0].mxu0
        %v3246 = vadd.f32 %v1002, %v3245
        %v3247 = vpop.f32.mrb[0].mxu0
        %v3248 = vadd.f32 %v998, %v3247
        %v3249 = vpop.f32.mrb[0].mxu0
        %v3250 = vadd.f32 %v1002, %v3249
        %3251 = vdwg.mxu0
        %3252 = vmatprep.subr.bf16.mxu0 %v1842
        %3253 = vmatpush1.bf16.msra.mxu0 %v1841
        %3254 = vmatprep.subr.bf16.mxu0 %v1846
        %3255 = vmatpush1.bf16.msra.mxu0 %v1845
        %3256 = vmatprep.subr.bf16.mxu0 %v1850
        %3257 = vmatpush1.bf16.msra.mxu0 %v1849
        %3258 = vmatprep.subr.bf16.mxu0 %v1854
        %3259 = vmatpush1.bf16.msra.mxu0 %v1853
        %3260 = vmatprep.subr.bf16.mxu0 %v1858
        %3261 = vmatpush1.bf16.msra.mxu0 %v1857
        %3262 = vmatprep.subr.bf16.mxu0 %v1862
        %3263 = vmatpush1.bf16.msra.mxu0 %v1861
        %3264 = vmatprep.subr.bf16.mxu0 %v1866
        %3265 = vmatpush1.bf16.msra.mxu0 %v1865
        %3266 = vmatprep.subr.bf16.mxu0 %v1870
        %3267 = vmatpush1.bf16.msra.mxu0 %v1869
        %3268 = vmatprep.subr.bf16.mxu0 %v1874
        %3269 = vmatpush1.bf16.msra.mxu0 %v1873
        %3270 = vmatprep.subr.bf16.mxu0 %v1878
        %3271 = vmatpush1.bf16.msra.mxu0 %v1877
        %3272 = vmatprep.subr.bf16.mxu0 %v1882
        %3273 = vmatpush1.bf16.msra.mxu0 %v1881
        %3274 = vmatprep.subr.bf16.mxu0 %v1886
        %3275 = vmatpush1.bf16.msra.mxu0 %v1885
        %3276 = vmatprep.subr.bf16.mxu0 %v1890
        %3277 = vmatpush1.bf16.msra.mxu0 %v1889
        %3278 = vmatprep.subr.bf16.mxu0 %v1894
        %3279 = vmatpush1.bf16.msra.mxu0 %v1893
        %3280 = vmatprep.subr.bf16.mxu0 %v1898
        %3281 = vmatpush1.bf16.msra.mxu0 %v1897
        %3282 = vmatprep.subr.bf16.mxu0 %v1902
        %3283 = vmatpush1.bf16.msra.mxu0 %v1901
        %3284 = vmatprep.mubr.bf16.mxu0 %v604
        %3285 = vmatmul.mubr.bf16.gmra.mrb[0].mxu0 %v603
        %v3286 = vpop.f32.mrb[0].mxu0
        %v3287 = vadd.f32 %v3094, %v3286
        %v3288 = vpop.f32.mrb[0].mxu0
        %v3289 = vadd.f32 %v3096, %v3288
        %v3290 = vpop.f32.mrb[0].mxu0
        %v3291 = vadd.f32 %v3098, %v3290
        %v3292 = vpop.f32.mrb[0].mxu0
        %v3293 = vadd.f32 %v3100, %v3292
        %3294 = vmatprep.mubr.bf16.mxu0 %v612
        %3295 = vmatmul.mubr.bf16.gmra.mrb[0].mxu0 %v611
        %v3296 = vpop.f32.mrb[0].mxu0
        %v3297 = vadd.f32 %v3104, %v3296
        %v3298 = vpop.f32.mrb[0].mxu0
        %v3299 = vadd.f32 %v3106, %v3298
        %v3300 = vpop.f32.mrb[0].mxu0
        %v3301 = vadd.f32 %v3108, %v3300
        %v3302 = vpop.f32.mrb[0].mxu0
        %v3303 = vadd.f32 %v3110, %v3302
        %3304 = vmatprep.mubr.bf16.mxu0 %v620
        %3305 = vmatmul.mubr.bf16.gmra.mrb[0].mxu0 %v619
        %v3306 = vpop.f32.mrb[0].mxu0
        %v3307 = vadd.f32 %v3114, %v3306
        %v3308 = vpop.f32.mrb[0].mxu0
        %v3309 = vadd.f32 %v3116, %v3308
        %v3310 = vpop.f32.mrb[0].mxu0
        %v3311 = vadd.f32 %v3118, %v3310
        %v3312 = vpop.f32.mrb[0].mxu0
        %v3313 = vadd.f32 %v3120, %v3312
        %3314 = vmatprep.mubr.bf16.mxu0 %v628
        %3315 = vmatmul.mubr.bf16.gmra.mrb[0].mxu0 %v627
        %v3316 = vpop.f32.mrb[0].mxu0
        %v3317 = vadd.f32 %v3124, %v3316
        %v3318 = vpop.f32.mrb[0].mxu0
        %v3319 = vadd.f32 %v3126, %v3318
        %v3320 = vpop.f32.mrb[0].mxu0
        %v3321 = vadd.f32 %v3128, %v3320
        %v3322 = vpop.f32.mrb[0].mxu0
        %v3323 = vadd.f32 %v3130, %v3322
        %3324 = vmatprep.mubr.bf16.mxu0 %v636
        %3325 = vmatmul.mubr.bf16.gmra.mrb[0].mxu0 %v635
        %v3326 = vpop.f32.mrb[0].mxu0
        %v3327 = vadd.f32 %v3134, %v3326
        %v3328 = vpop.f32.mrb[0].mxu0
        %v3329 = vadd.f32 %v3136, %v3328
        %v3330 = vpop.f32.mrb[0].mxu0
        %v3331 = vadd.f32 %v3138, %v3330
        %v3332 = vpop.f32.mrb[0].mxu0
        %v3333 = vadd.f32 %v3140, %v3332
        %3334 = vmatprep.mubr.bf16.mxu0 %v644
        %3335 = vmatmul.mubr.bf16.gmra.mrb[0].mxu0 %v643
        %v3336 = vpop.f32.mrb[0].mxu0
        %v3337 = vadd.f32 %v3144, %v3336
        %v3338 = vpop.f32.mrb[0].mxu0
        %v3339 = vadd.f32 %v3146, %v3338
        %v3340 = vpop.f32.mrb[0].mxu0
        %v3341 = vadd.f32 %v3148, %v3340
        %v3342 = vpop.f32.mrb[0].mxu0
        %v3343 = vadd.f32 %v3150, %v3342
        %3344 = vmatprep.mubr.bf16.mxu0 %v652
        %3345 = vmatmul.mubr.bf16.gmra.mrb[0].mxu0 %v651
        %v3346 = vpop.f32.mrb[0].mxu0
        %v3347 = vadd.f32 %v3154, %v3346
        %v3348 = vpop.f32.mrb[0].mxu0
        %v3349 = vadd.f32 %v3156, %v3348
        %v3350 = vpop.f32.mrb[0].mxu0
        %v3351 = vadd.f32 %v3158, %v3350
        %v3352 = vpop.f32.mrb[0].mxu0
        %v3353 = vadd.f32 %v3160, %v3352
        %3354 = vmatprep.mubr.bf16.mxu0 %v660
        %3355 = vmatmul.mubr.bf16.gmra.mrb[0].mxu0 %v659
        %v3356 = vpop.f32.mrb[0].mxu0
        %v3357 = vadd.f32 %v3164, %v3356
        %v3358 = vpop.f32.mrb[0].mxu0
        %v3359 = vadd.f32 %v3166, %v3358
        %v3360 = vpop.f32.mrb[0].mxu0
        %v3361 = vadd.f32 %v3168, %v3360
        %v3362 = vpop.f32.mrb[0].mxu0
        %v3363 = vadd.f32 %v3170, %v3362
        %3364 = vmatprep.mubr.bf16.mxu0 %v668
        %3365 = vmatmul.mubr.bf16.gmra.mrb[0].mxu0 %v667
        %v3366 = vpop.f32.mrb[0].mxu0
        %v3367 = vadd.f32 %v3174, %v3366
        %v3368 = vpop.f32.mrb[0].mxu0
        %v3369 = vadd.f32 %v3176, %v3368
        %v3370 = vpop.f32.mrb[0].mxu0
        %v3371 = vadd.f32 %v3178, %v3370
        %v3372 = vpop.f32.mrb[0].mxu0
        %v3373 = vadd.f32 %v3180, %v3372
        %3374 = vmatprep.mubr.bf16.mxu0 %v676
        %3375 = vmatmul.mubr.bf16.gmra.mrb[0].mxu0 %v675
        %v3376 = vpop.f32.mrb[0].mxu0
        %v3377 = vadd.f32 %v3184, %v3376
        %v3378 = vpop.f32.mrb[0].mxu0
        %v3379 = vadd.f32 %v3186, %v3378
        %v3380 = vpop.f32.mrb[0].mxu0
        %v3381 = vadd.f32 %v3188, %v3380
        %v3382 = vpop.f32.mrb[0].mxu0
        %v3383 = vadd.f32 %v3190, %v3382
        %3384 = vmatprep.mubr.bf16.mxu0 %v684
        %3385 = vmatmul.mubr.bf16.gmra.mrb[0].mxu0 %v683
        %v3386 = vpop.f32.mrb[0].mxu0
        %v3387 = vadd.f32 %v3194, %v3386
        %v3388 = vpop.f32.mrb[0].mxu0
        %v3389 = vadd.f32 %v3196, %v3388
        %v3390 = vpop.f32.mrb[0].mxu0
        %v3391 = vadd.f32 %v3198, %v3390
        %v3392 = vpop.f32.mrb[0].mxu0
        %v3393 = vadd.f32 %v3200, %v3392
        %3394 = vmatprep.mubr.bf16.mxu0 %v692
        %3395 = vmatmul.mubr.bf16.gmra.mrb[0].mxu0 %v691
        %v3396 = vpop.f32.mrb[0].mxu0
        %v3397 = vadd.f32 %v3204, %v3396
        %v3398 = vpop.f32.mrb[0].mxu0
        %v3399 = vadd.f32 %v3206, %v3398
        %v3400 = vpop.f32.mrb[0].mxu0
        %v3401 = vadd.f32 %v3208, %v3400
        %v3402 = vpop.f32.mrb[0].mxu0
        %v3403 = vadd.f32 %v3210, %v3402
        %3404 = vmatprep.mubr.bf16.mxu0 %v700
        %3405 = vmatmul.mubr.bf16.gmra.mrb[0].mxu0 %v699
        %v3406 = vpop.f32.mrb[0].mxu0
        %v3407 = vadd.f32 %v3214, %v3406
        %v3408 = vpop.f32.mrb[0].mxu0
        %v3409 = vadd.f32 %v3216, %v3408
        %v3410 = vpop.f32.mrb[0].mxu0
        %v3411 = vadd.f32 %v3218, %v3410
        %v3412 = vpop.f32.mrb[0].mxu0
        %v3413 = vadd.f32 %v3220, %v3412
        %3414 = vmatprep.mubr.bf16.mxu0 %v708
        %3415 = vmatmul.mubr.bf16.gmra.mrb[0].mxu0 %v707
        %v3416 = vpop.f32.mrb[0].mxu0
        %v3417 = vadd.f32 %v3224, %v3416
        %v3418 = vpop.f32.mrb[0].mxu0
        %v3419 = vadd.f32 %v3226, %v3418
        %v3420 = vpop.f32.mrb[0].mxu0
        %v3421 = vadd.f32 %v3228, %v3420
        %v3422 = vpop.f32.mrb[0].mxu0
        %v3423 = vadd.f32 %v3230, %v3422
        %3424 = vmatprep.mubr.bf16.mxu0 %v716
        %3425 = vmatmul.mubr.bf16.gmra.mrb[0].mxu0 %v715
        %v3426 = vpop.f32.mrb[0].mxu0
        %v3427 = vadd.f32 %v3234, %v3426
        %v3428 = vpop.f32.mrb[0].mxu0
        %v3429 = vadd.f32 %v3236, %v3428
        %v3430 = vpop.f32.mrb[0].mxu0
        %v3431 = vadd.f32 %v3238, %v3430
        %v3432 = vpop.f32.mrb[0].mxu0
        %v3433 = vadd.f32 %v3240, %v3432
        %3434 = vmatprep.mubr.bf16.mxu0 %v724
        %3435 = vmatmul.mubr.bf16.gmra.mrb[0].mxu0 %v723
        %v3436 = vpop.f32.mrb[0].mxu0
        %v3437 = vadd.f32 %v3244, %v3436
        %v3438 = vpop.f32.mrb[0].mxu0
        %v3439 = vadd.f32 %v3246, %v3438
        %v3440 = vpop.f32.mrb[0].mxu0
        %v3441 = vadd.f32 %v3248, %v3440
        %v3442 = vpop.f32.mrb[0].mxu0
        %v3443 = vadd.f32 %v3250, %v3442
        %3444 = vdwg.mxu0
        %3445 = vmatprep.subr.bf16.mxu0 %v1906
        %3446 = vmatpush1.bf16.msra.mxu0 %v1905
        %3447 = vmatprep.subr.bf16.mxu0 %v1910
        %3448 = vmatpush1.bf16.msra.mxu0 %v1909
        %3449 = vmatprep.subr.bf16.mxu0 %v1914
        %3450 = vmatpush1.bf16.msra.mxu0 %v1913
        %3451 = vmatprep.subr.bf16.mxu0 %v1918
        %3452 = vmatpush1.bf16.msra.mxu0 %v1917
        %3453 = vmatprep.subr.bf16.mxu0 %v1922
        %3454 = vmatpush1.bf16.msra.mxu0 %v1921
        %3455 = vmatprep.subr.bf16.mxu0 %v1926
        %3456 = vmatpush1.bf16.msra.mxu0 %v1925
        %3457 = vmatprep.subr.bf16.mxu0 %v1930
        %3458 = vmatpush1.bf16.msra.mxu0 %v1929
        %3459 = vmatprep.subr.bf16.mxu0 %v1934
        %3460 = vmatpush1.bf16.msra.mxu0 %v1933
        %3461 = vmatprep.subr.bf16.mxu0 %v1938
        %3462 = vmatpush1.bf16.msra.mxu0 %v1937
        %3463 = vmatprep.subr.bf16.mxu0 %v1942
        %3464 = vmatpush1.bf16.msra.mxu0 %v1941
        %3465 = vmatprep.subr.bf16.mxu0 %v1946
        %3466 = vmatpush1.bf16.msra.mxu0 %v1945
        %3467 = vmatprep.subr.bf16.mxu0 %v1950
        %3468 = vmatpush1.bf16.msra.mxu0 %v1949
        %3469 = vmatprep.subr.bf16.mxu0 %v1954
        %3470 = vmatpush1.bf16.msra.mxu0 %v1953
        %3471 = vmatprep.subr.bf16.mxu0 %v1958
        %3472 = vmatpush1.bf16.msra.mxu0 %v1957
        %3473 = vmatprep.subr.bf16.mxu0 %v1962
        %3474 = vmatpush1.bf16.msra.mxu0 %v1961
        %3475 = vmatprep.subr.bf16.mxu0 %v1966
        %3476 = vmatpush1.bf16.msra.mxu0 %v1965
        %3477 = vmatprep.mubr.bf16.mxu0 %v606
        %3478 = vmatmul.mubr.bf16.gmra.mrb[0].mxu0 %v605
        %v3479 = vpop.f32.mrb[0].mxu0
        %v3480 = vadd.f32 %v3287, %v3479
        %v3481 = vpop.f32.mrb[0].mxu0
        %v3482 = vadd.f32 %v3289, %v3481
        %v3483 = vpop.f32.mrb[0].mxu0
        %v3484 = vadd.f32 %v3291, %v3483
        %v3485 = vpop.f32.mrb[0].mxu0
        %v3486 = vadd.f32 %v3293, %v3485
        %3487 = vmatprep.mubr.bf16.mxu0 %v614
        %3488 = vmatmul.mubr.bf16.gmra.mrb[0].mxu0 %v613
        %v3489 = vpop.f32.mrb[0].mxu0
        %v3490 = vadd.f32 %v3297, %v3489
        %v3491 = vpop.f32.mrb[0].mxu0
        %v3492 = vadd.f32 %v3299, %v3491
        %v3493 = vpop.f32.mrb[0].mxu0
        %v3494 = vadd.f32 %v3301, %v3493
        %v3495 = vpop.f32.mrb[0].mxu0
        %v3496 = vadd.f32 %v3303, %v3495
        %3497 = vmatprep.mubr.bf16.mxu0 %v622
        %3498 = vmatmul.mubr.bf16.gmra.mrb[0].mxu0 %v621
        %v3499 = vpop.f32.mrb[0].mxu0
        %v3500 = vadd.f32 %v3307, %v3499
        %v3501 = vpop.f32.mrb[0].mxu0
        %v3502 = vadd.f32 %v3309, %v3501
        %v3503 = vpop.f32.mrb[0].mxu0
        %v3504 = vadd.f32 %v3311, %v3503
        %v3505 = vpop.f32.mrb[0].mxu0
        %v3506 = vadd.f32 %v3313, %v3505
        %3507 = vmatprep.mubr.bf16.mxu0 %v630
        %3508 = vmatmul.mubr.bf16.gmra.mrb[0].mxu0 %v629
        %v3509 = vpop.f32.mrb[0].mxu0
        %v3510 = vadd.f32 %v3317, %v3509
        %v3511 = vpop.f32.mrb[0].mxu0
        %v3512 = vadd.f32 %v3319, %v3511
        %v3513 = vpop.f32.mrb[0].mxu0
        %v3514 = vadd.f32 %v3321, %v3513
        %v3515 = vpop.f32.mrb[0].mxu0
        %v3516 = vadd.f32 %v3323, %v3515
        %3517 = vmatprep.mubr.bf16.mxu0 %v638
        %3518 = vmatmul.mubr.bf16.gmra.mrb[0].mxu0 %v637
        %v3519 = vpop.f32.mrb[0].mxu0
        %v3520 = vadd.f32 %v3327, %v3519
        %v3521 = vpop.f32.mrb[0].mxu0
        %v3522 = vadd.f32 %v3329, %v3521
        %v3523 = vpop.f32.mrb[0].mxu0
        %v3524 = vadd.f32 %v3331, %v3523
        %v3525 = vpop.f32.mrb[0].mxu0
        %v3526 = vadd.f32 %v3333, %v3525
        %3527 = vmatprep.mubr.bf16.mxu0 %v646
        %3528 = vmatmul.mubr.bf16.gmra.mrb[0].mxu0 %v645
        %v3529 = vpop.f32.mrb[0].mxu0
        %v3530 = vadd.f32 %v3337, %v3529
        %v3531 = vpop.f32.mrb[0].mxu0
        %v3532 = vadd.f32 %v3339, %v3531
        %v3533 = vpop.f32.mrb[0].mxu0
        %v3534 = vadd.f32 %v3341, %v3533
        %v3535 = vpop.f32.mrb[0].mxu0
        %v3536 = vadd.f32 %v3343, %v3535
        %3537 = vmatprep.mubr.bf16.mxu0 %v654
        %3538 = vmatmul.mubr.bf16.gmra.mrb[0].mxu0 %v653
        %v3539 = vpop.f32.mrb[0].mxu0
        %v3540 = vadd.f32 %v3347, %v3539
        %v3541 = vpop.f32.mrb[0].mxu0
        %v3542 = vadd.f32 %v3349, %v3541
        %v3543 = vpop.f32.mrb[0].mxu0
        %v3544 = vadd.f32 %v3351, %v3543
        %v3545 = vpop.f32.mrb[0].mxu0
        %v3546 = vadd.f32 %v3353, %v3545
        %3547 = vmatprep.mubr.bf16.mxu0 %v662
        %3548 = vmatmul.mubr.bf16.gmra.mrb[0].mxu0 %v661
        %v3549 = vpop.f32.mrb[0].mxu0
        %v3550 = vadd.f32 %v3357, %v3549
        %v3551 = vpop.f32.mrb[0].mxu0
        %v3552 = vadd.f32 %v3359, %v3551
        %v3553 = vpop.f32.mrb[0].mxu0
        %v3554 = vadd.f32 %v3361, %v3553
        %v3555 = vpop.f32.mrb[0].mxu0
        %v3556 = vadd.f32 %v3363, %v3555
        %3557 = vmatprep.mubr.bf16.mxu0 %v670
        %3558 = vmatmul.mubr.bf16.gmra.mrb[0].mxu0 %v669
        %v3559 = vpop.f32.mrb[0].mxu0
        %v3560 = vadd.f32 %v3367, %v3559
        %v3561 = vpop.f32.mrb[0].mxu0
        %v3562 = vadd.f32 %v3369, %v3561
        %v3563 = vpop.f32.mrb[0].mxu0
        %v3564 = vadd.f32 %v3371, %v3563
        %v3565 = vpop.f32.mrb[0].mxu0
        %v3566 = vadd.f32 %v3373, %v3565
        %3567 = vmatprep.mubr.bf16.mxu0 %v678
        %3568 = vmatmul.mubr.bf16.gmra.mrb[0].mxu0 %v677
        %v3569 = vpop.f32.mrb[0].mxu0
        %v3570 = vadd.f32 %v3377, %v3569
        %v3571 = vpop.f32.mrb[0].mxu0
        %v3572 = vadd.f32 %v3379, %v3571
        %v3573 = vpop.f32.mrb[0].mxu0
        %v3574 = vadd.f32 %v3381, %v3573
        %v3575 = vpop.f32.mrb[0].mxu0
        %v3576 = vadd.f32 %v3383, %v3575
        %3577 = vmatprep.mubr.bf16.mxu0 %v686
        %3578 = vmatmul.mubr.bf16.gmra.mrb[0].mxu0 %v685
        %v3579 = vpop.f32.mrb[0].mxu0
        %v3580 = vadd.f32 %v3387, %v3579
        %v3581 = vpop.f32.mrb[0].mxu0
        %v3582 = vadd.f32 %v3389, %v3581
        %v3583 = vpop.f32.mrb[0].mxu0
        %v3584 = vadd.f32 %v3391, %v3583
        %v3585 = vpop.f32.mrb[0].mxu0
        %v3586 = vadd.f32 %v3393, %v3585
        %3587 = vmatprep.mubr.bf16.mxu0 %v694
        %3588 = vmatmul.mubr.bf16.gmra.mrb[0].mxu0 %v693
        %v3589 = vpop.f32.mrb[0].mxu0
        %v3590 = vadd.f32 %v3397, %v3589
        %v3591 = vpop.f32.mrb[0].mxu0
        %v3592 = vadd.f32 %v3399, %v3591
        %v3593 = vpop.f32.mrb[0].mxu0
        %v3594 = vadd.f32 %v3401, %v3593
        %v3595 = vpop.f32.mrb[0].mxu0
        %v3596 = vadd.f32 %v3403, %v3595
        %3597 = vmatprep.mubr.bf16.mxu0 %v702
        %3598 = vmatmul.mubr.bf16.gmra.mrb[0].mxu0 %v701
        %v3599 = vpop.f32.mrb[0].mxu0
        %v3600 = vadd.f32 %v3407, %v3599
        %v3601 = vpop.f32.mrb[0].mxu0
        %v3602 = vadd.f32 %v3409, %v3601
        %v3603 = vpop.f32.mrb[0].mxu0
        %v3604 = vadd.f32 %v3411, %v3603
        %v3605 = vpop.f32.mrb[0].mxu0
        %v3606 = vadd.f32 %v3413, %v3605
        %3607 = vmatprep.mubr.bf16.mxu0 %v710
        %3608 = vmatmul.mubr.bf16.gmra.mrb[0].mxu0 %v709
        %v3609 = vpop.f32.mrb[0].mxu0
        %v3610 = vadd.f32 %v3417, %v3609
        %v3611 = vpop.f32.mrb[0].mxu0
        %v3612 = vadd.f32 %v3419, %v3611
        %v3613 = vpop.f32.mrb[0].mxu0
        %v3614 = vadd.f32 %v3421, %v3613
        %v3615 = vpop.f32.mrb[0].mxu0
        %v3616 = vadd.f32 %v3423, %v3615
        %3617 = vmatprep.mubr.bf16.mxu0 %v718
        %3618 = vmatmul.mubr.bf16.gmra.mrb[0].mxu0 %v717
        %v3619 = vpop.f32.mrb[0].mxu0
        %v3620 = vadd.f32 %v3427, %v3619
        %v3621 = vpop.f32.mrb[0].mxu0
        %v3622 = vadd.f32 %v3429, %v3621
        %v3623 = vpop.f32.mrb[0].mxu0
        %v3624 = vadd.f32 %v3431, %v3623
        %v3625 = vpop.f32.mrb[0].mxu0
        %v3626 = vadd.f32 %v3433, %v3625
        %3627 = vmatprep.mubr.bf16.mxu0 %v726
        %3628 = vmatmul.mubr.bf16.gmra.mrb[0].mxu0 %v725
        %v3629 = vpop.f32.mrb[0].mxu0
        %v3630 = vadd.f32 %v3437, %v3629
        %v3631 = vpop.f32.mrb[0].mxu0
        %v3632 = vadd.f32 %v3439, %v3631
        %v3633 = vpop.f32.mrb[0].mxu0
        %v3634 = vadd.f32 %v3441, %v3633
        %v3635 = vpop.f32.mrb[0].mxu0
        %v3636 = vadd.f32 %v3443, %v3635
        %3637 = vdwg.mxu0
        %3638 = vmatprep.subr.bf16.mxu0 %v1970
        %3639 = vmatpush1.bf16.msra.mxu0 %v1969
        %3640 = vmatprep.subr.bf16.mxu0 %v1974
        %3641 = vmatpush1.bf16.msra.mxu0 %v1973
        %3642 = vmatprep.subr.bf16.mxu0 %v1978
        %3643 = vmatpush1.bf16.msra.mxu0 %v1977
        %3644 = vmatprep.subr.bf16.mxu0 %v1982
        %3645 = vmatpush1.bf16.msra.mxu0 %v1981
        %3646 = vmatprep.subr.bf16.mxu0 %v1986
        %3647 = vmatpush1.bf16.msra.mxu0 %v1985
        %3648 = vmatprep.subr.bf16.mxu0 %v1990
        %3649 = vmatpush1.bf16.msra.mxu0 %v1989
        %3650 = vmatprep.subr.bf16.mxu0 %v1994
        %3651 = vmatpush1.bf16.msra.mxu0 %v1993
        %3652 = vmatprep.subr.bf16.mxu0 %v1998
        %3653 = vmatpush1.bf16.msra.mxu0 %v1997
        %3654 = vmatprep.subr.bf16.mxu0 %v2002
        %3655 = vmatpush1.bf16.msra.mxu0 %v2001
        %3656 = vmatprep.subr.bf16.mxu0 %v2006
        %3657 = vmatpush1.bf16.msra.mxu0 %v2005
        %3658 = vmatprep.subr.bf16.mxu0 %v2010
        %3659 = vmatpush1.bf16.msra.mxu0 %v2009
        %3660 = vmatprep.subr.bf16.mxu0 %v2014
        %3661 = vmatpush1.bf16.msra.mxu0 %v2013
        %3662 = vmatprep.subr.bf16.mxu0 %v2018
        %3663 = vmatpush1.bf16.msra.mxu0 %v2017
        %3664 = vmatprep.subr.bf16.mxu0 %v2022
        %3665 = vmatpush1.bf16.msra.mxu0 %v2021
        %3666 = vmatprep.subr.bf16.mxu0 %v2026
        %3667 = vmatpush1.bf16.msra.mxu0 %v2025
        %3668 = vmatprep.subr.bf16.mxu0 %v2030
        %3669 = vmatpush1.bf16.msra.mxu0 %v2029
        %3670 = vmatprep.mubr.bf16.mxu0 %v608
        %3671 = vmatmul.mubr.bf16.gmra.mrb[0].mxu0 %v607
        %v3672 = vpop.f32.mrb[0].mxu0
        %v3673 = vadd.f32 %v3480, %v3672
        %v3674 = vpop.f32.mrb[0].mxu0
        %v3675 = vadd.f32 %v3482, %v3674
        %v3676 = vpop.f32.mrb[0].mxu0
        %v3677 = vadd.f32 %v3484, %v3676
        %v3678 = vpop.f32.mrb[0].mxu0
        %v3679 = vadd.f32 %v3486, %v3678
        %3680 = vmatprep.mubr.bf16.mxu0 %v616
        %3681 = vmatmul.mubr.bf16.gmra.mrb[0].mxu0 %v615
        %v3682 = vpop.f32.mrb[0].mxu0
        %v3683 = vadd.f32 %v3490, %v3682
        %v3684 = vpop.f32.mrb[0].mxu0
        %v3685 = vadd.f32 %v3492, %v3684
        %v3686 = vpop.f32.mrb[0].mxu0
        %v3687 = vadd.f32 %v3494, %v3686
        %v3688 = vpop.f32.mrb[0].mxu0
        %v3689 = vadd.f32 %v3496, %v3688
        %3690 = vmatprep.mubr.bf16.mxu0 %v624
        %3691 = vmatmul.mubr.bf16.gmra.mrb[0].mxu0 %v623
        %v3692 = vpop.f32.mrb[0].mxu0
        %v3693 = vadd.f32 %v3500, %v3692
        %v3694 = vpop.f32.mrb[0].mxu0
        %v3695 = vadd.f32 %v3502, %v3694
        %v3696 = vpop.f32.mrb[0].mxu0
        %v3697 = vadd.f32 %v3504, %v3696
        %v3698 = vpop.f32.mrb[0].mxu0
        %v3699 = vadd.f32 %v3506, %v3698
        %3700 = vmatprep.mubr.bf16.mxu0 %v632
        %3701 = vmatmul.mubr.bf16.gmra.mrb[0].mxu0 %v631
        %v3702 = vpop.f32.mrb[0].mxu0
        %v3703 = vadd.f32 %v3510, %v3702
        %v3704 = vpop.f32.mrb[0].mxu0
        %v3705 = vadd.f32 %v3512, %v3704
        %v3706 = vpop.f32.mrb[0].mxu0
        %v3707 = vadd.f32 %v3514, %v3706
        %v3708 = vpop.f32.mrb[0].mxu0
        %v3709 = vadd.f32 %v3516, %v3708
        %3710 = vmatprep.mubr.bf16.mxu0 %v640
        %3711 = vmatmul.mubr.bf16.gmra.mrb[0].mxu0 %v639
        %v3712 = vpop.f32.mrb[0].mxu0
        %v3713 = vadd.f32 %v3520, %v3712
        %v3714 = vpop.f32.mrb[0].mxu0
        %v3715 = vadd.f32 %v3522, %v3714
        %v3716 = vpop.f32.mrb[0].mxu0
        %v3717 = vadd.f32 %v3524, %v3716
        %v3718 = vpop.f32.mrb[0].mxu0
        %v3719 = vadd.f32 %v3526, %v3718
        %3720 = vmatprep.mubr.bf16.mxu0 %v648
        %3721 = vmatmul.mubr.bf16.gmra.mrb[0].mxu0 %v647
        %v3722 = vpop.f32.mrb[0].mxu0
        %v3723 = vadd.f32 %v3530, %v3722
        %v3724 = vpop.f32.mrb[0].mxu0
        %v3725 = vadd.f32 %v3532, %v3724
        %v3726 = vpop.f32.mrb[0].mxu0
        %v3727 = vadd.f32 %v3534, %v3726
        %v3728 = vpop.f32.mrb[0].mxu0
        %v3729 = vadd.f32 %v3536, %v3728
        %3730 = vmatprep.mubr.bf16.mxu0 %v656
        %3731 = vmatmul.mubr.bf16.gmra.mrb[0].mxu0 %v655
        %v3732 = vpop.f32.mrb[0].mxu0
        %v3733 = vadd.f32 %v3540, %v3732
        %v3734 = vpop.f32.mrb[0].mxu0
        %v3735 = vadd.f32 %v3542, %v3734
        %v3736 = vpop.f32.mrb[0].mxu0
        %v3737 = vadd.f32 %v3544, %v3736
        %v3738 = vpop.f32.mrb[0].mxu0
        %v3739 = vadd.f32 %v3546, %v3738
        %3740 = vmatprep.mubr.bf16.mxu0 %v664
        %3741 = vmatmul.mubr.bf16.gmra.mrb[0].mxu0 %v663
        %v3742 = vpop.f32.mrb[0].mxu0
        %v3743 = vadd.f32 %v3550, %v3742
        %v3744 = vpop.f32.mrb[0].mxu0
        %v3745 = vadd.f32 %v3552, %v3744
        %v3746 = vpop.f32.mrb[0].mxu0
        %v3747 = vadd.f32 %v3554, %v3746
        %v3748 = vpop.f32.mrb[0].mxu0
        %v3749 = vadd.f32 %v3556, %v3748
        %3750 = vmatprep.mubr.bf16.mxu0 %v672
        %3751 = vmatmul.mubr.bf16.gmra.mrb[0].mxu0 %v671
        %v3752 = vpop.f32.mrb[0].mxu0
        %v3753 = vadd.f32 %v3560, %v3752
        %v3754 = vpop.f32.mrb[0].mxu0
        %v3755 = vadd.f32 %v3562, %v3754
        %v3756 = vpop.f32.mrb[0].mxu0
        %v3757 = vadd.f32 %v3564, %v3756
        %v3758 = vpop.f32.mrb[0].mxu0
        %v3759 = vadd.f32 %v3566, %v3758
        %3760 = vmatprep.mubr.bf16.mxu0 %v680
        %3761 = vmatmul.mubr.bf16.gmra.mrb[0].mxu0 %v679
        %v3762 = vpop.f32.mrb[0].mxu0
        %v3763 = vadd.f32 %v3570, %v3762
        %v3764 = vpop.f32.mrb[0].mxu0
        %v3765 = vadd.f32 %v3572, %v3764
        %v3766 = vpop.f32.mrb[0].mxu0
        %v3767 = vadd.f32 %v3574, %v3766
        %v3768 = vpop.f32.mrb[0].mxu0
        %v3769 = vadd.f32 %v3576, %v3768
        %3770 = vmatprep.mubr.bf16.mxu0 %v688
        %3771 = vmatmul.mubr.bf16.gmra.mrb[0].mxu0 %v687
        %v3772 = vpop.f32.mrb[0].mxu0
        %v3773 = vadd.f32 %v3580, %v3772
        %v3774 = vpop.f32.mrb[0].mxu0
        %v3775 = vadd.f32 %v3582, %v3774
        %v3776 = vpop.f32.mrb[0].mxu0
        %v3777 = vadd.f32 %v3584, %v3776
        %v3778 = vpop.f32.mrb[0].mxu0
        %v3779 = vadd.f32 %v3586, %v3778
        %3780 = vmatprep.mubr.bf16.mxu0 %v696
        %3781 = vmatmul.mubr.bf16.gmra.mrb[0].mxu0 %v695
        %v3782 = vpop.f32.mrb[0].mxu0
        %v3783 = vadd.f32 %v3590, %v3782
        %v3784 = vpop.f32.mrb[0].mxu0
        %v3785 = vadd.f32 %v3592, %v3784
        %v3786 = vpop.f32.mrb[0].mxu0
        %v3787 = vadd.f32 %v3594, %v3786
        %v3788 = vpop.f32.mrb[0].mxu0
        %v3789 = vadd.f32 %v3596, %v3788
        %3790 = vmatprep.mubr.bf16.mxu0 %v704
        %3791 = vmatmul.mubr.bf16.gmra.mrb[0].mxu0 %v703
        %v3792 = vpop.f32.mrb[0].mxu0
        %v3793 = vadd.f32 %v3600, %v3792
        %v3794 = vpop.f32.mrb[0].mxu0
        %v3795 = vadd.f32 %v3602, %v3794
        %v3796 = vpop.f32.mrb[0].mxu0
        %v3797 = vadd.f32 %v3604, %v3796
        %v3798 = vpop.f32.mrb[0].mxu0
        %v3799 = vadd.f32 %v3606, %v3798
        %3800 = vmatprep.mubr.bf16.mxu0 %v712
        %3801 = vmatmul.mubr.bf16.gmra.mrb[0].mxu0 %v711
        %v3802 = vpop.f32.mrb[0].mxu0
        %v3803 = vadd.f32 %v3610, %v3802
        %v3804 = vpop.f32.mrb[0].mxu0
        %v3805 = vadd.f32 %v3612, %v3804
        %v3806 = vpop.f32.mrb[0].mxu0
        %v3807 = vadd.f32 %v3614, %v3806
        %v3808 = vpop.f32.mrb[0].mxu0
        %v3809 = vadd.f32 %v3616, %v3808
        %3810 = vmatprep.mubr.bf16.mxu0 %v720
        %3811 = vmatmul.mubr.bf16.gmra.mrb[0].mxu0 %v719
        %v3812 = vpop.f32.mrb[0].mxu0
        %v3813 = vadd.f32 %v3620, %v3812
        %v3814 = vpop.f32.mrb[0].mxu0
        %v3815 = vadd.f32 %v3622, %v3814
        %v3816 = vpop.f32.mrb[0].mxu0
        %v3817 = vadd.f32 %v3624, %v3816
        %v3818 = vpop.f32.mrb[0].mxu0
        %v3819 = vadd.f32 %v3626, %v3818
        %3820 = vmatprep.mubr.bf16.mxu0 %v728
        %3821 = vmatmul.mubr.bf16.gmra.mrb[0].mxu0 %v727
        %v3822 = vpop.f32.mrb[0].mxu0
        %v3823 = vadd.f32 %v3630, %v3822
        %v3824 = vpop.f32.mrb[0].mxu0
        %v3825 = vadd.f32 %v3632, %v3824
        %v3826 = vpop.f32.mrb[0].mxu0
        %v3827 = vadd.f32 %v3634, %v3826
        %v3828 = vpop.f32.mrb[0].mxu0
        %v3829 = vadd.f32 %v3636, %v3828
        %3830 = vdwg.mxu0
        %v3831 = vmax.f32 %v2901, 0.0
        %v3832 = vmax.f32 %v2903, 0.0
        %v3833 = vmax.f32 %v3673, 0.0
        %v3834 = vmax.f32 %v3675, 0.0
        %v3835 = vmax.f32 %v2905, 0.0
        %v3836 = vmax.f32 %v2907, 0.0
        %v3837 = vmax.f32 %v3677, 0.0
        %v3838 = vmax.f32 %v3679, 0.0
        %v3839 = vmax.f32 %v2911, 0.0
        %v3840 = vmax.f32 %v2913, 0.0
        %v3841 = vmax.f32 %v3683, 0.0
        %v3842 = vmax.f32 %v3685, 0.0
        %v3843 = vmax.f32 %v2915, 0.0
        %v3844 = vmax.f32 %v2917, 0.0
        %v3845 = vmax.f32 %v3687, 0.0
        %v3846 = vmax.f32 %v3689, 0.0
        %v3847 = vmax.f32 %v2921, 0.0
        %v3848 = vmax.f32 %v2923, 0.0
        %v3849 = vmax.f32 %v3693, 0.0
        %v3850 = vmax.f32 %v3695, 0.0
        %v3851 = vmax.f32 %v2925, 0.0
        %v3852 = vmax.f32 %v2927, 0.0
        %v3853 = vmax.f32 %v3697, 0.0
        %v3854 = vmax.f32 %v3699, 0.0
        %v3855 = vmax.f32 %v2931, 0.0
        %v3856 = vmax.f32 %v2933, 0.0
        %v3857 = vmax.f32 %v3703, 0.0
        %v3858 = vmax.f32 %v3705, 0.0
        %v3859 = vmax.f32 %v2935, 0.0
        %v3860 = vmax.f32 %v2937, 0.0
        %v3861 = vmax.f32 %v3707, 0.0
        %v3862 = vmax.f32 %v3709, 0.0
        %v3863 = vmax.f32 %v2941, 0.0
        %v3864 = vmax.f32 %v2943, 0.0
        %v3865 = vmax.f32 %v3713, 0.0
        %v3866 = vmax.f32 %v3715, 0.0
        %v3867 = vmax.f32 %v2945, 0.0
        %v3868 = vmax.f32 %v2947, 0.0
        %v3869 = vmax.f32 %v3717, 0.0
        %v3870 = vmax.f32 %v3719, 0.0
        %v3871 = vmax.f32 %v2951, 0.0
        %v3872 = vmax.f32 %v2953, 0.0
        %v3873 = vmax.f32 %v3723, 0.0
        %v3874 = vmax.f32 %v3725, 0.0
        %v3875 = vmax.f32 %v2955, 0.0
        %v3876 = vmax.f32 %v2957, 0.0
        %v3877 = vmax.f32 %v3727, 0.0
        %v3878 = vmax.f32 %v3729, 0.0
        %v3879 = vmax.f32 %v2961, 0.0
        %v3880 = vmax.f32 %v2963, 0.0
        %v3881 = vmax.f32 %v3733, 0.0
        %v3882 = vmax.f32 %v3735, 0.0
        %v3883 = vmax.f32 %v2965, 0.0
        %v3884 = vmax.f32 %v2967, 0.0
        %v3885 = vmax.f32 %v3737, 0.0
        %v3886 = vmax.f32 %v3739, 0.0
        %v3887 = vmax.f32 %v2971, 0.0
        %v3888 = vmax.f32 %v2973, 0.0
        %v3889 = vmax.f32 %v3743, 0.0
        %v3890 = vmax.f32 %v3745, 0.0
        %v3891 = vmax.f32 %v2975, 0.0
        %v3892 = vmax.f32 %v2977, 0.0
        %v3893 = vmax.f32 %v3747, 0.0
        %v3894 = vmax.f32 %v3749, 0.0
        %v3895 = vmax.f32 %v2981, 0.0
        %v3896 = vmax.f32 %v2983, 0.0
        %v3897 = vmax.f32 %v3753, 0.0
        %v3898 = vmax.f32 %v3755, 0.0
        %v3899 = vmax.f32 %v2985, 0.0
        %v3900 = vmax.f32 %v2987, 0.0
        %v3901 = vmax.f32 %v3757, 0.0
        %v3902 = vmax.f32 %v3759, 0.0
        %v3903 = vmax.f32 %v2991, 0.0
        %v3904 = vmax.f32 %v2993, 0.0
        %v3905 = vmax.f32 %v3763, 0.0
        %v3906 = vmax.f32 %v3765, 0.0
        %v3907 = vmax.f32 %v2995, 0.0
        %v3908 = vmax.f32 %v2997, 0.0
        %v3909 = vmax.f32 %v3767, 0.0
        %v3910 = vmax.f32 %v3769, 0.0
        %v3911 = vmax.f32 %v3001, 0.0
        %v3912 = vmax.f32 %v3003, 0.0
        %v3913 = vmax.f32 %v3773, 0.0
        %v3914 = vmax.f32 %v3775, 0.0
        %v3915 = vmax.f32 %v3005, 0.0
        %v3916 = vmax.f32 %v3007, 0.0
        %v3917 = vmax.f32 %v3777, 0.0
        %v3918 = vmax.f32 %v3779, 0.0
        %v3919 = vmax.f32 %v3011, 0.0
        %v3920 = vmax.f32 %v3013, 0.0
        %v3921 = vmax.f32 %v3783, 0.0
        %v3922 = vmax.f32 %v3785, 0.0
        %v3923 = vmax.f32 %v3015, 0.0
        %v3924 = vmax.f32 %v3017, 0.0
        %v3925 = vmax.f32 %v3787, 0.0
        %v3926 = vmax.f32 %v3789, 0.0
        %v3927 = vmax.f32 %v3021, 0.0
        %v3928 = vmax.f32 %v3023, 0.0
        %v3929 = vmax.f32 %v3793, 0.0
        %v3930 = vmax.f32 %v3795, 0.0
        %v3931 = vmax.f32 %v3025, 0.0
        %v3932 = vmax.f32 %v3027, 0.0
        %v3933 = vmax.f32 %v3797, 0.0
        %v3934 = vmax.f32 %v3799, 0.0
        %v3935 = vmax.f32 %v3031, 0.0
        %v3936 = vmax.f32 %v3033, 0.0
        %v3937 = vmax.f32 %v3803, 0.0
        %v3938 = vmax.f32 %v3805, 0.0
        %v3939 = vmax.f32 %v3035, 0.0
        %v3940 = vmax.f32 %v3037, 0.0
        %v3941 = vmax.f32 %v3807, 0.0
        %v3942 = vmax.f32 %v3809, 0.0
        %v3943 = vmax.f32 %v3041, 0.0
        %v3944 = vmax.f32 %v3043, 0.0
        %v3945 = vmax.f32 %v3813, 0.0
        %v3946 = vmax.f32 %v3815, 0.0
        %v3947 = vmax.f32 %v3045, 0.0
        %v3948 = vmax.f32 %v3047, 0.0
        %v3949 = vmax.f32 %v3817, 0.0
        %v3950 = vmax.f32 %v3819, 0.0
        %v3951 = vmax.f32 %v3051, 0.0
        %v3952 = vmax.f32 %v3053, 0.0
        %v3953 = vmax.f32 %v3823, 0.0
        %v3954 = vmax.f32 %v3825, 0.0
        %v3955 = vmax.f32 %v3055, 0.0
        %v3956 = vmax.f32 %v3057, 0.0
        %v3957 = vmax.f32 %v3827, 0.0
        %v3958 = vmax.f32 %v3829, 0.0
        %v3959 = vld [vmem:[#allocation8] sm:$0xf]
        %v3960 = vpack.c.bf16 %v3835, %v3831
        %v3961 = vpack.c.bf16 %v3836, %v3832
        %v3962 = vpack.c.bf16 %v3837, %v3833
        %v3963 = vpack.c.bf16 %v3838, %v3834
        %v3964 = vpack.c.bf16 %v3843, %v3839
        %v3965 = vpack.c.bf16 %v3844, %v3840
        %v3966 = vpack.c.bf16 %v3845, %v3841
        %v3967 = vpack.c.bf16 %v3846, %v3842
        %v3968 = vpack.c.bf16 %v3851, %v3847
        %v3969 = vpack.c.bf16 %v3852, %v3848
        %v3970 = vpack.c.bf16 %v3853, %v3849
        %v3971 = vpack.c.bf16 %v3854, %v3850
        %v3972 = vpack.c.bf16 %v3859, %v3855
        %v3973 = vpack.c.bf16 %v3860, %v3856
        %v3974 = vpack.c.bf16 %v3861, %v3857
        %v3975 = vpack.c.bf16 %v3862, %v3858
        %v3976 = vpack.c.bf16 %v3867, %v3863
        %v3977 = vpack.c.bf16 %v3868, %v3864
        %v3978 = vpack.c.bf16 %v3869, %v3865
        %v3979 = vpack.c.bf16 %v3870, %v3866
        %v3980 = vpack.c.bf16 %v3875, %v3871
        %v3981 = vpack.c.bf16 %v3876, %v3872
        %v3982 = vpack.c.bf16 %v3877, %v3873
        %v3983 = vpack.c.bf16 %v3878, %v3874
        %v3984 = vpack.c.bf16 %v3883, %v3879
        %v3985 = vpack.c.bf16 %v3884, %v3880
        %v3986 = vpack.c.bf16 %v3885, %v3881
        %v3987 = vpack.c.bf16 %v3886, %v3882
        %v3988 = vpack.c.bf16 %v3891, %v3887
        %v3989 = vpack.c.bf16 %v3892, %v3888
        %v3990 = vpack.c.bf16 %v3893, %v3889
        %v3991 = vpack.c.bf16 %v3894, %v3890
        %v3992 = vpack.c.bf16 %v3899, %v3895
        %v3993 = vpack.c.bf16 %v3900, %v3896
        %v3994 = vpack.c.bf16 %v3901, %v3897
        %v3995 = vpack.c.bf16 %v3902, %v3898
        %v3996 = vpack.c.bf16 %v3907, %v3903
        %v3997 = vpack.c.bf16 %v3908, %v3904
        %v3998 = vpack.c.bf16 %v3909, %v3905
        %v3999 = vpack.c.bf16 %v3910, %v3906
        %v4000 = vpack.c.bf16 %v3915, %v3911
        %v4001 = vpack.c.bf16 %v3916, %v3912
        %v4002 = vpack.c.bf16 %v3917, %v3913
        %v4003 = vpack.c.bf16 %v3918, %v3914
        %v4004 = vpack.c.bf16 %v3923, %v3919
        %v4005 = vpack.c.bf16 %v3924, %v3920
        %v4006 = vpack.c.bf16 %v3925, %v3921
        %v4007 = vpack.c.bf16 %v3926, %v3922
        %v4008 = vpack.c.bf16 %v3931, %v3927
        %v4009 = vpack.c.bf16 %v3932, %v3928
        %v4010 = vpack.c.bf16 %v3933, %v3929
        %v4011 = vpack.c.bf16 %v3934, %v3930
        %v4012 = vpack.c.bf16 %v3939, %v3935
        %v4013 = vpack.c.bf16 %v3940, %v3936
        %v4014 = vpack.c.bf16 %v3941, %v3937
        %v4015 = vpack.c.bf16 %v3942, %v3938
        %v4016 = vpack.c.bf16 %v3947, %v3943
        %v4017 = vpack.c.bf16 %v3948, %v3944
        %v4018 = vpack.c.bf16 %v3949, %v3945
        %v4019 = vpack.c.bf16 %v3950, %v3946
        %v4020 = vpack.c.bf16 %v3955, %v3951
        %v4021 = vpack.c.bf16 %v3956, %v3952
        %v4022 = vpack.c.bf16 %v3957, %v3953
        %v4023 = vpack.c.bf16 %v3958, %v3954
        %v4024 = vld [vmem:[%s4] sm:$0x3]
        %4026 = vset.pattern.permute.xlu0 0
        %4027 = vperm.xlu0 %4026, %v4024
        %v4028 = vpop.permute.xlu0 %4027
        %v4032 = vunpack.c.l.s4 1966171168
        %v4033 = vunpack.c.0.s8 %v4032
        %v4034 = vlaneseq
        %v4035 = vshrl.u32 %v4034, 7
        %v4036 = vsub.s32 %v4033, %v4035
        %v4037 = vrot.slane %v3959, %v4036
        %v4038 = vcombine.high %v4037, %v4037
        %v4040 = vunpack.c.l.s4 1966171168
        %v4041 = vunpack.c.0.s8 %v4040
        %v4042 = vlaneseq
        %v4043 = vshrl.u32 %v4042, 7
        %v4044 = vsub.s32 %v4041, %v4043
        %v4045 = vrot.slane %v4037, %v4044
        %v4047 = vunpack.c.l.s4 1966171168
        %v4048 = vunpack.c.0.s8 %v4047
        %v4049 = vlaneseq
        %v4050 = vshrl.u32 %v4049, 7
        %v4051 = vsub.s32 %v4048, %v4050
        %v4052 = vrot.slane %v4038, %v4051
        %v4053 = vcombine.high %v4045, %v4045
        %v4054 = vcombine.high %v4052, %v4052
        %4059 = vmatprep.subr.bf16.mxu0 %v3961
        %4060 = vmatpush1.bf16.xpose.msra.mxu0 %v3960
        %4061 = vmatprep.subr.bf16.mxu0 %v3965
        %4062 = vmatpush1.bf16.xpose.msra.mxu0 %v3964
        %4063 = vmatprep.subr.bf16.mxu0 %v3969
        %4064 = vmatpush1.bf16.xpose.msra.mxu0 %v3968
        %4065 = vmatprep.subr.bf16.mxu0 %v3973
        %4066 = vmatpush1.bf16.xpose.msra.mxu0 %v3972
        %4067 = vmatprep.subr.bf16.mxu0 %v3977
        %4068 = vmatpush1.bf16.xpose.msra.mxu0 %v3976
        %4069 = vmatprep.subr.bf16.mxu0 %v3981
        %4070 = vmatpush1.bf16.xpose.msra.mxu0 %v3980
        %4071 = vmatprep.subr.bf16.mxu0 %v3985
        %4072 = vmatpush1.bf16.xpose.msra.mxu0 %v3984
        %4073 = vmatprep.subr.bf16.mxu0 %v3989
        %4074 = vmatpush1.bf16.xpose.msra.mxu0 %v3988
        %4075 = vmatprep.subr.bf16.mxu0 %v3993
        %4076 = vmatpush1.bf16.xpose.msra.mxu0 %v3992
        %4077 = vmatprep.subr.bf16.mxu0 %v3997
        %4078 = vmatpush1.bf16.xpose.msra.mxu0 %v3996
        %4079 = vmatprep.subr.bf16.mxu0 %v4001
        %4080 = vmatpush1.bf16.xpose.msra.mxu0 %v4000
        %4081 = vmatprep.subr.bf16.mxu0 %v4005
        %4082 = vmatpush1.bf16.xpose.msra.mxu0 %v4004
        %4083 = vmatprep.subr.bf16.mxu0 %v4009
        %4084 = vmatpush1.bf16.xpose.msra.mxu0 %v4008
        %4085 = vmatprep.subr.bf16.mxu0 %v4013
        %4086 = vmatpush1.bf16.xpose.msra.mxu0 %v4012
        %4087 = vmatprep.subr.bf16.mxu0 %v4017
        %4088 = vmatpush1.bf16.xpose.msra.mxu0 %v4016
        %4089 = vmatprep.subr.bf16.mxu0 %v4021
        %4090 = vmatpush1.bf16.xpose.msra.mxu0 %v4020
        %4091 = vmatprep.mubr.bf16.mxu0 %v4052
        %4092 = vmatmul.mubr.bf16.gmra.mrb[0].mxu0 %v4045
        %v4093 = vpop.f32.mrb[0].mxu0
        %v4094 = vadd.f32 %v4028, %v4093
        %v4095 = vpop.f32.mrb[0].mxu0
        %v4096 = vadd.f32 %v4028, %v4095
        %v4097 = vpop.f32.mrb[0].mxu0
        %v4098 = vpop.f32.mrb[0].mxu0
        %4099 = vdwg.mxu0
        %4100 = vmatprep.subr.bf16.mxu0 %v3963
        %4101 = vmatpush1.bf16.xpose.msra.mxu0 %v3962
        %4102 = vmatprep.subr.bf16.mxu0 %v3967
        %4103 = vmatpush1.bf16.xpose.msra.mxu0 %v3966
        %4104 = vmatprep.subr.bf16.mxu0 %v3971
        %4105 = vmatpush1.bf16.xpose.msra.mxu0 %v3970
        %4106 = vmatprep.subr.bf16.mxu0 %v3975
        %4107 = vmatpush1.bf16.xpose.msra.mxu0 %v3974
        %4108 = vmatprep.subr.bf16.mxu0 %v3979
        %4109 = vmatpush1.bf16.xpose.msra.mxu0 %v3978
        %4110 = vmatprep.subr.bf16.mxu0 %v3983
        %4111 = vmatpush1.bf16.xpose.msra.mxu0 %v3982
        %4112 = vmatprep.subr.bf16.mxu0 %v3987
        %4113 = vmatpush1.bf16.xpose.msra.mxu0 %v3986
        %4114 = vmatprep.subr.bf16.mxu0 %v3991
        %4115 = vmatpush1.bf16.xpose.msra.mxu0 %v3990
        %4116 = vmatprep.subr.bf16.mxu0 %v3995
        %4117 = vmatpush1.bf16.xpose.msra.mxu0 %v3994
        %4118 = vmatprep.subr.bf16.mxu0 %v3999
        %4119 = vmatpush1.bf16.xpose.msra.mxu0 %v3998
        %4120 = vmatprep.subr.bf16.mxu0 %v4003
        %4121 = vmatpush1.bf16.xpose.msra.mxu0 %v4002
        %4122 = vmatprep.subr.bf16.mxu0 %v4007
        %4123 = vmatpush1.bf16.xpose.msra.mxu0 %v4006
        %4124 = vmatprep.subr.bf16.mxu0 %v4011
        %4125 = vmatpush1.bf16.xpose.msra.mxu0 %v4010
        %4126 = vmatprep.subr.bf16.mxu0 %v4015
        %4127 = vmatpush1.bf16.xpose.msra.mxu0 %v4014
        %4128 = vmatprep.subr.bf16.mxu0 %v4019
        %4129 = vmatpush1.bf16.xpose.msra.mxu0 %v4018
        %4130 = vmatprep.subr.bf16.mxu0 %v4023
        %4131 = vmatpush1.bf16.xpose.msra.mxu0 %v4022
        %4132 = vmatprep.mubr.bf16.mxu0 %v4054
        %4133 = vmatmul.mubr.bf16.gmra.mrb[0].mxu0 %v4053
        %v4134 = vpop.f32.mrb[0].mxu0
        %v4135 = vadd.f32 %v4094, %v4134
        %v4136 = vpop.f32.mrb[0].mxu0
        %v4137 = vadd.f32 %v4096, %v4136
        %v4138 = vpop.f32.mrb[0].mxu0
        %v4139 = vpop.f32.mrb[0].mxu0
        %4140 = vdwg.mxu0
        %v4143 = vcombine.low %v4135, %v4137
        %v4145 = vunpack.c.l.s4 1983009808
        %v4146 = vunpack.c.0.s8 %v4145
        %v4147 = vlaneseq
        %v4148 = vshrl.u32 %v4147, 7
        %v4149 = vsub.s32 %v4146, %v4148
        %v4150 = vrot.slane %v4143, %v4149
        %4152 = vst [vmem:[%s321] sm:$0xf] %v4150
        %v4153 = vrot.slane %v4135, 1
        %v4154 = vrot.slane %v4137, 1
        %v4157 = vsub.f32 %v4135, %v4153
        %v4158 = vsub.f32 %v4137, %v4154
        %v4159 = vmul.f32 %v4157, 1.442695
        %v4160 = vpow.pop %v4159
        %v4161 = vmul.f32 %v4158, 1.442695
        %v4162 = vpow.pop %v4161
        %v4163 = vadd.f32 %v4160, 1.0
        %v4164 = vadd.f32 %v4162, 1.0
        %v4165 = vrcp.pop %v4163
        %v4166 = vrcp.pop %v4164
        %v4167 = vlaneseq
        %v4168 = vshrl.u32 %v4167, 7
        %vm4169 = vcmp.eq.s32.totalorder %v4168, 0
        %v4170 = vsub.f32 1.0, %v4165
        %v4171 = vsub.f32 1.0, %v4166
        %v4172 = vlaneseq
        %v4173 = vshrl.u32 %v4172, 7
        %v4174 = vsub.s32 0, %v4173
        %v4175 = vrot.slane %v4170, %v4174
        %v4176 = vlaneseq
        %v4177 = vshrl.u32 %v4176, 7
        %v4178 = vsub.s32 0, %v4177
        %v4179 = vrot.slane %v4171, %v4178
        %v4180 = vlaneseq
        %v4181 = vshrl.u32 %v4180, 7
        %v4182 = vsub.s32 0, %v4181
        %v4183 = vrot.slane %v4165, %v4182
        %v4184 = vlaneseq
        %v4185 = vshrl.u32 %v4184, 7
        %v4186 = vsub.s32 0, %v4185
        %v4187 = vrot.slane %v4166, %v4186
        %v4188 = vsel %vm4169, %v4175, %v4183
        %v4189 = vsel %vm4169, %v4179, %v4187
        %v4192 = vcombine.low %v4188, %v4189
        %v4194 = vunpack.c.l.s4 1983009808
        %v4195 = vunpack.c.0.s8 %v4194
        %v4196 = vlaneseq
        %v4197 = vshrl.u32 %v4196, 7
        %v4198 = vsub.s32 %v4195, %v4197
        %v4199 = vrot.slane %v4192, %v4198
        %4201 = vst [vmem:[%s328] sm:$0xf] %v4199
        %s4202 = sand.u32 %s147, 1
        %s4203 = scalar_lea.sflag [#allocation4], %s4202
        %s4204 = sand.u32 %s147, 1
        %s4205 = smul.addr %s4204, 4
        %s4206 = scalar_lea.vmem [#allocation10], %s4205
        %s4207 = sand.u32 %s173, 1
        %s4208 = scalar_lea.sflag [#allocation12], %s4207
        %s4209 = sand.u32 %s173, 1
        %s4210 = smul.addr %s4209, 4
        %s4211 = scalar_lea.vmem [#allocation11], %s4210
        // Predicated region
        $region57: #{tpu_custom_call.1} parent=39 // pred_check
          %p4212 = pneg %p157
        $region58: #{tpu_custom_call.1} parent=39 // pred_check_branch
          %4214 = sbr.rel (%p4212) target = $region60
        $region59: #{tpu_custom_call.1} parent=39 // pred_region
          %s4215 = smul.u32 2, %s29
          %s4216 = ssub.s32 3, %s4215
          %p4217 = scmp.lt.s32.totalorder %s4216, 2
          %s4218 = scalar_select %p4217, %s4216, 2
          %s4219 = smul.u32 32, %s4218
          %s4221 = ssub.s32 64, %s4219
          %4222 = vsyncadd %s4203, %s4221
          %p4223 = scmp.ne.s32.totalorder 0, %s4219
          %s4224 = smul.addr %s4215, 32
          %s4225 = scalar_lea.hbm %s5, %s4224
          %s4226 = smul.u32 %s4218, 2
          %s4227 = sshll.u32 %s4226, 4
          %s4228 = sshll.u32 %s4206, 4
          %s4229 = int_to_ptr.vmem [resolvable:$true] %s4228
          %4231 = dma.vmem_to_hbm [thread:$0]  (%p4223), %s4229, %s4227, %s4225, %s4203
        $region60: #{tpu_custom_call.1} parent=39 // pred_fallthru
          _
        // Predicated region
        $region61: #{tpu_custom_call.1} parent=39 // pred_check
          %p4232 = pneg %p183
        $region62: #{tpu_custom_call.1} parent=39 // pred_check_branch
          %4234 = sbr.rel (%p4232) target = $region64
        $region63: #{tpu_custom_call.1} parent=39 // pred_region
          %s4235 = smul.u32 2, %s29
          %s4236 = ssub.s32 3, %s4235
          %p4237 = scmp.lt.s32.totalorder %s4236, 2
          %s4238 = scalar_select %p4237, %s4236, 2
          %s4239 = smul.u32 32, %s4238
          %s4241 = ssub.s32 64, %s4239
          %4242 = vsyncadd %s4208, %s4241
          %p4243 = scmp.ne.s32.totalorder 0, %s4239
          %s4244 = smul.addr %s4235, 32
          %s4245 = scalar_lea.hbm %s6, %s4244
          %s4246 = smul.u32 %s4238, 2
          %s4247 = sshll.u32 %s4246, 4
          %s4248 = sshll.u32 %s4211, 4
          %s4249 = int_to_ptr.vmem [resolvable:$true] %s4248
          %4251 = dma.vmem_to_hbm [thread:$0]  (%p4243), %s4249, %s4247, %s4245, %s4208
        $region64: #{tpu_custom_call.1} parent=39 // pred_fallthru
          _
      $region40: #{tpu_custom_call.1} parent=5 // pred_fallthru
        _
      %p4252 = scmp.le.s32.totalorder 2, %s24
      // Predicated region
      $region65: #{tpu_custom_call.1} parent=5 // pred_check
        %p4253 = pneg %p4252
      $region66: #{tpu_custom_call.1} parent=5 // pred_check_branch
        %4255 = sbr.rel (%p4253) target = $region68
      $region67: #{tpu_custom_call.1} parent=5 // pred_region
        %s4256 = ssub.s32 %s24, 2
        // Predicated region
        $region69: #{tpu_custom_call.1} parent=67 // pred_check
          %p4257 = pneg %p163
        $region70: #{tpu_custom_call.1} parent=67 // pred_check_branch
          %4259 = sbr.rel (%p4257) target = $region72
        $region71: #{tpu_custom_call.1} parent=67 // pred_region
          %s4260 = sand.u32 %s148, 1
          %s4261 = scalar_lea.sflag [#allocation4], %s4260
          %s4262 = sand.u32 %s148, 1
          %s4263 = smul.addr %s4262, 4
          %s4264 = scalar_lea.vmem [#allocation10], %s4263
          %4265 = dma.done %s4261, 64
        $region72: #{tpu_custom_call.1} parent=67 // pred_fallthru
          _
        // Predicated region
        $region73: #{tpu_custom_call.1} parent=67 // pred_check
          %p4266 = pneg %p189
        $region74: #{tpu_custom_call.1} parent=67 // pred_check_branch
          %4268 = sbr.rel (%p4266) target = $region76
        $region75: #{tpu_custom_call.1} parent=67 // pred_region
          %s4269 = sand.u32 %s174, 1
          %s4270 = scalar_lea.sflag [#allocation12], %s4269
          %s4271 = sand.u32 %s174, 1
          %s4272 = smul.addr %s4271, 4
          %s4273 = scalar_lea.vmem [#allocation11], %s4272
          %4274 = dma.done %s4270, 64
        $region76: #{tpu_custom_call.1} parent=67 // pred_fallthru
          _
      $region68: #{tpu_custom_call.1} parent=5 // pred_fallthru
        _
    $region6: #{tpu_custom_call.1} parent=1 // loop_footer
      %s28 = sadd.s32 1, %s24
    $region7: #{tpu_custom_call.1} parent=1 // loop_footer_branch
      %23 = sbr.rel target = $region3
    $region8: #{tpu_custom_call.1} parent=1 // loop_exit
      _
    %4275 = vsyncpa [#allocation3], 1
    %s4276 = scalar_lea.sflag [#allocation3], 1
    %4277 = vsyncpa %s4276, 1
    %4278 = vsyncpa [#allocation6], 1
    %4279 = vsyncpa [#allocation9], 1
    %4280 = vsyncpa [#allocation4], 1
    %s4281 = scalar_lea.sflag [#allocation4], 1
    %4282 = vsyncpa %s4281, 1
    %4283 = vsyncpa [#allocation12], 1
    %s4284 = scalar_lea.sflag [#allocation12], 1
    %4285 = vsyncpa %s4284, 1

</llo_original>
